<compile_context>
chip_gen: v6e
topology: v6e:2x2x1
jax: 0.10.0
libtpu: 0.0.40
codegen_flags: <defaults>
</compile_context>

<pallas_src>
import math
from functools import partial

import jax
import jax.numpy as jnp
from jax.experimental import pallas as pl
from jax.experimental.pallas import tpu as pltpu


# ----------------------------------------------------------------------------
# Fused Fire kernel
# ----------------------------------------------------------------------------
def _fire_kernel(x_ref, wsq_ref, bsq_ref, wex_ref, bex_ref, o_ref,
                 spad_ref, col_ref, *, H, W, sq, e1, e3, Bt):
    cin = x_ref.shape[-1]
    bhw = Bt * H * W
    cexp = e1 + e3

    # ---- squeeze: 1x1 conv + ReLU (bf16 MXU matmul, f32 epilogue) ----------
    xm = x_ref[...].reshape(bhw, cin)                                   # bf16
    s = jnp.dot(xm, wsq_ref[...], preferred_element_type=jnp.float32)
    s = jnp.maximum(s + bsq_ref[...], 0.0)                              # (bhw, sq) f32
    s_bf = s.astype(jnp.bfloat16)

    # ---- zero-padded squeeze map (bf16).  Only the 1-px border is zeroed ---
    # (interior fully overwritten every step; never gate on program_id -- each
    # core owns a private scratch under "parallel" megacore sharding).
    spad_ref[:, 0:1, :, :]         = jnp.zeros((Bt, 1, W + 2, sq), spad_ref.dtype)
    spad_ref[:, H + 1:H + 2, :, :] = jnp.zeros((Bt, 1, W + 2, sq), spad_ref.dtype)
    spad_ref[:, :, 0:1, :]         = jnp.zeros((Bt, H + 2, 1, sq), spad_ref.dtype)
    spad_ref[:, :, W + 1:W + 2, :] = jnp.zeros((Bt, H + 2, 1, sq), spad_ref.dtype)
    spad_ref[:, 1:H + 1, 1:W + 1, :] = s_bf.reshape(Bt, H, W, sq)

    # ---- im2col: copy the 9 shifted taps once into lane slots k*sq ---------
    # (center tap k=4 is the un-shifted squeeze map, used by expand1x1).
    for k in range(9):
        di, dj = k // 3, k % 3
        col_ref[:, :, :, k * sq:(k + 1) * sq] = spad_ref[:, di:di + H, dj:dj + W, :]

    # ---- single fused expand matmul: (bhw, 9*sq) x (9*sq, e1+e3) -----------
    col = col_ref[...].reshape(bhw, 9 * sq)                             # bf16
    o = jnp.dot(col, wex_ref[...], preferred_element_type=jnp.float32)
    o = jnp.maximum(o + bex_ref[...], 0.0)                              # (bhw, e1+e3) f32

    # ---- one lane-dense 128-wide store --------------------------------------
    o_ref[...] = o.reshape(Bt, H, W, cexp).astype(o_ref.dtype)


# ----------------------------------------------------------------------------
# Wrapper (PyTorch NCHW / OIHW interface)
# ----------------------------------------------------------------------------
def fire_forward(params, x_nchw, *, block_batch=None):
    """Fire forward.  x_nchw: (N, Cin, H, W) f32 -> (N, e1+e3, H, W) f32."""
    w_sq, b_sq = params['w_sq'], params['b_sq']     # (sq, Cin, 1, 1), (sq,)
    w_e1, b_e1 = params['w_e1'], params['b_e1']     # (e1, sq, 1, 1), (e1,)
    w_e3, b_e3 = params['w_e3'], params['b_e3']     # (e3, sq, 3, 3), (e3,)

    n, cin, h, w = x_nchw.shape
    sq = w_sq.shape[0]
    e1 = w_e1.shape[0]
    e3 = w_e3.shape[0]
    cexp = e1 + e3
    hw = h * w

    # Batch blocking: amortize per-grid-step overhead for small spatial sizes,
    # but keep >= 2 grid steps when possible (pipelining / megacore sharding).
    if block_batch is None:
        bt = max(1, min(n, 2048 // max(hw, 1)))
        while n % bt:
            bt -= 1
        while bt > 1 and n // bt < 2:
            bt -= 1
            while n % bt:
                bt -= 1
    else:
        bt = block_batch
    assert n % bt == 0

    # NCHW -> NHWC (channels on the lane dim); bf16 operands for the MXU.
    x = jnp.transpose(x_nchw, (0, 2, 3, 1)).astype(jnp.bfloat16)

    # Squeeze weights: (sq, Cin, 1, 1) -> (Cin, sq).
    wsq = w_sq.reshape(sq, cin).T.astype(jnp.bfloat16)
    bsq = b_sq.reshape(1, sq).astype(jnp.float32)

    # Fused expand weight (9*sq, e1+e3):
    #   expand1x1  -> center-tap row block (k=4), columns [0, e1)
    #   expand3x3  -> tap-k row block,            columns [e1, e1+e3)
    we3 = jnp.transpose(w_e3, (2, 3, 1, 0)).reshape(9 * sq, e3)         # k = kh*3 + kw
    wex = jnp.zeros((9 * sq, cexp), jnp.float32)
    wex = wex.at[4 * sq:5 * sq, 0:e1].set(w_e1.reshape(e1, sq).T)
    wex = wex.at[:, e1:cexp].set(we3)
    wex = wex.astype(jnp.bfloat16)
    bex = jnp.concatenate([b_e1, b_e3]).reshape(1, cexp).astype(jnp.float32)

    out_nhwc = pl.pallas_call(
        partial(_fire_kernel, H=h, W=w, sq=sq, e1=e1, e3=e3, Bt=bt),
        out_shape=jax.ShapeDtypeStruct((n, h, w, cexp), jnp.float32),
        grid=(n // bt,),
        in_specs=[
            pl.BlockSpec((bt, h, w, cin), lambda b: (b, 0, 0, 0)),    # activation
            pl.BlockSpec((cin, sq), lambda b: (0, 0)),                # squeeze W (resident)
            pl.BlockSpec((1, sq), lambda b: (0, 0)),                  # squeeze b
            pl.BlockSpec((9 * sq, cexp), lambda b: (0, 0)),           # fused expand W (resident)
            pl.BlockSpec((1, cexp), lambda b: (0, 0)),                # fused expand b
        ],
        out_specs=pl.BlockSpec((bt, h, w, cexp), lambda b: (b, 0, 0, 0)),
        scratch_shapes=[
            pltpu.VMEM((bt, h + 2, w + 2, sq), jnp.bfloat16),         # padded squeeze map
            pltpu.VMEM((bt, h, w, 9 * sq), jnp.bfloat16),             # im2col buffer
        ],
        compiler_params=pltpu.CompilerParams(
            dimension_semantics=("parallel",)),
        # NOTE(perf): for very small batches on v7x one could additionally tile
        # H with a 1-row halo to give each TensorCore >1 grid step; not needed
        # at these sizes.
    )(x, wsq, bsq, wex, bex)

    # NHWC -> NCHW to preserve the PyTorch interface.
    return jnp.transpose(out_nhwc, (0, 3, 1, 2)).astype(x_nchw.dtype)


# ----------------------------------------------------------------------------
# Parameters (PyTorch Conv2d default-style init, deterministic) + reference
# ----------------------------------------------------------------------------
def init_fire_params(key, inplanes, squeeze_planes, expand1x1_planes, expand3x3_planes):
    def conv(k, cout, cin, ksize):
        kw, kb = jax.random.split(k)
        fan_in = cin * ksize * ksize
        bound = 1.0 / math.sqrt(fan_in)
        w = jax.random.uniform(kw, (cout, cin, ksize, ksize), jnp.float32, -bound, bound)
        b = jax.random.uniform(kb, (cout,), jnp.float32, -bound, bound)
        return w, b

    k1, k2, k3 = jax.random.split(key, 3)
    p = {}
    p['w_sq'], p['b_sq'] = conv(k1, squeeze_planes, inplanes, 1)
    p['w_e1'], p['b_e1'] = conv(k2, expand1x1_planes, squeeze_planes, 1)
    p['w_e3'], p['b_e3'] = conv(k3, expand3x3_planes, squeeze_planes, 3)
    return p


def fire_reference(params, x_nchw):
    """Plain-JAX (XLA conv) reference with PyTorch semantics, f32."""
    def conv(x, w, b, pad):
        y = jax.lax.conv_general_dilated(
            x, w, window_strides=(1, 1), padding=[(pad, pad), (pad, pad)],
            dimension_numbers=('NCHW', 'OIHW', 'NCHW'))
        return jax.nn.relu(y + b[None, :, None, None])

    s = conv(x_nchw, params['w_sq'], params['b_sq'], 0)
    e1 = conv(s, params['w_e1'], params['b_e1'], 0)
    e3 = conv(s, params['w_e3'], params['b_e3'], 1)
    return jnp.concatenate([e1, e3], axis=1)


# ----------------------------------------------------------------------------
if __name__ == "__main__":
    key = jax.random.PRNGKey(0)
    pkey, xkey = jax.random.split(key)

    # Fire(96, 16, 64, 64) -- the first fire block of SqueezeNet 1_0.
    inplanes, sq, e1, e3 = 96, 16, 64, 64
    params = init_fire_params(pkey, inplanes, sq, e1, e3)
    x = jax.random.normal(xkey, (2, inplanes, 16, 16), jnp.float32)

    fwd = jax.jit(fire_forward)
    out = fwd(params, x)
    jax.block_until_ready(out)
    assert out.shape == (2, e1 + e3, 16, 16)

    # Numerical sanity check (bf16 MXU operands -> loose tolerance).
    ref = fire_reference(params, x)
    err = float(jnp.max(jnp.abs(out - ref)))
    assert err < 5e-2, f"max abs error {err}"

    print("KERNEL_OK")
</pallas_src>

<mosaic_0001>
module attributes {stable_mosaic.version = 11 : i64} {
  func.func @_fire_kernel(%arg0: i32, %arg1: memref<1x16x16x96xbf16, #tpu.memory_space<vmem>>, %arg2: memref<96x16xbf16, #tpu.memory_space<vmem>>, %arg3: memref<1x16xf32, #tpu.memory_space<vmem>>, %arg4: memref<144x128xbf16, #tpu.memory_space<vmem>>, %arg5: memref<1x128xf32, #tpu.memory_space<vmem>>, %arg6: memref<1x16x16x128xf32, #tpu.memory_space<vmem>>, %arg7: memref<1x18x18x16xbf16, #tpu.memory_space<vmem>>, %arg8: memref<1x16x16x144xbf16, #tpu.memory_space<vmem>>) attributes {dimension_semantics = [#tpu.dimension_semantics<parallel>], iteration_bounds = array<i64: 2>, scalar_prefetch = 0 : i64, scratch_operands = 2 : i64, tpu.core_type = #tpu.core_type<tc>, window_params = [{transform_indices = @transform_0, window_bounds = array<i64: 1, 16, 16, 96>}, {pipeline_mode = #tpu.pipeline_mode<synchronous>, transform_indices = @transform_1, window_bounds = array<i64: 96, 16>}, {pipeline_mode = #tpu.pipeline_mode<synchronous>, transform_indices = @transform_2, window_bounds = array<i64: 1, 16>}, {pipeline_mode = #tpu.pipeline_mode<synchronous>, transform_indices = @transform_3, window_bounds = array<i64: 144, 128>}, {pipeline_mode = #tpu.pipeline_mode<synchronous>, transform_indices = @transform_4, window_bounds = array<i64: 1, 128>}, {transform_indices = @transform_5, window_bounds = array<i64: 1, 16, 16, 128>}]} {
    %c0 = arith.constant 0 : index
    %c0_0 = arith.constant 0 : index
    %c0_1 = arith.constant 0 : index
    %c0_2 = arith.constant 0 : index
    %0 = vector.load %arg1[%c0, %c0_0, %c0_1, %c0_2] : memref<1x16x16x96xbf16, #tpu.memory_space<vmem>>, vector<1x16x16x96xbf16>
    %1 = vector.shape_cast %0 : vector<1x16x16x96xbf16> to vector<256x96xbf16>
    %c0_3 = arith.constant 0 : index
    %c0_4 = arith.constant 0 : index
    %2 = vector.load %arg2[%c0_3, %c0_4] : memref<96x16xbf16, #tpu.memory_space<vmem>>, vector<96x16xbf16>
    %cst = arith.constant dense<0.000000e+00> : vector<256x16xf32>
    %3 = tpu.matmul %1, %2, %cst {dimension_numbers = #tpu.dot_dimension_numbers<[1], [0], [0], [1], [0, 0, 1, 1], [], []>} : vector<256x96xbf16>, vector<96x16xbf16>, vector<256x16xf32> -> vector<256x16xf32>
    %c0_5 = arith.constant 0 : index
    %c0_6 = arith.constant 0 : index
    %4 = vector.load %arg3[%c0_5, %c0_6] : memref<1x16xf32, #tpu.memory_space<vmem>>, vector<1x16xf32>
    %5 = vector.broadcast %4 : vector<1x16xf32> to vector<256x16xf32>
    %6 = arith.addf %3, %5 : vector<256x16xf32>
    %cst_7 = arith.constant 0.000000e+00 : f32
    %7 = vector.broadcast %cst_7 : f32 to vector<256x16xf32>
    %8 = arith.maximumf %6, %7 : vector<256x16xf32>
    %9 = arith.truncf %8 : vector<256x16xf32> to vector<256x16xbf16>
    %cst_8 = arith.constant 0.000000e+00 : bf16
    %10 = vector.broadcast %cst_8 : bf16 to vector<1x1x18x16xbf16>
    %c0_9 = arith.constant 0 : index
    %c0_10 = arith.constant 0 : index
    %c0_11 = arith.constant 0 : index
    %c0_12 = arith.constant 0 : index
    %11 = vector.load %arg7[%c0_9, %c0_10, %c0_11, %c0_12] : memref<1x18x18x16xbf16, #tpu.memory_space<vmem>>, vector<1x1x18x16xbf16>
    tpu.vector_store %arg7[%c0_9, %c0_10, %c0_11, %c0_12], %10 {strides = array<i32>} : memref<1x18x18x16xbf16, #tpu.memory_space<vmem>>, vector<1x1x18x16xbf16>,
    %cst_13 = arith.constant 0.000000e+00 : bf16
    %12 = vector.broadcast %cst_13 : bf16 to vector<1x1x18x16xbf16>
    %c0_14 = arith.constant 0 : index
    %c17 = arith.constant 17 : index
    %c0_15 = arith.constant 0 : index
    %c0_16 = arith.constant 0 : index
    %13 = vector.load %arg7[%c0_14, %c17, %c0_15, %c0_16] : memref<1x18x18x16xbf16, #tpu.memory_space<vmem>>, vector<1x1x18x16xbf16>
    tpu.vector_store %arg7[%c0_14, %c17, %c0_15, %c0_16], %12 {strides = array<i32>} : memref<1x18x18x16xbf16, #tpu.memory_space<vmem>>, vector<1x1x18x16xbf16>,
    %cst_17 = arith.constant 0.000000e+00 : bf16
    %14 = vector.broadcast %cst_17 : bf16 to vector<1x18x1x16xbf16>
    %c0_18 = arith.constant 0 : index
    %c0_19 = arith.constant 0 : index
    %c0_20 = arith.constant 0 : index
    %c0_21 = arith.constant 0 : index
    %15 = vector.load %arg7[%c0_18, %c0_19, %c0_20, %c0_21] : memref<1x18x18x16xbf16, #tpu.memory_space<vmem>>, vector<1x18x1x16xbf16>
    tpu.vector_store %arg7[%c0_18, %c0_19, %c0_20, %c0_21], %14 {strides = array<i32>} : memref<1x18x18x16xbf16, #tpu.memory_space<vmem>>, vector<1x18x1x16xbf16>,
    %cst_22 = arith.constant 0.000000e+00 : bf16
    %16 = vector.broadcast %cst_22 : bf16 to vector<1x18x1x16xbf16>
    %c0_23 = arith.constant 0 : index
    %c0_24 = arith.constant 0 : index
    %c17_25 = arith.constant 17 : index
    %c0_26 = arith.constant 0 : index
    %17 = vector.load %arg7[%c0_23, %c0_24, %c17_25, %c0_26] : memref<1x18x18x16xbf16, #tpu.memory_space<vmem>>, vector<1x18x1x16xbf16>
    tpu.vector_store %arg7[%c0_23, %c0_24, %c17_25, %c0_26], %16 {strides = array<i32>} : memref<1x18x18x16xbf16, #tpu.memory_space<vmem>>, vector<1x18x1x16xbf16>,
    %18 = vector.shape_cast %9 : vector<256x16xbf16> to vector<1x16x16x16xbf16>
    %c0_27 = arith.constant 0 : index
    %c1 = arith.constant 1 : index
    %c1_28 = arith.constant 1 : index
    %c0_29 = arith.constant 0 : index
    %19 = vector.load %arg7[%c0_27, %c1, %c1_28, %c0_29] : memref<1x18x18x16xbf16, #tpu.memory_space<vmem>>, vector<1x16x16x16xbf16>
    tpu.vector_store %arg7[%c0_27, %c1, %c1_28, %c0_29], %18 {strides = array<i32>} : memref<1x18x18x16xbf16, #tpu.memory_space<vmem>>, vector<1x16x16x16xbf16>,
    %c0_30 = arith.constant 0 : index
    %c0_31 = arith.constant 0 : index
    %c0_32 = arith.constant 0 : index
    %c0_33 = arith.constant 0 : index
    %20 = vector.load %arg7[%c0_30, %c0_31, %c0_32, %c0_33] : memref<1x18x18x16xbf16, #tpu.memory_space<vmem>>, vector<1x16x16x16xbf16>
    %c0_34 = arith.constant 0 : index
    %c0_35 = arith.constant 0 : index
    %c0_36 = arith.constant 0 : index
    %c0_37 = arith.constant 0 : index
    %21 = vector.load %arg8[%c0_34, %c0_35, %c0_36, %c0_37] : memref<1x16x16x144xbf16, #tpu.memory_space<vmem>>, vector<1x16x16x16xbf16>
    tpu.vector_store %arg8[%c0_34, %c0_35, %c0_36, %c0_37], %20 {strides = array<i32>} : memref<1x16x16x144xbf16, #tpu.memory_space<vmem>>, vector<1x16x16x16xbf16>,
    %c0_38 = arith.constant 0 : index
    %c0_39 = arith.constant 0 : index
    %c1_40 = arith.constant 1 : index
    %c0_41 = arith.constant 0 : index
    %22 = vector.load %arg7[%c0_38, %c0_39, %c1_40, %c0_41] : memref<1x18x18x16xbf16, #tpu.memory_space<vmem>>, vector<1x16x16x16xbf16>
    %c0_42 = arith.constant 0 : index
    %c0_43 = arith.constant 0 : index
    %c0_44 = arith.constant 0 : index
    %c16 = arith.constant 16 : index
    %23 = vector.load %arg8[%c0_42, %c0_43, %c0_44, %c16] : memref<1x16x16x144xbf16, #tpu.memory_space<vmem>>, vector<1x16x16x16xbf16>
    tpu.vector_store %arg8[%c0_42, %c0_43, %c0_44, %c16], %22 {strides = array<i32>} : memref<1x16x16x144xbf16, #tpu.memory_space<vmem>>, vector<1x16x16x16xbf16>,
    %c0_45 = arith.constant 0 : index
    %c0_46 = arith.constant 0 : index
    %c2 = arith.constant 2 : index
    %c0_47 = arith.constant 0 : index
    %24 = vector.load %arg7[%c0_45, %c0_46, %c2, %c0_47] : memref<1x18x18x16xbf16, #tpu.memory_space<vmem>>, vector<1x16x16x16xbf16>
    %c0_48 = arith.constant 0 : index
    %c0_49 = arith.constant 0 : index
    %c0_50 = arith.constant 0 : index
    %c32 = arith.constant 32 : index
    %25 = vector.load %arg8[%c0_48, %c0_49, %c0_50, %c32] : memref<1x16x16x144xbf16, #tpu.memory_space<vmem>>, vector<1x16x16x16xbf16>
    tpu.vector_store %arg8[%c0_48, %c0_49, %c0_50, %c32], %24 {strides = array<i32>} : memref<1x16x16x144xbf16, #tpu.memory_space<vmem>>, vector<1x16x16x16xbf16>,
    %c0_51 = arith.constant 0 : index
    %c1_52 = arith.constant 1 : index
    %c0_53 = arith.constant 0 : index
    %c0_54 = arith.constant 0 : index
    %26 = vector.load %arg7[%c0_51, %c1_52, %c0_53, %c0_54] : memref<1x18x18x16xbf16, #tpu.memory_space<vmem>>, vector<1x16x16x16xbf16>
    %c0_55 = arith.constant 0 : index
    %c0_56 = arith.constant 0 : index
    %c0_57 = arith.constant 0 : index
    %c48 = arith.constant 48 : index
    %27 = vector.load %arg8[%c0_55, %c0_56, %c0_57, %c48] : memref<1x16x16x144xbf16, #tpu.memory_space<vmem>>, vector<1x16x16x16xbf16>
    tpu.vector_store %arg8[%c0_55, %c0_56, %c0_57, %c48], %26 {strides = array<i32>} : memref<1x16x16x144xbf16, #tpu.memory_space<vmem>>, vector<1x16x16x16xbf16>,
    %c0_58 = arith.constant 0 : index
    %c1_59 = arith.constant 1 : index
    %c1_60 = arith.constant 1 : index
    %c0_61 = arith.constant 0 : index
    %28 = vector.load %arg7[%c0_58, %c1_59, %c1_60, %c0_61] : memref<1x18x18x16xbf16, #tpu.memory_space<vmem>>, vector<1x16x16x16xbf16>
    %c0_62 = arith.constant 0 : index
    %c0_63 = arith.constant 0 : index
    %c0_64 = arith.constant 0 : index
    %c64 = arith.constant 64 : index
    %29 = vector.load %arg8[%c0_62, %c0_63, %c0_64, %c64] : memref<1x16x16x144xbf16, #tpu.memory_space<vmem>>, vector<1x16x16x16xbf16>
    tpu.vector_store %arg8[%c0_62, %c0_63, %c0_64, %c64], %28 {strides = array<i32>} : memref<1x16x16x144xbf16, #tpu.memory_space<vmem>>, vector<1x16x16x16xbf16>,
    %c0_65 = arith.constant 0 : index
    %c1_66 = arith.constant 1 : index
    %c2_67 = arith.constant 2 : index
    %c0_68 = arith.constant 0 : index
    %30 = vector.load %arg7[%c0_65, %c1_66, %c2_67, %c0_68] : memref<1x18x18x16xbf16, #tpu.memory_space<vmem>>, vector<1x16x16x16xbf16>
    %c0_69 = arith.constant 0 : index
    %c0_70 = arith.constant 0 : index
    %c0_71 = arith.constant 0 : index
    %c80 = arith.constant 80 : index
    %31 = vector.load %arg8[%c0_69, %c0_70, %c0_71, %c80] : memref<1x16x16x144xbf16, #tpu.memory_space<vmem>>, vector<1x16x16x16xbf16>
    tpu.vector_store %arg8[%c0_69, %c0_70, %c0_71, %c80], %30 {strides = array<i32>} : memref<1x16x16x144xbf16, #tpu.memory_space<vmem>>, vector<1x16x16x16xbf16>,
    %c0_72 = arith.constant 0 : index
    %c2_73 = arith.constant 2 : index
    %c0_74 = arith.constant 0 : index
    %c0_75 = arith.constant 0 : index
    %32 = vector.load %arg7[%c0_72, %c2_73, %c0_74, %c0_75] : memref<1x18x18x16xbf16, #tpu.memory_space<vmem>>, vector<1x16x16x16xbf16>
    %c0_76 = arith.constant 0 : index
    %c0_77 = arith.constant 0 : index
    %c0_78 = arith.constant 0 : index
    %c96 = arith.constant 96 : index
    %33 = vector.load %arg8[%c0_76, %c0_77, %c0_78, %c96] : memref<1x16x16x144xbf16, #tpu.memory_space<vmem>>, vector<1x16x16x16xbf16>
    tpu.vector_store %arg8[%c0_76, %c0_77, %c0_78, %c96], %32 {strides = array<i32>} : memref<1x16x16x144xbf16, #tpu.memory_space<vmem>>, vector<1x16x16x16xbf16>,
    %c0_79 = arith.constant 0 : index
    %c2_80 = arith.constant 2 : index
    %c1_81 = arith.constant 1 : index
    %c0_82 = arith.constant 0 : index
    %34 = vector.load %arg7[%c0_79, %c2_80, %c1_81, %c0_82] : memref<1x18x18x16xbf16, #tpu.memory_space<vmem>>, vector<1x16x16x16xbf16>
    %c0_83 = arith.constant 0 : index
    %c0_84 = arith.constant 0 : index
    %c0_85 = arith.constant 0 : index
    %c112 = arith.constant 112 : index
    %35 = vector.load %arg8[%c0_83, %c0_84, %c0_85, %c112] : memref<1x16x16x144xbf16, #tpu.memory_space<vmem>>, vector<1x16x16x16xbf16>
    tpu.vector_store %arg8[%c0_83, %c0_84, %c0_85, %c112], %34 {strides = array<i32>} : memref<1x16x16x144xbf16, #tpu.memory_space<vmem>>, vector<1x16x16x16xbf16>,
    %c0_86 = arith.constant 0 : index
    %c2_87 = arith.constant 2 : index
    %c2_88 = arith.constant 2 : index
    %c0_89 = arith.constant 0 : index
    %36 = vector.load %arg7[%c0_86, %c2_87, %c2_88, %c0_89] : memref<1x18x18x16xbf16, #tpu.memory_space<vmem>>, vector<1x16x16x16xbf16>
    %c0_90 = arith.constant 0 : index
    %c0_91 = arith.constant 0 : index
    %c0_92 = arith.constant 0 : index
    %c128 = arith.constant 128 : index
    %37 = vector.load %arg8[%c0_90, %c0_91, %c0_92, %c128] : memref<1x16x16x144xbf16, #tpu.memory_space<vmem>>, vector<1x16x16x16xbf16>
    tpu.vector_store %arg8[%c0_90, %c0_91, %c0_92, %c128], %36 {strides = array<i32>} : memref<1x16x16x144xbf16, #tpu.memory_space<vmem>>, vector<1x16x16x16xbf16>,
    %c0_93 = arith.constant 0 : index
    %c0_94 = arith.constant 0 : index
    %c0_95 = arith.constant 0 : index
    %c0_96 = arith.constant 0 : index
    %38 = vector.load %arg8[%c0_93, %c0_94, %c0_95, %c0_96] : memref<1x16x16x144xbf16, #tpu.memory_space<vmem>>, vector<1x16x16x144xbf16>
    %39 = vector.shape_cast %38 : vector<1x16x16x144xbf16> to vector<256x144xbf16>
    %c0_97 = arith.constant 0 : index
    %c0_98 = arith.constant 0 : index
    %40 = vector.load %arg4[%c0_97, %c0_98] : memref<144x128xbf16, #tpu.memory_space<vmem>>, vector<144x128xbf16>
    %cst_99 = arith.constant dense<0.000000e+00> : vector<256x128xf32>
    %41 = tpu.matmul %39, %40, %cst_99 {dimension_numbers = #tpu.dot_dimension_numbers<[1], [0], [0], [1], [0, 0, 1, 1], [], []>} : vector<256x144xbf16>, vector<144x128xbf16>, vector<256x128xf32> -> vector<256x128xf32>
    %c0_100 = arith.constant 0 : index
    %c0_101 = arith.constant 0 : index
    %42 = vector.load %arg5[%c0_100, %c0_101] : memref<1x128xf32, #tpu.memory_space<vmem>>, vector<1x128xf32>
    %43 = vector.broadcast %42 : vector<1x128xf32> to vector<256x128xf32>
    %44 = arith.addf %41, %43 : vector<256x128xf32>
    %cst_102 = arith.constant 0.000000e+00 : f32
    %45 = vector.broadcast %cst_102 : f32 to vector<256x128xf32>
    %46 = arith.maximumf %44, %45 : vector<256x128xf32>
    %47 = vector.shape_cast %46 : vector<256x128xf32> to vector<1x16x16x128xf32>
    %c0_103 = arith.constant 0 : index
    %c0_104 = arith.constant 0 : index
    %c0_105 = arith.constant 0 : index
    %c0_106 = arith.constant 0 : index
    %48 = vector.load %arg6[%c0_103, %c0_104, %c0_105, %c0_106] : memref<1x16x16x128xf32, #tpu.memory_space<vmem>>, vector<1x16x16x128xf32>
    tpu.vector_store %arg6[%c0_103, %c0_104, %c0_105, %c0_106], %47 {strides = array<i32>} : memref<1x16x16x128xf32, #tpu.memory_space<vmem>>, vector<1x16x16x128xf32>,
    return
  }
  func.func @transform_0(%arg0: i32) -> (i32, i32, i32, i32) {
    %c0_i32 = arith.constant 0 : i32
    %c0_i32_0 = arith.constant 0 : i32
    %c0_i32_1 = arith.constant 0 : i32
    %c0_i32_2 = arith.constant 0 : i32
    return %arg0, %c0_i32, %c0_i32_0, %c0_i32_1 : i32, i32, i32, i32
  }
  func.func @transform_1(%arg0: i32) -> (i32, i32) {
    %c0_i32 = arith.constant 0 : i32
    %c0_i32_0 = arith.constant 0 : i32
    %c0_i32_1 = arith.constant 0 : i32
    return %c0_i32, %c0_i32_0 : i32, i32
  }
  func.func @transform_2(%arg0: i32) -> (i32, i32) {
    %c0_i32 = arith.constant 0 : i32
    %c0_i32_0 = arith.constant 0 : i32
    %c0_i32_1 = arith.constant 0 : i32
    return %c0_i32, %c0_i32_0 : i32, i32
  }
  func.func @transform_3(%arg0: i32) -> (i32, i32) {
    %c0_i32 = arith.constant 0 : i32
    %c0_i32_0 = arith.constant 0 : i32
    %c0_i32_1 = arith.constant 0 : i32
    return %c0_i32, %c0_i32_0 : i32, i32
  }
  func.func @transform_4(%arg0: i32) -> (i32, i32) {
    %c0_i32 = arith.constant 0 : i32
    %c0_i32_0 = arith.constant 0 : i32
    %c0_i32_1 = arith.constant 0 : i32
    return %c0_i32, %c0_i32_0 : i32, i32
  }
  func.func @transform_5(%arg0: i32) -> (i32, i32, i32, i32) {
    %c0_i32 = arith.constant 0 : i32
    %c0_i32_0 = arith.constant 0 : i32
    %c0_i32_1 = arith.constant 0 : i32
    %c0_i32_2 = arith.constant 0 : i32
    return %arg0, %c0_i32, %c0_i32_0, %c0_i32_1 : i32, i32, i32, i32
  }
}

</mosaic_0001>

<llo_original>
// kernel: fire_forward.1
$region0: #{fire_forward.1}
  #allocation0 [shape = 'u32[]', space=smem, size = 0x4, offset = 0x4, fixed_abs, tag = 'smem constant byte address 0x4 - core index']
  #allocation1 [shape = 'u32[144,128]{1,0:T(1,128)}', space=vmem, size = 0x12000, scoped, tag = 'internal scratch']
  #allocation2 [shape = 'bf16[1,18,18,16]{3,2,1,0:T(8,128)(2,1)}', space=vmem, size = 0x1b000, scoped, tag = 'scratch operand']
  #allocation3 [shape = 'bf16[1,16,16,144]{3,2,1,0:T(8,128)(2,1)}', space=vmem, size = 0x20000, scoped, tag = 'scratch operand']
  %s0 = inlined_call_operand.vmem [shape: bf16[2,16,16,96], index: 0, kind: input, shape index: {}]
  %s1 = inlined_call_operand.vmem [shape: bf16[96,16], index: 1, kind: input, shape index: {}]
  %s2 = inlined_call_operand.vmem [shape: f32[1,16], index: 2, kind: input, shape index: {}]
  %s3 = inlined_call_operand.vmem [shape: bf16[144,128], index: 3, kind: input, shape index: {}]
  %s4 = inlined_call_operand.vmem [shape: f32[1,128], index: 4, kind: input, shape index: {}]
  %s5 = inlined_call_operand.hbm [shape: f32[2,16,16,128], index: 5, kind: output, shape index: {}]
  %s6 = sld [smem:[#allocation0]]
  $region53: #{fire_forward.1} parent=0
    _
  %s8 = ssub.s32 1, %s6
  %s9 = scalar_select 0, %s8, %s6
  $region1: #{fire_forward.1} parent=0
    #allocation4 [shape = 'u8[262144]{0}', space=vmem, size = 0x40000, scoped, tag = 'output window, operand 0']
    #allocation5 [shape = 's32[2]{0}', space=sflag, size = 0x8, scoped, tag = 'scoped memory for fire_forward.1']
    %10 = vsyncpa [#allocation5], 0
    %s11 = scalar_lea.sflag [#allocation5], 1
    %12 = vsyncpa %s11, 0
    loop: start=0, step=1, limit=4
    $region2: #{fire_forward.1} parent=1 // loop_pre_header
      _
    $region3: #{fire_forward.1} parent=1 // loop_header
      %s14 = sphi 0, %s18
      %p15 = scmp.ge.s32.totalorder %s14, 4
      %s24 = sphi 0, %s26
      %s27 = sphi 0, %s24
      %s28 = sphi 0, %s27
      %s44 = sphi 0, %s28
      %s48 = sphi 0, %s48
      %s50 = sphi 0, %s48
      %s51 = sphi 0, %s50
      %s65 = sphi 0, %s51
      %s69 = sphi 0, %s69
      %s71 = sphi 0, %s69
      %s72 = sphi 0, %s71
      %s86 = sphi 0, %s72
      %s90 = sphi 0, %s90
      %s92 = sphi 0, %s90
      %s93 = sphi 0, %s92
      %s107 = sphi 0, %s93
      %s111 = sphi 0, %s111
      %s113 = sphi 0, %s111
      %s114 = sphi 0, %s113
      %s128 = sphi 0, %s114
      %s134 = sphi 0, %s136
      %s137 = sphi 0, %s134
      %s138 = sphi 0, %s137
      %s154 = sphi 0, %s138
    $region4: #{fire_forward.1} parent=1 // loop_header_branch
      %17 = sbr.rel (%p15) target = $region8
    $region5: #{fire_forward.1} parent=1 // loop_body
      %s19 = ssub.s32 %s14, 1
      %s20 = ssub.s32 %s14, 2
      %s21 = sadd.s32 %s14, 1
      %s22 = ssub.s32 %s14, %s21
      %p23 = scmp.eq.s32.totalorder %s22, 0
      %s25 = sadd.s32 %s24, 1
      %s26 = scalar_select %p23, %s24, %s25
      %p29 = pneg %p23
      %p30 = scmp.eq.s32.totalorder %s14, 1
      %p31 = por %p29, %p30
      %p32 = scmp.ne.s32.totalorder %s24, %s27
      %p33 = scmp.eq.s32.totalorder %s14, 0
      %p34 = por %p32, %p33
      %p35 = scmp.ne.s32.totalorder %s24, %s27
      %p36 = scmp.eq.s32.totalorder %s19, 1
      %p37 = por %p35, %p36
      %p38 = scmp.ne.s32.totalorder %s27, %s28
      %p39 = scmp.eq.s32.totalorder %s19, 0
      %p40 = por %p38, %p39
      %p41 = scmp.ne.s32.totalorder %s27, %s28
      %p42 = scmp.eq.s32.totalorder %s20, 1
      %p43 = por %p41, %p42
      %p45 = scmp.ne.s32.totalorder %s28, %s44
      %p46 = scmp.eq.s32.totalorder %s20, 0
      %p47 = por %p45, %p46
      %s49 = sadd.s32 %s48, 1
      %p52 = scmp.eq.s32.totalorder %s14, 1
      %p53 = scmp.ne.s32.totalorder %s48, %s50
      %p54 = scmp.eq.s32.totalorder %s14, 0
      %p55 = por %p53, %p54
      %p56 = scmp.ne.s32.totalorder %s48, %s50
      %p57 = scmp.eq.s32.totalorder %s19, 1
      %p58 = por %p56, %p57
      %p59 = scmp.ne.s32.totalorder %s50, %s51
      %p60 = scmp.eq.s32.totalorder %s19, 0
      %p61 = por %p59, %p60
      %p62 = scmp.ne.s32.totalorder %s50, %s51
      %p63 = scmp.eq.s32.totalorder %s20, 1
      %p64 = por %p62, %p63
      %p66 = scmp.ne.s32.totalorder %s51, %s65
      %p67 = scmp.eq.s32.totalorder %s20, 0
      %p68 = por %p66, %p67
      %s70 = sadd.s32 %s69, 1
      %p73 = scmp.eq.s32.totalorder %s14, 1
      %p74 = scmp.ne.s32.totalorder %s69, %s71
      %p75 = scmp.eq.s32.totalorder %s14, 0
      %p76 = por %p74, %p75
      %p77 = scmp.ne.s32.totalorder %s69, %s71
      %p78 = scmp.eq.s32.totalorder %s19, 1
      %p79 = por %p77, %p78
      %p80 = scmp.ne.s32.totalorder %s71, %s72
      %p81 = scmp.eq.s32.totalorder %s19, 0
      %p82 = por %p80, %p81
      %p83 = scmp.ne.s32.totalorder %s71, %s72
      %p84 = scmp.eq.s32.totalorder %s20, 1
      %p85 = por %p83, %p84
      %p87 = scmp.ne.s32.totalorder %s72, %s86
      %p88 = scmp.eq.s32.totalorder %s20, 0
      %p89 = por %p87, %p88
      %s91 = sadd.s32 %s90, 1
      %p94 = scmp.eq.s32.totalorder %s14, 1
      %p95 = scmp.ne.s32.totalorder %s90, %s92
      %p96 = scmp.eq.s32.totalorder %s14, 0
      %p97 = por %p95, %p96
      %p98 = scmp.ne.s32.totalorder %s90, %s92
      %p99 = scmp.eq.s32.totalorder %s19, 1
      %p100 = por %p98, %p99
      %p101 = scmp.ne.s32.totalorder %s92, %s93
      %p102 = scmp.eq.s32.totalorder %s19, 0
      %p103 = por %p101, %p102
      %p104 = scmp.ne.s32.totalorder %s92, %s93
      %p105 = scmp.eq.s32.totalorder %s20, 1
      %p106 = por %p104, %p105
      %p108 = scmp.ne.s32.totalorder %s93, %s107
      %p109 = scmp.eq.s32.totalorder %s20, 0
      %p110 = por %p108, %p109
      %s112 = sadd.s32 %s111, 1
      %p115 = scmp.eq.s32.totalorder %s14, 1
      %p116 = scmp.ne.s32.totalorder %s111, %s113
      %p117 = scmp.eq.s32.totalorder %s14, 0
      %p118 = por %p116, %p117
      %p119 = scmp.ne.s32.totalorder %s111, %s113
      %p120 = scmp.eq.s32.totalorder %s19, 1
      %p121 = por %p119, %p120
      %p122 = scmp.ne.s32.totalorder %s113, %s114
      %p123 = scmp.eq.s32.totalorder %s19, 0
      %p124 = por %p122, %p123
      %p125 = scmp.ne.s32.totalorder %s113, %s114
      %p126 = scmp.eq.s32.totalorder %s20, 1
      %p127 = por %p125, %p126
      %p129 = scmp.ne.s32.totalorder %s114, %s128
      %p130 = scmp.eq.s32.totalorder %s20, 0
      %p131 = por %p129, %p130
      %s132 = ssub.s32 %s14, %s21
      %p133 = scmp.eq.s32.totalorder %s132, 0
      %s135 = sadd.s32 %s134, 1
      %s136 = scalar_select %p133, %s134, %s135
      %p139 = pneg %p133
      %p140 = scmp.eq.s32.totalorder %s14, 1
      %p141 = por %p139, %p140
      %p142 = scmp.ne.s32.totalorder %s134, %s137
      %p143 = scmp.eq.s32.totalorder %s14, 0
      %p144 = por %p142, %p143
      %p145 = scmp.ne.s32.totalorder %s134, %s137
      %p146 = scmp.eq.s32.totalorder %s19, 1
      %p147 = por %p145, %p146
      %p148 = scmp.ne.s32.totalorder %s137, %s138
      %p149 = scmp.eq.s32.totalorder %s19, 0
      %p150 = por %p148, %p149
      %p151 = scmp.ne.s32.totalorder %s137, %s138
      %p152 = scmp.eq.s32.totalorder %s20, 1
      %p153 = por %p151, %p152
      %p155 = scmp.ne.s32.totalorder %s138, %s154
      %p156 = scmp.eq.s32.totalorder %s20, 0
      %p157 = por %p155, %p156
      %p158 = scmp.le.s32.totalorder 1, %s14
      %p159 = scmp.lt.s32.totalorder %s14, 3
      %p160 = pnand %p158, %p159
      %p161 = pneg %p160
      // Predicated region
      $region9: #{fire_forward.1} parent=5 // pred_check
        _
      $region10: #{fire_forward.1} parent=5 // pred_check_branch
        %163 = sbr.rel (%p160) target = $region12
      $region11: #{fire_forward.1} parent=5 // pred_region
        %s164 = ssub.s32 %s14, 1
        // Predicated region
        $region13: #{fire_forward.1} parent=11 // pred_check
          %p165 = pneg %p61
        $region14: #{fire_forward.1} parent=11 // pred_check_branch
          %167 = sbr.rel (%p165) target = $region16
        $region15: #{fire_forward.1} parent=11 // pred_region
          _
        $region16: #{fire_forward.1} parent=11 // pred_fallthru
          _
        // Predicated region
        $region17: #{fire_forward.1} parent=11 // pred_check
          %p168 = pneg %p82
        $region18: #{fire_forward.1} parent=11 // pred_check_branch
          %170 = sbr.rel (%p168) target = $region20
        $region19: #{fire_forward.1} parent=11 // pred_region
          _
        $region20: #{fire_forward.1} parent=11 // pred_fallthru
          _
        // Predicated region
        $region21: #{fire_forward.1} parent=11 // pred_check
          %p171 = pneg %p103
        $region22: #{fire_forward.1} parent=11 // pred_check_branch
          %173 = sbr.rel (%p171) target = $region24
        $region23: #{fire_forward.1} parent=11 // pred_region
          _
        $region24: #{fire_forward.1} parent=11 // pred_fallthru
          _
        // Predicated region
        $region25: #{fire_forward.1} parent=11 // pred_check
          %p174 = pneg %p124
        $region26: #{fire_forward.1} parent=11 // pred_check_branch
          %176 = sbr.rel (%p174) target = $region28
        $region27: #{fire_forward.1} parent=11 // pred_region
          _
        $region28: #{fire_forward.1} parent=11 // pred_fallthru
          _
      $region12: #{fire_forward.1} parent=5 // pred_fallthru
        _
      %p177 = scmp.lt.s32.totalorder %s14, 2
      // Predicated region
      $region29: #{fire_forward.1} parent=5 // pred_check
        %p178 = pneg %p177
      $region30: #{fire_forward.1} parent=5 // pred_check_branch
        %180 = sbr.rel (%p178) target = $region32
      $region31: #{fire_forward.1} parent=5 // pred_region
        // Predicated region
        $region33: #{fire_forward.1} parent=31 // pred_check
          %p181 = pneg %p34
        $region34: #{fire_forward.1} parent=31 // pred_check_branch
          %183 = sbr.rel (%p181) target = $region36
        $region35: #{fire_forward.1} parent=31 // pred_region
          %p184 = scmp.lt.s32.totalorder %s14, 1
          %s185 = scalar_select %p184, %s14, 1
          %s186 = smul.addr %s185, 32
          %s187 = smul.addr %s186, 4
          %s188 = scalar_lea.vmem %s0, %s187
        $region36: #{fire_forward.1} parent=31 // pred_fallthru
          _
      $region32: #{fire_forward.1} parent=5 // pred_fallthru
        _
      %p189 = scmp.le.s32.totalorder 1, %s14
      %p190 = scmp.lt.s32.totalorder %s14, 3
      %p191 = pnand %p189, %p190
      %p192 = pneg %p191
      // Predicated region
      $region37: #{fire_forward.1} parent=5 // pred_check
        _
      $region38: #{fire_forward.1} parent=5 // pred_check_branch
        %194 = sbr.rel (%p191) target = $region40
      $region39: #{fire_forward.1} parent=5 // pred_region
        %s195 = ssub.s32 %s14, 1
        %p196 = scmp.lt.s32.totalorder %s19, 1
        %s197 = scalar_select %p196, %s19, 1
        %s198 = smul.addr %s197, 32
        %s199 = smul.addr %s198, 4
        %s200 = scalar_lea.vmem %s0, %s199
        %p201 = pneg %p40
        %p202 = pneg %p37
        %p203 = pneg %p61
        %p204 = pneg %p58
        %p205 = pneg %p82
        %p206 = pneg %p79
        %p207 = pneg %p103
        %p208 = pneg %p100
        %p209 = pneg %p124
        %p210 = pneg %p121
        %p211 = pneg %p150
        %p212 = pneg %p147
        %s213 = sand.u32 %s137, 1
        %s214 = scalar_lea.sflag [#allocation5], %s213
        %s215 = sand.u32 %s137, 1
        %s216 = smul.addr %s215, 256
        %s217 = scalar_lea.vmem [#allocation4], %s216
        %p218 = scmp.lt.s32.totalorder %s19, 1
        %s219 = scalar_select %p218, %s19, 1
        %s220 = smul.addr %s219, 32
        %s221 = smul.addr %s220, 4
        %s222 = scalar_lea.vmem %s0, %s221
        %v224 = vld [vmem:[%s222] sm:$0xf]
        %v225 = vld [vmem:[%s222 + $0x4] sm:$0xf]
        %v226 = vld [vmem:[%s222 + $0x8] sm:$0xf]
        %v227 = vld [vmem:[%s222 + $0xc] sm:$0xf]
        %v228 = vld [vmem:[%s222 + $0x10] sm:$0xf]
        %v229 = vld [vmem:[%s222 + $0x14] sm:$0xf]
        %v230 = vld [vmem:[%s222 + $0x18] sm:$0xf]
        %v231 = vld [vmem:[%s222 + $0x1c] sm:$0xf]
        %v232 = vld [vmem:[%s222 + $0x20] sm:$0xf]
        %v233 = vld [vmem:[%s222 + $0x24] sm:$0xf]
        %v234 = vld [vmem:[%s222 + $0x28] sm:$0xf]
        %v235 = vld [vmem:[%s222 + $0x2c] sm:$0xf]
        %v236 = vld [vmem:[%s222 + $0x30] sm:$0xf]
        %v237 = vld [vmem:[%s222 + $0x34] sm:$0xf]
        %v238 = vld [vmem:[%s222 + $0x38] sm:$0xf]
        %v239 = vld [vmem:[%s222 + $0x3c] sm:$0xf]
        %v240 = vld [vmem:[%s222 + $0x40] sm:$0xf]
        %v241 = vld [vmem:[%s222 + $0x44] sm:$0xf]
        %v242 = vld [vmem:[%s222 + $0x48] sm:$0xf]
        %v243 = vld [vmem:[%s222 + $0x4c] sm:$0xf]
        %v244 = vld [vmem:[%s222 + $0x50] sm:$0xf]
        %v245 = vld [vmem:[%s222 + $0x54] sm:$0xf]
        %v246 = vld [vmem:[%s222 + $0x58] sm:$0xf]
        %v247 = vld [vmem:[%s222 + $0x5c] sm:$0xf]
        %v248 = vld [vmem:[%s222 + $0x60] sm:$0xf]
        %v249 = vld [vmem:[%s222 + $0x64] sm:$0xf]
        %v250 = vld [vmem:[%s222 + $0x68] sm:$0xf]
        %v251 = vld [vmem:[%s222 + $0x6c] sm:$0xf]
        %v252 = vld [vmem:[%s222 + $0x70] sm:$0xf]
        %v253 = vld [vmem:[%s222 + $0x74] sm:$0xf]
        %v254 = vld [vmem:[%s222 + $0x78] sm:$0xf]
        %v255 = vld [vmem:[%s222 + $0x7c] sm:$0xf]
        %v256 = vld [vmem:[%s1] sm:$0xf]
        %v257 = vld [vmem:[%s1 + $0x4] sm:$0xf]
        %v258 = vld [vmem:[%s1 + $0x8] sm:$0xf]
        %v259 = vld [vmem:[%s1 + $0xc] sm:$0xf]
        %v260 = vld [vmem:[%s1 + $0x10] sm:$0xf]
        %v261 = vld [vmem:[%s1 + $0x14] sm:$0xf]
        %v262 = vld [vmem:[%s1 + $0x18] sm:$0xf]
        %v263 = vld [vmem:[%s1 + $0x1c] sm:$0xf]
        %v264 = vld [vmem:[%s1 + $0x20] sm:$0xf]
        %v265 = vld [vmem:[%s1 + $0x24] sm:$0xf]
        %v266 = vld [vmem:[%s1 + $0x28] sm:$0xf]
        %v267 = vld [vmem:[%s1 + $0x2c] sm:$0xf]
        %v268 = vld [vmem:[%s2] sm:$0x1]
        %v270 = vlaneseq
        %v271 = vshrl.u32 %v270, 7
        %v272 = vsub.s32 0, %v271
        %v273 = vrot.slane %v268, %v272
        %v307 = vunpack.c.l.b16 %v224
        %v308 = vunpack.c.l.b16 %v225
        %v309 = vunpack.c.l.b16 %v226
        %v310 = vunpack.c.l.b16 %v227
        %v311 = vunpack.c.l.b16 %v228
        %v312 = vunpack.c.l.b16 %v229
        %v313 = vunpack.c.l.b16 %v230
        %v314 = vunpack.c.l.b16 %v231
        %v315 = vunpack.c.l.b16 %v232
        %v316 = vunpack.c.l.b16 %v233
        %v317 = vunpack.c.l.b16 %v234
        %v318 = vunpack.c.l.b16 %v235
        %v319 = vunpack.c.l.b16 %v236
        %v320 = vunpack.c.l.b16 %v237
        %v321 = vunpack.c.l.b16 %v238
        %v322 = vunpack.c.l.b16 %v239
        %v323 = vunpack.c.l.b16 %v240
        %v324 = vunpack.c.l.b16 %v241
        %v325 = vunpack.c.l.b16 %v242
        %v326 = vunpack.c.l.b16 %v243
        %v327 = vunpack.c.l.b16 %v244
        %v328 = vunpack.c.l.b16 %v245
        %v329 = vunpack.c.l.b16 %v246
        %v330 = vunpack.c.l.b16 %v247
        %v331 = vunpack.c.l.b16 %v248
        %v332 = vunpack.c.l.b16 %v249
        %v333 = vunpack.c.l.b16 %v250
        %v334 = vunpack.c.l.b16 %v251
        %v335 = vunpack.c.l.b16 %v252
        %v336 = vunpack.c.l.b16 %v253
        %v337 = vunpack.c.l.b16 %v254
        %v338 = vunpack.c.l.b16 %v255
        %v339 = vpack.c.b16 %v308, %v307
        %v340 = vpack.c.b16 %v310, %v309
        %v341 = vpack.c.b16 %v312, %v311
        %v342 = vpack.c.b16 %v314, %v313
        %v343 = vpack.c.b16 %v316, %v315
        %v344 = vpack.c.b16 %v318, %v317
        %v345 = vpack.c.b16 %v320, %v319
        %v346 = vpack.c.b16 %v322, %v321
        %v347 = vpack.c.b16 %v324, %v323
        %v348 = vpack.c.b16 %v326, %v325
        %v349 = vpack.c.b16 %v328, %v327
        %v350 = vpack.c.b16 %v330, %v329
        %v351 = vpack.c.b16 %v332, %v331
        %v352 = vpack.c.b16 %v334, %v333
        %v353 = vpack.c.b16 %v336, %v335
        %v354 = vpack.c.b16 %v338, %v337
        %v367 = vunpack.c.l.b16 %v256
        %v368 = vunpack.c.l.b16 %v257
        %v369 = vunpack.c.l.b16 %v258
        %v370 = vunpack.c.l.b16 %v259
        %v371 = vunpack.c.l.b16 %v260
        %v372 = vunpack.c.l.b16 %v261
        %v373 = vunpack.c.l.b16 %v262
        %v374 = vunpack.c.l.b16 %v263
        %v375 = vunpack.c.l.b16 %v264
        %v376 = vunpack.c.l.b16 %v265
        %v377 = vunpack.c.l.b16 %v266
        %v378 = vunpack.c.l.b16 %v267
        %v379 = vpack.c.b16 %v368, %v367
        %v380 = vpack.c.b16 %v370, %v369
        %v381 = vpack.c.b16 %v372, %v371
        %v382 = vpack.c.b16 %v374, %v373
        %v383 = vpack.c.b16 %v376, %v375
        %v384 = vpack.c.b16 %v378, %v377
        %vm391 = vcmask 785408
        %v393 = vsel %vm391, %v339, 0
        %v396 = vsel %vm391, %v340, 0
        %v399 = vsel %vm391, %v341, 0
        %v402 = vsel %vm391, %v342, 0
        %v405 = vsel %vm391, %v343, 0
        %v408 = vsel %vm391, %v344, 0
        %v411 = vsel %vm391, %v345, 0
        %v414 = vsel %vm391, %v346, 0
        %v417 = vsel %vm391, %v347, 0
        %v420 = vsel %vm391, %v348, 0
        %v423 = vsel %vm391, %v349, 0
        %v426 = vsel %vm391, %v350, 0
        %v429 = vsel %vm391, %v351, 0
        %v432 = vsel %vm391, %v352, 0
        %v435 = vsel %vm391, %v353, 0
        %v438 = vsel %vm391, %v354, 0
        %440 = vmatprep.subr.bf16.mxu0 0
        %441 = vmatpush1.bf16.msra.mxu0 0
        %442 = vmatprep.subr.bf16.mxu0 0
        %443 = vmatpush1.bf16.msra.mxu0 0
        %444 = vmatprep.subr.bf16.mxu0 0
        %445 = vmatpush1.bf16.msra.mxu0 %v384
        %446 = vmatprep.subr.bf16.mxu0 0
        %447 = vmatpush1.bf16.msra.mxu0 %v383
        %448 = vmatprep.subr.bf16.mxu0 0
        %449 = vmatpush1.bf16.msra.mxu0 %v382
        %450 = vmatprep.subr.bf16.mxu0 0
        %451 = vmatpush1.bf16.msra.mxu0 %v381
        %452 = vmatprep.subr.bf16.mxu0 0
        %453 = vmatpush1.bf16.msra.mxu0 %v380
        %454 = vmatprep.subr.bf16.mxu0 0
        %455 = vmatpush1.bf16.msra.mxu0 %v379
        %456 = vmatprep.subr.bf16.mxu0 0
        %457 = vmatpush2.bf16.msra.mxu0 0
        %458 = vmatprep.subr.bf16.mxu0 0
        %459 = vmatpush2.bf16.msra.mxu0 0
        %460 = vmatprep.subr.bf16.mxu0 0
        %461 = vmatpush2.bf16.msra.mxu0 0
        %462 = vmatprep.subr.bf16.mxu0 0
        %463 = vmatpush2.bf16.msra.mxu0 0
        %464 = vmatprep.subr.bf16.mxu0 0
        %465 = vmatpush2.bf16.msra.mxu0 0
        %466 = vmatprep.subr.bf16.mxu0 0
        %467 = vmatpush2.bf16.msra.mxu0 0
        %468 = vmatprep.subr.bf16.mxu0 0
        %469 = vmatpush2.bf16.msra.mxu0 0
        %470 = vmatprep.subr.bf16.mxu0 0
        %471 = vmatpush2.bf16.msra.mxu0 0
        %472 = vmatprep.mubr.bf16.mxu0 0
        %473 = vmatmul.mubr.bf16.gmra.mxu0 %v393
        %v474 = vpop.f32.mrf.mxu0
        %v475 = vadd.f32 %v273, %v474
        %v476 = vpop.f32.mrf.mxu0
        %v477 = vpop.f32.mrf.mxu0
        %v478 = vadd.f32 %v273, %v477
        %v479 = vpop.f32.mrf.mxu0
        %480 = vmatprep.mubr.bf16.mxu0 0
        %481 = vmatmul.mubr.bf16.gmra.mxu0 %v396
        %v482 = vpop.f32.mrf.mxu0
        %v483 = vadd.f32 %v273, %v482
        %v484 = vpop.f32.mrf.mxu0
        %v485 = vpop.f32.mrf.mxu0
        %v486 = vadd.f32 %v273, %v485
        %v487 = vpop.f32.mrf.mxu0
        %488 = vmatprep.mubr.bf16.mxu0 0
        %489 = vmatmul.mubr.bf16.gmra.mxu0 %v399
        %v490 = vpop.f32.mrf.mxu0
        %v491 = vadd.f32 %v273, %v490
        %v492 = vpop.f32.mrf.mxu0
        %v493 = vpop.f32.mrf.mxu0
        %v494 = vadd.f32 %v273, %v493
        %v495 = vpop.f32.mrf.mxu0
        %496 = vmatprep.mubr.bf16.mxu0 0
        %497 = vmatmul.mubr.bf16.gmra.mxu0 %v402
        %v498 = vpop.f32.mrf.mxu0
        %v499 = vadd.f32 %v273, %v498
        %v500 = vpop.f32.mrf.mxu0
        %v501 = vpop.f32.mrf.mxu0
        %v502 = vadd.f32 %v273, %v501
        %v503 = vpop.f32.mrf.mxu0
        %504 = vmatprep.mubr.bf16.mxu0 0
        %505 = vmatmul.mubr.bf16.gmra.mxu0 %v405
        %v506 = vpop.f32.mrf.mxu0
        %v507 = vadd.f32 %v273, %v506
        %v508 = vpop.f32.mrf.mxu0
        %v509 = vpop.f32.mrf.mxu0
        %v510 = vadd.f32 %v273, %v509
        %v511 = vpop.f32.mrf.mxu0
        %512 = vmatprep.mubr.bf16.mxu0 0
        %513 = vmatmul.mubr.bf16.gmra.mxu0 %v408
        %v514 = vpop.f32.mrf.mxu0
        %v515 = vadd.f32 %v273, %v514
        %v516 = vpop.f32.mrf.mxu0
        %v517 = vpop.f32.mrf.mxu0
        %v518 = vadd.f32 %v273, %v517
        %v519 = vpop.f32.mrf.mxu0
        %520 = vmatprep.mubr.bf16.mxu0 0
        %521 = vmatmul.mubr.bf16.gmra.mxu0 %v411
        %v522 = vpop.f32.mrf.mxu0
        %v523 = vadd.f32 %v273, %v522
        %v524 = vpop.f32.mrf.mxu0
        %v525 = vpop.f32.mrf.mxu0
        %v526 = vadd.f32 %v273, %v525
        %v527 = vpop.f32.mrf.mxu0
        %528 = vmatprep.mubr.bf16.mxu0 0
        %529 = vmatmul.mubr.bf16.gmra.mxu0 %v414
        %v530 = vpop.f32.mrf.mxu0
        %v531 = vadd.f32 %v273, %v530
        %v532 = vpop.f32.mrf.mxu0
        %v533 = vpop.f32.mrf.mxu0
        %v534 = vadd.f32 %v273, %v533
        %v535 = vpop.f32.mrf.mxu0
        %536 = vmatprep.mubr.bf16.mxu0 0
        %537 = vmatmul.mubr.bf16.gmra.mxu0 %v417
        %v538 = vpop.f32.mrf.mxu0
        %v539 = vadd.f32 %v273, %v538
        %v540 = vpop.f32.mrf.mxu0
        %v541 = vpop.f32.mrf.mxu0
        %v542 = vadd.f32 %v273, %v541
        %v543 = vpop.f32.mrf.mxu0
        %544 = vmatprep.mubr.bf16.mxu0 0
        %545 = vmatmul.mubr.bf16.gmra.mxu0 %v420
        %v546 = vpop.f32.mrf.mxu0
        %v547 = vadd.f32 %v273, %v546
        %v548 = vpop.f32.mrf.mxu0
        %v549 = vpop.f32.mrf.mxu0
        %v550 = vadd.f32 %v273, %v549
        %v551 = vpop.f32.mrf.mxu0
        %552 = vmatprep.mubr.bf16.mxu0 0
        %553 = vmatmul.mubr.bf16.gmra.mxu0 %v423
        %v554 = vpop.f32.mrf.mxu0
        %v555 = vadd.f32 %v273, %v554
        %v556 = vpop.f32.mrf.mxu0
        %v557 = vpop.f32.mrf.mxu0
        %v558 = vadd.f32 %v273, %v557
        %v559 = vpop.f32.mrf.mxu0
        %560 = vmatprep.mubr.bf16.mxu0 0
        %561 = vmatmul.mubr.bf16.gmra.mxu0 %v426
        %v562 = vpop.f32.mrf.mxu0
        %v563 = vadd.f32 %v273, %v562
        %v564 = vpop.f32.mrf.mxu0
        %v565 = vpop.f32.mrf.mxu0
        %v566 = vadd.f32 %v273, %v565
        %v567 = vpop.f32.mrf.mxu0
        %568 = vmatprep.mubr.bf16.mxu0 0
        %569 = vmatmul.mubr.bf16.gmra.mxu0 %v429
        %v570 = vpop.f32.mrf.mxu0
        %v571 = vadd.f32 %v273, %v570
        %v572 = vpop.f32.mrf.mxu0
        %v573 = vpop.f32.mrf.mxu0
        %v574 = vadd.f32 %v273, %v573
        %v575 = vpop.f32.mrf.mxu0
        %576 = vmatprep.mubr.bf16.mxu0 0
        %577 = vmatmul.mubr.bf16.gmra.mxu0 %v432
        %v578 = vpop.f32.mrf.mxu0
        %v579 = vadd.f32 %v273, %v578
        %v580 = vpop.f32.mrf.mxu0
        %v581 = vpop.f32.mrf.mxu0
        %v582 = vadd.f32 %v273, %v581
        %v583 = vpop.f32.mrf.mxu0
        %584 = vmatprep.mubr.bf16.mxu0 0
        %585 = vmatmul.mubr.bf16.gmra.mxu0 %v435
        %v586 = vpop.f32.mrf.mxu0
        %v587 = vadd.f32 %v273, %v586
        %v588 = vpop.f32.mrf.mxu0
        %v589 = vpop.f32.mrf.mxu0
        %v590 = vadd.f32 %v273, %v589
        %v591 = vpop.f32.mrf.mxu0
        %592 = vmatprep.mubr.bf16.mxu0 0
        %593 = vmatmul.mubr.bf16.gmra.mxu0 %v438
        %v594 = vpop.f32.mrf.mxu0
        %v595 = vadd.f32 %v273, %v594
        %v596 = vpop.f32.mrf.mxu0
        %v597 = vpop.f32.mrf.mxu0
        %v598 = vadd.f32 %v273, %v597
        %v599 = vpop.f32.mrf.mxu0
        %600 = vdwg.mxu0
        %v601 = vmax.f32 %v475, 0.0
        %v602 = vmax.f32 %v478, 0.0
        %v603 = vmax.f32 %v483, 0.0
        %v604 = vmax.f32 %v486, 0.0
        %v605 = vmax.f32 %v491, 0.0
        %v606 = vmax.f32 %v494, 0.0
        %v607 = vmax.f32 %v499, 0.0
        %v608 = vmax.f32 %v502, 0.0
        %v609 = vmax.f32 %v507, 0.0
        %v610 = vmax.f32 %v510, 0.0
        %v611 = vmax.f32 %v515, 0.0
        %v612 = vmax.f32 %v518, 0.0
        %v613 = vmax.f32 %v523, 0.0
        %v614 = vmax.f32 %v526, 0.0
        %v615 = vmax.f32 %v531, 0.0
        %v616 = vmax.f32 %v534, 0.0
        %v617 = vmax.f32 %v539, 0.0
        %v618 = vmax.f32 %v542, 0.0
        %v619 = vmax.f32 %v547, 0.0
        %v620 = vmax.f32 %v550, 0.0
        %v621 = vmax.f32 %v555, 0.0
        %v622 = vmax.f32 %v558, 0.0
        %v623 = vmax.f32 %v563, 0.0
        %v624 = vmax.f32 %v566, 0.0
        %v625 = vmax.f32 %v571, 0.0
        %v626 = vmax.f32 %v574, 0.0
        %v627 = vmax.f32 %v579, 0.0
        %v628 = vmax.f32 %v582, 0.0
        %v629 = vmax.f32 %v587, 0.0
        %v630 = vmax.f32 %v590, 0.0
        %v631 = vmax.f32 %v595, 0.0
        %v632 = vmax.f32 %v598, 0.0
        %v633 = vpack.c.bf16 %v602, %v601
        %v634 = vpack.c.bf16 %v604, %v603
        %v635 = vpack.c.bf16 %v606, %v605
        %v636 = vpack.c.bf16 %v608, %v607
        %v637 = vpack.c.bf16 %v610, %v609
        %v638 = vpack.c.bf16 %v612, %v611
        %v639 = vpack.c.bf16 %v614, %v613
        %v640 = vpack.c.bf16 %v616, %v615
        %v641 = vpack.c.bf16 %v618, %v617
        %v642 = vpack.c.bf16 %v620, %v619
        %v643 = vpack.c.bf16 %v622, %v621
        %v644 = vpack.c.bf16 %v624, %v623
        %v645 = vpack.c.bf16 %v626, %v625
        %v646 = vpack.c.bf16 %v628, %v627
        %v647 = vpack.c.bf16 %v630, %v629
        %v648 = vpack.c.bf16 %v632, %v631
        %vm649 = vcmask 125952
        %650 = vst.msk [vmem:[#allocation2] sm:$0xf] %vm649, 0
        %651 = vst.msk [vmem:[#allocation2 + $0x4] sm:$0xf] %vm649, 0
        %vm652 = vcmask 122880
        %653 = vst.msk [vmem:[#allocation2 + $0x8] sm:$0x1] %vm652, 0
        %s654 = scalar_lea.vmem [#allocation2], 204
        %655 = vst.msk [vmem:[%s654] sm:$0xf] %vm649, 0
        %656 = vst.msk [vmem:[%s654 + $0x4] sm:$0xf] %vm649, 0
        %657 = vst.msk [vmem:[%s654 + $0x8] sm:$0x1] %vm652, 0
        %vm658 = vcmask 122880
        %vm659 = vsmask.f32 256
        %vm660 = vmand %vm658, %vm659
        %v661 = vld [vmem:[#allocation2] sm:$0x1]
        %v662 = vsel %vm660, 0, %v661
        %663 = vst [vmem:[#allocation2] sm:$0x1] %v662
        %v664 = vld [vmem:[#allocation2 + $0xc] sm:$0x1]
        %v665 = vsel %vm660, 0, %v664
        %666 = vst [vmem:[#allocation2 + $0xc] sm:$0x1] %v665
        %v667 = vld [vmem:[#allocation2 + $0x18] sm:$0x1]
        %v668 = vsel %vm660, 0, %v667
        %669 = vst [vmem:[#allocation2 + $0x18] sm:$0x1] %v668
        %v670 = vld [vmem:[#allocation2 + $0x24] sm:$0x1]
        %v671 = vsel %vm660, 0, %v670
        %672 = vst [vmem:[#allocation2 + $0x24] sm:$0x1] %v671
        %v673 = vld [vmem:[#allocation2 + $0x30] sm:$0x1]
        %v674 = vsel %vm660, 0, %v673
        %675 = vst [vmem:[#allocation2 + $0x30] sm:$0x1] %v674
        %v676 = vld [vmem:[#allocation2 + $0x3c] sm:$0x1]
        %v677 = vsel %vm660, 0, %v676
        %678 = vst [vmem:[#allocation2 + $0x3c] sm:$0x1] %v677
        %v679 = vld [vmem:[#allocation2 + $0x48] sm:$0x1]
        %v680 = vsel %vm660, 0, %v679
        %681 = vst [vmem:[#allocation2 + $0x48] sm:$0x1] %v680
        %v682 = vld [vmem:[#allocation2 + $0x54] sm:$0x1]
        %v683 = vsel %vm660, 0, %v682
        %684 = vst [vmem:[#allocation2 + $0x54] sm:$0x1] %v683
        %v685 = vld [vmem:[#allocation2 + $0x60] sm:$0x1]
        %v686 = vsel %vm660, 0, %v685
        %687 = vst [vmem:[#allocation2 + $0x60] sm:$0x1] %v686
        %v688 = vld [vmem:[#allocation2 + $0x6c] sm:$0x1]
        %v689 = vsel %vm660, 0, %v688
        %690 = vst [vmem:[#allocation2 + $0x6c] sm:$0x1] %v689
        %v691 = vld [vmem:[#allocation2 + $0x78] sm:$0x1]
        %v692 = vsel %vm660, 0, %v691
        %693 = vst [vmem:[#allocation2 + $0x78] sm:$0x1] %v692
        %v694 = vld [vmem:[#allocation2 + $0x84] sm:$0x1]
        %v695 = vsel %vm660, 0, %v694
        %696 = vst [vmem:[#allocation2 + $0x84] sm:$0x1] %v695
        %v697 = vld [vmem:[#allocation2 + $0x90] sm:$0x1]
        %v698 = vsel %vm660, 0, %v697
        %699 = vst [vmem:[#allocation2 + $0x90] sm:$0x1] %v698
        %v700 = vld [vmem:[#allocation2 + $0x9c] sm:$0x1]
        %v701 = vsel %vm660, 0, %v700
        %702 = vst [vmem:[#allocation2 + $0x9c] sm:$0x1] %v701
        %v703 = vld [vmem:[#allocation2 + $0xa8] sm:$0x1]
        %v704 = vsel %vm660, 0, %v703
        %705 = vst [vmem:[#allocation2 + $0xa8] sm:$0x1] %v704
        %v706 = vld [vmem:[#allocation2 + $0xb4] sm:$0x1]
        %v707 = vsel %vm660, 0, %v706
        %708 = vst [vmem:[#allocation2 + $0xb4] sm:$0x1] %v707
        %v709 = vld [vmem:[#allocation2 + $0xc0] sm:$0x1]
        %v710 = vsel %vm660, 0, %v709
        %711 = vst [vmem:[#allocation2 + $0xc0] sm:$0x1] %v710
        %v712 = vld [vmem:[#allocation2 + $0xcc] sm:$0x1]
        %v713 = vsel %vm660, 0, %v712
        %714 = vst [vmem:[#allocation2 + $0xcc] sm:$0x1] %v713
        %vm715 = vsmask.f32 7938
        %vm716 = vmand %vm658, %vm715
        %v717 = vld [vmem:[#allocation2 + $0x8] sm:$0x1]
        %v718 = vsel %vm716, 0, %v717
        %719 = vst [vmem:[#allocation2 + $0x8] sm:$0x1] %v718
        %v720 = vld [vmem:[#allocation2 + $0x14] sm:$0x1]
        %v721 = vsel %vm716, 0, %v720
        %722 = vst [vmem:[#allocation2 + $0x14] sm:$0x1] %v721
        %v723 = vld [vmem:[#allocation2 + $0x20] sm:$0x1]
        %v724 = vsel %vm716, 0, %v723
        %725 = vst [vmem:[#allocation2 + $0x20] sm:$0x1] %v724
        %v726 = vld [vmem:[#allocation2 + $0x2c] sm:$0x1]
        %v727 = vsel %vm716, 0, %v726
        %728 = vst [vmem:[#allocation2 + $0x2c] sm:$0x1] %v727
        %v729 = vld [vmem:[#allocation2 + $0x38] sm:$0x1]
        %v730 = vsel %vm716, 0, %v729
        %731 = vst [vmem:[#allocation2 + $0x38] sm:$0x1] %v730
        %v732 = vld [vmem:[#allocation2 + $0x44] sm:$0x1]
        %v733 = vsel %vm716, 0, %v732
        %734 = vst [vmem:[#allocation2 + $0x44] sm:$0x1] %v733
        %v735 = vld [vmem:[#allocation2 + $0x50] sm:$0x1]
        %v736 = vsel %vm716, 0, %v735
        %737 = vst [vmem:[#allocation2 + $0x50] sm:$0x1] %v736
        %v738 = vld [vmem:[#allocation2 + $0x5c] sm:$0x1]
        %v739 = vsel %vm716, 0, %v738
        %740 = vst [vmem:[#allocation2 + $0x5c] sm:$0x1] %v739
        %v741 = vld [vmem:[#allocation2 + $0x68] sm:$0x1]
        %v742 = vsel %vm716, 0, %v741
        %743 = vst [vmem:[#allocation2 + $0x68] sm:$0x1] %v742
        %v744 = vld [vmem:[#allocation2 + $0x74] sm:$0x1]
        %v745 = vsel %vm716, 0, %v744
        %746 = vst [vmem:[#allocation2 + $0x74] sm:$0x1] %v745
        %v747 = vld [vmem:[#allocation2 + $0x80] sm:$0x1]
        %v748 = vsel %vm716, 0, %v747
        %749 = vst [vmem:[#allocation2 + $0x80] sm:$0x1] %v748
        %v750 = vld [vmem:[#allocation2 + $0x8c] sm:$0x1]
        %v751 = vsel %vm716, 0, %v750
        %752 = vst [vmem:[#allocation2 + $0x8c] sm:$0x1] %v751
        %v753 = vld [vmem:[#allocation2 + $0x98] sm:$0x1]
        %v754 = vsel %vm716, 0, %v753
        %755 = vst [vmem:[#allocation2 + $0x98] sm:$0x1] %v754
        %v756 = vld [vmem:[#allocation2 + $0xa4] sm:$0x1]
        %v757 = vsel %vm716, 0, %v756
        %758 = vst [vmem:[#allocation2 + $0xa4] sm:$0x1] %v757
        %v759 = vld [vmem:[#allocation2 + $0xb0] sm:$0x1]
        %v760 = vsel %vm716, 0, %v759
        %761 = vst [vmem:[#allocation2 + $0xb0] sm:$0x1] %v760
        %v762 = vld [vmem:[#allocation2 + $0xbc] sm:$0x1]
        %v763 = vsel %vm716, 0, %v762
        %764 = vst [vmem:[#allocation2 + $0xbc] sm:$0x1] %v763
        %v765 = vld [vmem:[#allocation2 + $0xc8] sm:$0x1]
        %v766 = vsel %vm716, 0, %v765
        %767 = vst [vmem:[#allocation2 + $0xc8] sm:$0x1] %v766
        %v768 = vld [vmem:[#allocation2 + $0xd4] sm:$0x1]
        %v769 = vsel %vm716, 0, %v768
        %770 = vst [vmem:[#allocation2 + $0xd4] sm:$0x1] %v769
        %v787 = vunpack.c.l.b16 %v633
        %v788 = vunpack.c.h.b16 %v633
        %v789 = vunpack.c.l.b16 %v634
        %v790 = vunpack.c.h.b16 %v634
        %v791 = vunpack.c.l.b16 %v635
        %v792 = vunpack.c.h.b16 %v635
        %v793 = vunpack.c.l.b16 %v636
        %v794 = vunpack.c.h.b16 %v636
        %v795 = vunpack.c.l.b16 %v637
        %v796 = vunpack.c.h.b16 %v637
        %v797 = vunpack.c.l.b16 %v638
        %v798 = vunpack.c.h.b16 %v638
        %v799 = vunpack.c.l.b16 %v639
        %v800 = vunpack.c.h.b16 %v639
        %v801 = vunpack.c.l.b16 %v640
        %v802 = vunpack.c.h.b16 %v640
        %v803 = vunpack.c.l.b16 %v641
        %v804 = vunpack.c.h.b16 %v641
        %v805 = vunpack.c.l.b16 %v642
        %v806 = vunpack.c.h.b16 %v642
        %v807 = vunpack.c.l.b16 %v643
        %v808 = vunpack.c.h.b16 %v643
        %v809 = vunpack.c.l.b16 %v644
        %v810 = vunpack.c.h.b16 %v644
        %v811 = vunpack.c.l.b16 %v645
        %v812 = vunpack.c.h.b16 %v645
        %v813 = vunpack.c.l.b16 %v646
        %v814 = vunpack.c.h.b16 %v646
        %v815 = vunpack.c.l.b16 %v647
        %v816 = vunpack.c.h.b16 %v647
        %v817 = vunpack.c.l.b16 %v648
        %v818 = vunpack.c.h.b16 %v648
        %v819 = vpack.c.b16 %v787, %v787
        %v820 = vpack.c.b16 %v788, %v788
        %v821 = vpack.c.b16 %v789, %v789
        %v822 = vpack.c.b16 %v790, %v790
        %v823 = vpack.c.b16 %v791, %v791
        %v824 = vpack.c.b16 %v792, %v792
        %v825 = vpack.c.b16 %v793, %v793
        %v826 = vpack.c.b16 %v794, %v794
        %v827 = vpack.c.b16 %v795, %v795
        %v828 = vpack.c.b16 %v796, %v796
        %v829 = vpack.c.b16 %v797, %v797
        %v830 = vpack.c.b16 %v798, %v798
        %v831 = vpack.c.b16 %v799, %v799
        %v832 = vpack.c.b16 %v800, %v800
        %v833 = vpack.c.b16 %v801, %v801
        %v834 = vpack.c.b16 %v802, %v802
        %v835 = vpack.c.b16 %v803, %v803
        %v836 = vpack.c.b16 %v804, %v804
        %v837 = vpack.c.b16 %v805, %v805
        %v838 = vpack.c.b16 %v806, %v806
        %v839 = vpack.c.b16 %v807, %v807
        %v840 = vpack.c.b16 %v808, %v808
        %v841 = vpack.c.b16 %v809, %v809
        %v842 = vpack.c.b16 %v810, %v810
        %v843 = vpack.c.b16 %v811, %v811
        %v844 = vpack.c.b16 %v812, %v812
        %v845 = vpack.c.b16 %v813, %v813
        %v846 = vpack.c.b16 %v814, %v814
        %v847 = vpack.c.b16 %v815, %v815
        %v848 = vpack.c.b16 %v816, %v816
        %v849 = vpack.c.b16 %v817, %v817
        %v850 = vpack.c.b16 %v818, %v818
        %vm851 = vsmask.f32 4368
        %vm852 = vmor %vm659, %vm851
        %v854 = vshrl.u32 %v819, 16
        %v856 = vrot.slane %v854, 7
        %v857 = vshll.u32 %v819, 16
        %v859 = vor.u32 %v856, %v857
        %v860 = vrot.slane %v856, 4
        %v862 = vshrl.u32 %v820, 16
        %v864 = vrot.slane %v862, 7
        %v865 = vshll.u32 %v820, 16
        %v867 = vor.u32 %v864, %v865
        %v868 = vsel %vm852, %v860, %v867
        %v869 = vrot.slane %v864, 4
        %v871 = vshrl.u32 %v821, 16
        %v873 = vrot.slane %v871, 7
        %v874 = vshll.u32 %v821, 16
        %v876 = vor.u32 %v873, %v874
        %v877 = vrot.slane %v873, 4
        %v879 = vshrl.u32 %v822, 16
        %v881 = vrot.slane %v879, 7
        %v882 = vshll.u32 %v822, 16
        %v884 = vor.u32 %v881, %v882
        %v885 = vsel %vm852, %v877, %v884
        %v886 = vrot.slane %v881, 4
        %v888 = vshrl.u32 %v823, 16
        %v890 = vrot.slane %v888, 7
        %v891 = vshll.u32 %v823, 16
        %v893 = vor.u32 %v890, %v891
        %v894 = vrot.slane %v890, 4
        %v896 = vshrl.u32 %v824, 16
        %v898 = vrot.slane %v896, 7
        %v899 = vshll.u32 %v824, 16
        %v901 = vor.u32 %v898, %v899
        %v902 = vsel %vm852, %v894, %v901
        %v903 = vrot.slane %v898, 4
        %v905 = vshrl.u32 %v825, 16
        %v907 = vrot.slane %v905, 7
        %v908 = vshll.u32 %v825, 16
        %v910 = vor.u32 %v907, %v908
        %v911 = vrot.slane %v907, 4
        %v913 = vshrl.u32 %v826, 16
        %v915 = vrot.slane %v913, 7
        %v916 = vshll.u32 %v826, 16
        %v918 = vor.u32 %v915, %v916
        %v919 = vsel %vm852, %v911, %v918
        %v920 = vrot.slane %v915, 4
        %v922 = vshrl.u32 %v827, 16
        %v924 = vrot.slane %v922, 7
        %v925 = vshll.u32 %v827, 16
        %v927 = vor.u32 %v924, %v925
        %v928 = vrot.slane %v924, 4
        %v930 = vshrl.u32 %v828, 16
        %v932 = vrot.slane %v930, 7
        %v933 = vshll.u32 %v828, 16
        %v935 = vor.u32 %v932, %v933
        %v936 = vsel %vm852, %v928, %v935
        %v937 = vrot.slane %v932, 4
        %v939 = vshrl.u32 %v829, 16
        %v941 = vrot.slane %v939, 7
        %v942 = vshll.u32 %v829, 16
        %v944 = vor.u32 %v941, %v942
        %v945 = vrot.slane %v941, 4
        %v947 = vshrl.u32 %v830, 16
        %v949 = vrot.slane %v947, 7
        %v950 = vshll.u32 %v830, 16
        %v952 = vor.u32 %v949, %v950
        %v953 = vsel %vm852, %v945, %v952
        %v954 = vrot.slane %v949, 4
        %v956 = vshrl.u32 %v831, 16
        %v958 = vrot.slane %v956, 7
        %v959 = vshll.u32 %v831, 16
        %v961 = vor.u32 %v958, %v959
        %v962 = vrot.slane %v958, 4
        %v964 = vshrl.u32 %v832, 16
        %v966 = vrot.slane %v964, 7
        %v967 = vshll.u32 %v832, 16
        %v969 = vor.u32 %v966, %v967
        %v970 = vsel %vm852, %v962, %v969
        %v971 = vrot.slane %v966, 4
        %v973 = vshrl.u32 %v833, 16
        %v975 = vrot.slane %v973, 7
        %v976 = vshll.u32 %v833, 16
        %v978 = vor.u32 %v975, %v976
        %v979 = vrot.slane %v975, 4
        %v981 = vshrl.u32 %v834, 16
        %v983 = vrot.slane %v981, 7
        %v984 = vshll.u32 %v834, 16
        %v986 = vor.u32 %v983, %v984
        %v987 = vsel %vm852, %v979, %v986
        %v988 = vrot.slane %v983, 4
        %v990 = vshrl.u32 %v835, 16
        %v992 = vrot.slane %v990, 7
        %v993 = vshll.u32 %v835, 16
        %v995 = vor.u32 %v992, %v993
        %v996 = vrot.slane %v992, 4
        %v998 = vshrl.u32 %v836, 16
        %v1000 = vrot.slane %v998, 7
        %v1001 = vshll.u32 %v836, 16
        %v1003 = vor.u32 %v1000, %v1001
        %v1004 = vsel %vm852, %v996, %v1003
        %v1005 = vrot.slane %v1000, 4
        %v1007 = vshrl.u32 %v837, 16
        %v1009 = vrot.slane %v1007, 7
        %v1010 = vshll.u32 %v837, 16
        %v1012 = vor.u32 %v1009, %v1010
        %v1013 = vrot.slane %v1009, 4
        %v1015 = vshrl.u32 %v838, 16
        %v1017 = vrot.slane %v1015, 7
        %v1018 = vshll.u32 %v838, 16
        %v1020 = vor.u32 %v1017, %v1018
        %v1021 = vsel %vm852, %v1013, %v1020
        %v1022 = vrot.slane %v1017, 4
        %v1024 = vshrl.u32 %v839, 16
        %v1026 = vrot.slane %v1024, 7
        %v1027 = vshll.u32 %v839, 16
        %v1029 = vor.u32 %v1026, %v1027
        %v1030 = vrot.slane %v1026, 4
        %v1032 = vshrl.u32 %v840, 16
        %v1034 = vrot.slane %v1032, 7
        %v1035 = vshll.u32 %v840, 16
        %v1037 = vor.u32 %v1034, %v1035
        %v1038 = vsel %vm852, %v1030, %v1037
        %v1039 = vrot.slane %v1034, 4
        %v1041 = vshrl.u32 %v841, 16
        %v1043 = vrot.slane %v1041, 7
        %v1044 = vshll.u32 %v841, 16
        %v1046 = vor.u32 %v1043, %v1044
        %v1047 = vrot.slane %v1043, 4
        %v1049 = vshrl.u32 %v842, 16
        %v1051 = vrot.slane %v1049, 7
        %v1052 = vshll.u32 %v842, 16
        %v1054 = vor.u32 %v1051, %v1052
        %v1055 = vsel %vm852, %v1047, %v1054
        %v1056 = vrot.slane %v1051, 4
        %v1058 = vshrl.u32 %v843, 16
        %v1060 = vrot.slane %v1058, 7
        %v1061 = vshll.u32 %v843, 16
        %v1063 = vor.u32 %v1060, %v1061
        %v1064 = vrot.slane %v1060, 4
        %v1066 = vshrl.u32 %v844, 16
        %v1068 = vrot.slane %v1066, 7
        %v1069 = vshll.u32 %v844, 16
        %v1071 = vor.u32 %v1068, %v1069
        %v1072 = vsel %vm852, %v1064, %v1071
        %v1073 = vrot.slane %v1068, 4
        %v1075 = vshrl.u32 %v845, 16
        %v1077 = vrot.slane %v1075, 7
        %v1078 = vshll.u32 %v845, 16
        %v1080 = vor.u32 %v1077, %v1078
        %v1081 = vrot.slane %v1077, 4
        %v1083 = vshrl.u32 %v846, 16
        %v1085 = vrot.slane %v1083, 7
        %v1086 = vshll.u32 %v846, 16
        %v1088 = vor.u32 %v1085, %v1086
        %v1089 = vsel %vm852, %v1081, %v1088
        %v1090 = vrot.slane %v1085, 4
        %v1092 = vshrl.u32 %v847, 16
        %v1094 = vrot.slane %v1092, 7
        %v1095 = vshll.u32 %v847, 16
        %v1097 = vor.u32 %v1094, %v1095
        %v1098 = vrot.slane %v1094, 4
        %v1100 = vshrl.u32 %v848, 16
        %v1102 = vrot.slane %v1100, 7
        %v1103 = vshll.u32 %v848, 16
        %v1105 = vor.u32 %v1102, %v1103
        %v1106 = vsel %vm852, %v1098, %v1105
        %v1107 = vrot.slane %v1102, 4
        %v1109 = vshrl.u32 %v849, 16
        %v1111 = vrot.slane %v1109, 7
        %v1112 = vshll.u32 %v849, 16
        %v1114 = vor.u32 %v1111, %v1112
        %v1115 = vrot.slane %v1111, 4
        %v1117 = vshrl.u32 %v850, 16
        %v1119 = vrot.slane %v1117, 7
        %v1120 = vshll.u32 %v850, 16
        %v1122 = vor.u32 %v1119, %v1120
        %v1123 = vsel %vm852, %v1115, %v1122
        %v1124 = vrot.slane %v1119, 4
        %s1173 = scalar_lea.vmem [#allocation2], 12
        %vm1174 = vcmask 125952
        %vm1175 = vmand %vm1174, %vm715
        %v1176 = vld [vmem:[%s1173] sm:$0xf]
        %v1177 = vsel %vm1175, %v859, %v1176
        %1178 = vst [vmem:[%s1173] sm:$0xf] %v1177
        %1179 = vst.msk [vmem:[%s1173 + $0x4] sm:$0xf] %vm649, %v868
        %v1180 = vld [vmem:[%s1173 + $0x8] sm:$0x1]
        %v1181 = vsel %vm660, %v869, %v1180
        %1182 = vst [vmem:[%s1173 + $0x8] sm:$0x1] %v1181
        %v1183 = vld [vmem:[%s1173 + $0xc] sm:$0xf]
        %v1184 = vsel %vm1175, %v876, %v1183
        %1185 = vst [vmem:[%s1173 + $0xc] sm:$0xf] %v1184
        %1186 = vst.msk [vmem:[%s1173 + $0x10] sm:$0xf] %vm649, %v885
        %v1187 = vld [vmem:[%s1173 + $0x14] sm:$0x1]
        %v1188 = vsel %vm660, %v886, %v1187
        %1189 = vst [vmem:[%s1173 + $0x14] sm:$0x1] %v1188
        %v1190 = vld [vmem:[%s1173 + $0x18] sm:$0xf]
        %v1191 = vsel %vm1175, %v893, %v1190
        %1192 = vst [vmem:[%s1173 + $0x18] sm:$0xf] %v1191
        %1193 = vst.msk [vmem:[%s1173 + $0x1c] sm:$0xf] %vm649, %v902
        %v1194 = vld [vmem:[%s1173 + $0x20] sm:$0x1]
        %v1195 = vsel %vm660, %v903, %v1194
        %1196 = vst [vmem:[%s1173 + $0x20] sm:$0x1] %v1195
        %v1197 = vld [vmem:[%s1173 + $0x24] sm:$0xf]
        %v1198 = vsel %vm1175, %v910, %v1197
        %1199 = vst [vmem:[%s1173 + $0x24] sm:$0xf] %v1198
        %1200 = vst.msk [vmem:[%s1173 + $0x28] sm:$0xf] %vm649, %v919
        %v1201 = vld [vmem:[%s1173 + $0x2c] sm:$0x1]
        %v1202 = vsel %vm660, %v920, %v1201
        %1203 = vst [vmem:[%s1173 + $0x2c] sm:$0x1] %v1202
        %v1204 = vld [vmem:[%s1173 + $0x30] sm:$0xf]
        %v1205 = vsel %vm1175, %v927, %v1204
        %1206 = vst [vmem:[%s1173 + $0x30] sm:$0xf] %v1205
        %1207 = vst.msk [vmem:[%s1173 + $0x34] sm:$0xf] %vm649, %v936
        %v1208 = vld [vmem:[%s1173 + $0x38] sm:$0x1]
        %v1209 = vsel %vm660, %v937, %v1208
        %1210 = vst [vmem:[%s1173 + $0x38] sm:$0x1] %v1209
        %v1211 = vld [vmem:[%s1173 + $0x3c] sm:$0xf]
        %v1212 = vsel %vm1175, %v944, %v1211
        %1213 = vst [vmem:[%s1173 + $0x3c] sm:$0xf] %v1212
        %1214 = vst.msk [vmem:[%s1173 + $0x40] sm:$0xf] %vm649, %v953
        %v1215 = vld [vmem:[%s1173 + $0x44] sm:$0x1]
        %v1216 = vsel %vm660, %v954, %v1215
        %1217 = vst [vmem:[%s1173 + $0x44] sm:$0x1] %v1216
        %v1218 = vld [vmem:[%s1173 + $0x48] sm:$0xf]
        %v1219 = vsel %vm1175, %v961, %v1218
        %1220 = vst [vmem:[%s1173 + $0x48] sm:$0xf] %v1219
        %1221 = vst.msk [vmem:[%s1173 + $0x4c] sm:$0xf] %vm649, %v970
        %v1222 = vld [vmem:[%s1173 + $0x50] sm:$0x1]
        %v1223 = vsel %vm660, %v971, %v1222
        %1224 = vst [vmem:[%s1173 + $0x50] sm:$0x1] %v1223
        %v1225 = vld [vmem:[%s1173 + $0x54] sm:$0xf]
        %v1226 = vsel %vm1175, %v978, %v1225
        %1227 = vst [vmem:[%s1173 + $0x54] sm:$0xf] %v1226
        %1228 = vst.msk [vmem:[%s1173 + $0x58] sm:$0xf] %vm649, %v987
        %v1229 = vld [vmem:[%s1173 + $0x5c] sm:$0x1]
        %v1230 = vsel %vm660, %v988, %v1229
        %1231 = vst [vmem:[%s1173 + $0x5c] sm:$0x1] %v1230
        %v1232 = vld [vmem:[%s1173 + $0x60] sm:$0xf]
        %v1233 = vsel %vm1175, %v995, %v1232
        %1234 = vst [vmem:[%s1173 + $0x60] sm:$0xf] %v1233
        %1235 = vst.msk [vmem:[%s1173 + $0x64] sm:$0xf] %vm649, %v1004
        %v1236 = vld [vmem:[%s1173 + $0x68] sm:$0x1]
        %v1237 = vsel %vm660, %v1005, %v1236
        %1238 = vst [vmem:[%s1173 + $0x68] sm:$0x1] %v1237
        %v1239 = vld [vmem:[%s1173 + $0x6c] sm:$0xf]
        %v1240 = vsel %vm1175, %v1012, %v1239
        %1241 = vst [vmem:[%s1173 + $0x6c] sm:$0xf] %v1240
        %1242 = vst.msk [vmem:[%s1173 + $0x70] sm:$0xf] %vm649, %v1021
        %v1243 = vld [vmem:[%s1173 + $0x74] sm:$0x1]
        %v1244 = vsel %vm660, %v1022, %v1243
        %1245 = vst [vmem:[%s1173 + $0x74] sm:$0x1] %v1244
        %v1246 = vld [vmem:[%s1173 + $0x78] sm:$0xf]
        %v1247 = vsel %vm1175, %v1029, %v1246
        %1248 = vst [vmem:[%s1173 + $0x78] sm:$0xf] %v1247
        %1249 = vst.msk [vmem:[%s1173 + $0x7c] sm:$0xf] %vm649, %v1038
        %v1250 = vld [vmem:[%s1173 + $0x80] sm:$0x1]
        %v1251 = vsel %vm660, %v1039, %v1250
        %1252 = vst [vmem:[%s1173 + $0x80] sm:$0x1] %v1251
        %v1253 = vld [vmem:[%s1173 + $0x84] sm:$0xf]
        %v1254 = vsel %vm1175, %v1046, %v1253
        %1255 = vst [vmem:[%s1173 + $0x84] sm:$0xf] %v1254
        %1256 = vst.msk [vmem:[%s1173 + $0x88] sm:$0xf] %vm649, %v1055
        %v1257 = vld [vmem:[%s1173 + $0x8c] sm:$0x1]
        %v1258 = vsel %vm660, %v1056, %v1257
        %1259 = vst [vmem:[%s1173 + $0x8c] sm:$0x1] %v1258
        %v1260 = vld [vmem:[%s1173 + $0x90] sm:$0xf]
        %v1261 = vsel %vm1175, %v1063, %v1260
        %1262 = vst [vmem:[%s1173 + $0x90] sm:$0xf] %v1261
        %1263 = vst.msk [vmem:[%s1173 + $0x94] sm:$0xf] %vm649, %v1072
        %v1264 = vld [vmem:[%s1173 + $0x98] sm:$0x1]
        %v1265 = vsel %vm660, %v1073, %v1264
        %1266 = vst [vmem:[%s1173 + $0x98] sm:$0x1] %v1265
        %v1267 = vld [vmem:[%s1173 + $0x9c] sm:$0xf]
        %v1268 = vsel %vm1175, %v1080, %v1267
        %1269 = vst [vmem:[%s1173 + $0x9c] sm:$0xf] %v1268
        %1270 = vst.msk [vmem:[%s1173 + $0xa0] sm:$0xf] %vm649, %v1089
        %v1271 = vld [vmem:[%s1173 + $0xa4] sm:$0x1]
        %v1272 = vsel %vm660, %v1090, %v1271
        %1273 = vst [vmem:[%s1173 + $0xa4] sm:$0x1] %v1272
        %v1274 = vld [vmem:[%s1173 + $0xa8] sm:$0xf]
        %v1275 = vsel %vm1175, %v1097, %v1274
        %1276 = vst [vmem:[%s1173 + $0xa8] sm:$0xf] %v1275
        %1277 = vst.msk [vmem:[%s1173 + $0xac] sm:$0xf] %vm649, %v1106
        %v1278 = vld [vmem:[%s1173 + $0xb0] sm:$0x1]
        %v1279 = vsel %vm660, %v1107, %v1278
        %1280 = vst [vmem:[%s1173 + $0xb0] sm:$0x1] %v1279
        %v1281 = vld [vmem:[%s1173 + $0xb4] sm:$0xf]
        %v1282 = vsel %vm1175, %v1114, %v1281
        %1283 = vst [vmem:[%s1173 + $0xb4] sm:$0xf] %v1282
        %1284 = vst.msk [vmem:[%s1173 + $0xb8] sm:$0xf] %vm649, %v1123
        %v1285 = vld [vmem:[%s1173 + $0xbc] sm:$0x1]
        %v1286 = vsel %vm660, %v1124, %v1285
        %1287 = vst [vmem:[%s1173 + $0xbc] sm:$0x1] %v1286
        %v1288 = vld [vmem:[#allocation2] sm:$0xf]
        %v1289 = vld [vmem:[#allocation2 + $0x4] sm:$0xf]
        %v1290 = vld [vmem:[#allocation2 + $0xc] sm:$0xf]
        %v1291 = vld [vmem:[#allocation2 + $0x10] sm:$0xf]
        %v1292 = vld [vmem:[#allocation2 + $0x18] sm:$0xf]
        %v1293 = vld [vmem:[#allocation2 + $0x1c] sm:$0xf]
        %v1294 = vld [vmem:[#allocation2 + $0x24] sm:$0xf]
        %v1295 = vld [vmem:[#allocation2 + $0x28] sm:$0xf]
        %v1296 = vld [vmem:[#allocation2 + $0x30] sm:$0xf]
        %v1297 = vld [vmem:[#allocation2 + $0x34] sm:$0xf]
        %v1298 = vld [vmem:[#allocation2 + $0x3c] sm:$0xf]
        %v1299 = vld [vmem:[#allocation2 + $0x40] sm:$0xf]
        %v1300 = vld [vmem:[#allocation2 + $0x48] sm:$0xf]
        %v1301 = vld [vmem:[#allocation2 + $0x4c] sm:$0xf]
        %v1302 = vld [vmem:[#allocation2 + $0x54] sm:$0xf]
        %v1303 = vld [vmem:[#allocation2 + $0x58] sm:$0xf]
        %v1304 = vld [vmem:[#allocation2 + $0x60] sm:$0xf]
        %v1305 = vld [vmem:[#allocation2 + $0x64] sm:$0xf]
        %v1306 = vld [vmem:[#allocation2 + $0x6c] sm:$0xf]
        %v1307 = vld [vmem:[#allocation2 + $0x70] sm:$0xf]
        %v1308 = vld [vmem:[#allocation2 + $0x78] sm:$0xf]
        %v1309 = vld [vmem:[#allocation2 + $0x7c] sm:$0xf]
        %v1310 = vld [vmem:[#allocation2 + $0x84] sm:$0xf]
        %v1311 = vld [vmem:[#allocation2 + $0x88] sm:$0xf]
        %v1312 = vld [vmem:[#allocation2 + $0x90] sm:$0xf]
        %v1313 = vld [vmem:[#allocation2 + $0x94] sm:$0xf]
        %v1314 = vld [vmem:[#allocation2 + $0x9c] sm:$0xf]
        %v1315 = vld [vmem:[#allocation2 + $0xa0] sm:$0xf]
        %v1316 = vld [vmem:[#allocation2 + $0xa8] sm:$0xf]
        %v1317 = vld [vmem:[#allocation2 + $0xac] sm:$0xf]
        %v1318 = vld [vmem:[#allocation2 + $0xb4] sm:$0xf]
        %v1319 = vld [vmem:[#allocation2 + $0xb8] sm:$0xf]
        %1320 = vst.msk [vmem:[#allocation3] sm:$0xf] %vm649, %v1288
        %1321 = vst.msk [vmem:[#allocation3 + $0x8] sm:$0xf] %vm649, %v1289
        %1322 = vst.msk [vmem:[#allocation3 + $0x10] sm:$0xf] %vm649, %v1290
        %1323 = vst.msk [vmem:[#allocation3 + $0x18] sm:$0xf] %vm649, %v1291
        %1324 = vst.msk [vmem:[#allocation3 + $0x20] sm:$0xf] %vm649, %v1292
        %1325 = vst.msk [vmem:[#allocation3 + $0x28] sm:$0xf] %vm649, %v1293
        %1326 = vst.msk [vmem:[#allocation3 + $0x30] sm:$0xf] %vm649, %v1294
        %1327 = vst.msk [vmem:[#allocation3 + $0x38] sm:$0xf] %vm649, %v1295
        %1328 = vst.msk [vmem:[#allocation3 + $0x40] sm:$0xf] %vm649, %v1296
        %1329 = vst.msk [vmem:[#allocation3 + $0x48] sm:$0xf] %vm649, %v1297
        %1330 = vst.msk [vmem:[#allocation3 + $0x50] sm:$0xf] %vm649, %v1298
        %1331 = vst.msk [vmem:[#allocation3 + $0x58] sm:$0xf] %vm649, %v1299
        %1332 = vst.msk [vmem:[#allocation3 + $0x60] sm:$0xf] %vm649, %v1300
        %1333 = vst.msk [vmem:[#allocation3 + $0x68] sm:$0xf] %vm649, %v1301
        %1334 = vst.msk [vmem:[#allocation3 + $0x70] sm:$0xf] %vm649, %v1302
        %1335 = vst.msk [vmem:[#allocation3 + $0x78] sm:$0xf] %vm649, %v1303
        %1336 = vst.msk [vmem:[#allocation3 + $0x80] sm:$0xf] %vm649, %v1304
        %1337 = vst.msk [vmem:[#allocation3 + $0x88] sm:$0xf] %vm649, %v1305
        %1338 = vst.msk [vmem:[#allocation3 + $0x90] sm:$0xf] %vm649, %v1306
        %1339 = vst.msk [vmem:[#allocation3 + $0x98] sm:$0xf] %vm649, %v1307
        %1340 = vst.msk [vmem:[#allocation3 + $0xa0] sm:$0xf] %vm649, %v1308
        %1341 = vst.msk [vmem:[#allocation3 + $0xa8] sm:$0xf] %vm649, %v1309
        %1342 = vst.msk [vmem:[#allocation3 + $0xb0] sm:$0xf] %vm649, %v1310
        %1343 = vst.msk [vmem:[#allocation3 + $0xb8] sm:$0xf] %vm649, %v1311
        %1344 = vst.msk [vmem:[#allocation3 + $0xc0] sm:$0xf] %vm649, %v1312
        %1345 = vst.msk [vmem:[#allocation3 + $0xc8] sm:$0xf] %vm649, %v1313
        %1346 = vst.msk [vmem:[#allocation3 + $0xd0] sm:$0xf] %vm649, %v1314
        %1347 = vst.msk [vmem:[#allocation3 + $0xd8] sm:$0xf] %vm649, %v1315
        %1348 = vst.msk [vmem:[#allocation3 + $0xe0] sm:$0xf] %vm649, %v1316
        %1349 = vst.msk [vmem:[#allocation3 + $0xe8] sm:$0xf] %vm649, %v1317
        %1350 = vst.msk [vmem:[#allocation3 + $0xf0] sm:$0xf] %vm649, %v1318
        %1351 = vst.msk [vmem:[#allocation3 + $0xf8] sm:$0xf] %vm649, %v1319
        %v1352 = vld [vmem:[#allocation2] sm:$0xf]
        %v1353 = vld [vmem:[#allocation2 + $0x4] sm:$0xf]
        %v1354 = vld [vmem:[#allocation2 + $0x8] sm:$0x1]
        %v1355 = vld [vmem:[#allocation2 + $0xc] sm:$0xf]
        %v1356 = vld [vmem:[#allocation2 + $0x10] sm:$0xf]
        %v1357 = vld [vmem:[#allocation2 + $0x14] sm:$0x1]
        %v1358 = vld [vmem:[#allocation2 + $0x18] sm:$0xf]
        %v1359 = vld [vmem:[#allocation2 + $0x1c] sm:$0xf]
        %v1360 = vld [vmem:[#allocation2 + $0x20] sm:$0x1]
        %v1361 = vld [vmem:[#allocation2 + $0x24] sm:$0xf]
        %v1362 = vld [vmem:[#allocation2 + $0x28] sm:$0xf]
        %v1363 = vld [vmem:[#allocation2 + $0x2c] sm:$0x1]
        %v1364 = vld [vmem:[#allocation2 + $0x30] sm:$0xf]
        %v1365 = vld [vmem:[#allocation2 + $0x34] sm:$0xf]
        %v1366 = vld [vmem:[#allocation2 + $0x38] sm:$0x1]
        %v1367 = vld [vmem:[#allocation2 + $0x3c] sm:$0xf]
        %v1368 = vld [vmem:[#allocation2 + $0x40] sm:$0xf]
        %v1369 = vld [vmem:[#allocation2 + $0x44] sm:$0x1]
        %v1370 = vld [vmem:[#allocation2 + $0x48] sm:$0xf]
        %v1371 = vld [vmem:[#allocation2 + $0x4c] sm:$0xf]
        %v1372 = vld [vmem:[#allocation2 + $0x50] sm:$0x1]
        %v1373 = vld [vmem:[#allocation2 + $0x54] sm:$0xf]
        %v1374 = vld [vmem:[#allocation2 + $0x58] sm:$0xf]
        %v1375 = vld [vmem:[#allocation2 + $0x5c] sm:$0x1]
        %v1376 = vld [vmem:[#allocation2 + $0x60] sm:$0xf]
        %v1377 = vld [vmem:[#allocation2 + $0x64] sm:$0xf]
        %v1378 = vld [vmem:[#allocation2 + $0x68] sm:$0x1]
        %v1379 = vld [vmem:[#allocation2 + $0x6c] sm:$0xf]
        %v1380 = vld [vmem:[#allocation2 + $0x70] sm:$0xf]
        %v1381 = vld [vmem:[#allocation2 + $0x74] sm:$0x1]
        %v1382 = vld [vmem:[#allocation2 + $0x78] sm:$0xf]
        %v1383 = vld [vmem:[#allocation2 + $0x7c] sm:$0xf]
        %v1384 = vld [vmem:[#allocation2 + $0x80] sm:$0x1]
        %v1385 = vld [vmem:[#allocation2 + $0x84] sm:$0xf]
        %v1386 = vld [vmem:[#allocation2 + $0x88] sm:$0xf]
        %v1387 = vld [vmem:[#allocation2 + $0x8c] sm:$0x1]
        %v1388 = vld [vmem:[#allocation2 + $0x90] sm:$0xf]
        %v1389 = vld [vmem:[#allocation2 + $0x94] sm:$0xf]
        %v1390 = vld [vmem:[#allocation2 + $0x98] sm:$0x1]
        %v1391 = vld [vmem:[#allocation2 + $0x9c] sm:$0xf]
        %v1392 = vld [vmem:[#allocation2 + $0xa0] sm:$0xf]
        %v1393 = vld [vmem:[#allocation2 + $0xa4] sm:$0x1]
        %v1394 = vld [vmem:[#allocation2 + $0xa8] sm:$0xf]
        %v1395 = vld [vmem:[#allocation2 + $0xac] sm:$0xf]
        %v1396 = vld [vmem:[#allocation2 + $0xb0] sm:$0x1]
        %v1397 = vld [vmem:[#allocation2 + $0xb4] sm:$0xf]
        %v1398 = vld [vmem:[#allocation2 + $0xb8] sm:$0xf]
        %v1399 = vld [vmem:[#allocation2 + $0xbc] sm:$0x1]
        %vm1400 = vsmask.f32 3328
        %vm1401 = vsmask.f32 7440
        %vm1402 = vmor %vm1400, %vm1401
        %v1404 = vshrl.u32 %v1352, 16
        %v1406 = vrot.slane %v1404, 4
        %v1407 = vshll.u32 %v1352, 16
        %v1409 = vrot.slane %v1407, 5
        %v1410 = vor.u32 %v1406, %v1409
        %v1411 = vrot.slane %v1410, 4
        %v1413 = vshll.u32 %v1353, 16
        %v1415 = vrot.slane %v1413, 5
        %v1416 = vsel %vm1402, %v1411, %v1415
        %v1417 = vshrl.u32 %v1353, 16
        %v1419 = vrot.slane %v1417, 4
        %v1420 = vor.u32 %v1419, %v1415
        %v1421 = vrot.slane %v1420, 4
        %v1423 = vshll.u32 %v1354, 16
        %v1425 = vrot.slane %v1423, 5
        %v1426 = vsel %vm1402, %v1421, %v1425
        %v1428 = vshrl.u32 %v1355, 16
        %v1430 = vrot.slane %v1428, 4
        %v1431 = vshll.u32 %v1355, 16
        %v1433 = vrot.slane %v1431, 5
        %v1434 = vor.u32 %v1430, %v1433
        %v1435 = vrot.slane %v1434, 4
        %v1437 = vshll.u32 %v1356, 16
        %v1439 = vrot.slane %v1437, 5
        %v1440 = vsel %vm1402, %v1435, %v1439
        %v1441 = vshrl.u32 %v1356, 16
        %v1443 = vrot.slane %v1441, 4
        %v1444 = vor.u32 %v1443, %v1439
        %v1445 = vrot.slane %v1444, 4
        %v1447 = vshll.u32 %v1357, 16
        %v1449 = vrot.slane %v1447, 5
        %v1450 = vsel %vm1402, %v1445, %v1449
        %v1452 = vshrl.u32 %v1358, 16
        %v1454 = vrot.slane %v1452, 4
        %v1455 = vshll.u32 %v1358, 16
        %v1457 = vrot.slane %v1455, 5
        %v1458 = vor.u32 %v1454, %v1457
        %v1459 = vrot.slane %v1458, 4
        %v1461 = vshll.u32 %v1359, 16
        %v1463 = vrot.slane %v1461, 5
        %v1464 = vsel %vm1402, %v1459, %v1463
        %v1465 = vshrl.u32 %v1359, 16
        %v1467 = vrot.slane %v1465, 4
        %v1468 = vor.u32 %v1467, %v1463
        %v1469 = vrot.slane %v1468, 4
        %v1471 = vshll.u32 %v1360, 16
        %v1473 = vrot.slane %v1471, 5
        %v1474 = vsel %vm1402, %v1469, %v1473
        %v1476 = vshrl.u32 %v1361, 16
        %v1478 = vrot.slane %v1476, 4
        %v1479 = vshll.u32 %v1361, 16
        %v1481 = vrot.slane %v1479, 5
        %v1482 = vor.u32 %v1478, %v1481
        %v1483 = vrot.slane %v1482, 4
        %v1485 = vshll.u32 %v1362, 16
        %v1487 = vrot.slane %v1485, 5
        %v1488 = vsel %vm1402, %v1483, %v1487
        %v1489 = vshrl.u32 %v1362, 16
        %v1491 = vrot.slane %v1489, 4
        %v1492 = vor.u32 %v1491, %v1487
        %v1493 = vrot.slane %v1492, 4
        %v1495 = vshll.u32 %v1363, 16
        %v1497 = vrot.slane %v1495, 5
        %v1498 = vsel %vm1402, %v1493, %v1497
        %v1500 = vshrl.u32 %v1364, 16
        %v1502 = vrot.slane %v1500, 4
        %v1503 = vshll.u32 %v1364, 16
        %v1505 = vrot.slane %v1503, 5
        %v1506 = vor.u32 %v1502, %v1505
        %v1507 = vrot.slane %v1506, 4
        %v1509 = vshll.u32 %v1365, 16
        %v1511 = vrot.slane %v1509, 5
        %v1512 = vsel %vm1402, %v1507, %v1511
        %v1513 = vshrl.u32 %v1365, 16
        %v1515 = vrot.slane %v1513, 4
        %v1516 = vor.u32 %v1515, %v1511
        %v1517 = vrot.slane %v1516, 4
        %v1519 = vshll.u32 %v1366, 16
        %v1521 = vrot.slane %v1519, 5
        %v1522 = vsel %vm1402, %v1517, %v1521
        %v1524 = vshrl.u32 %v1367, 16
        %v1526 = vrot.slane %v1524, 4
        %v1527 = vshll.u32 %v1367, 16
        %v1529 = vrot.slane %v1527, 5
        %v1530 = vor.u32 %v1526, %v1529
        %v1531 = vrot.slane %v1530, 4
        %v1533 = vshll.u32 %v1368, 16
        %v1535 = vrot.slane %v1533, 5
        %v1536 = vsel %vm1402, %v1531, %v1535
        %v1537 = vshrl.u32 %v1368, 16
        %v1539 = vrot.slane %v1537, 4
        %v1540 = vor.u32 %v1539, %v1535
        %v1541 = vrot.slane %v1540, 4
        %v1543 = vshll.u32 %v1369, 16
        %v1545 = vrot.slane %v1543, 5
        %v1546 = vsel %vm1402, %v1541, %v1545
        %v1548 = vshrl.u32 %v1370, 16
        %v1550 = vrot.slane %v1548, 4
        %v1551 = vshll.u32 %v1370, 16
        %v1553 = vrot.slane %v1551, 5
        %v1554 = vor.u32 %v1550, %v1553
        %v1555 = vrot.slane %v1554, 4
        %v1557 = vshll.u32 %v1371, 16
        %v1559 = vrot.slane %v1557, 5
        %v1560 = vsel %vm1402, %v1555, %v1559
        %v1561 = vshrl.u32 %v1371, 16
        %v1563 = vrot.slane %v1561, 4
        %v1564 = vor.u32 %v1563, %v1559
        %v1565 = vrot.slane %v1564, 4
        %v1567 = vshll.u32 %v1372, 16
        %v1569 = vrot.slane %v1567, 5
        %v1570 = vsel %vm1402, %v1565, %v1569
        %v1572 = vshrl.u32 %v1373, 16
        %v1574 = vrot.slane %v1572, 4
        %v1575 = vshll.u32 %v1373, 16
        %v1577 = vrot.slane %v1575, 5
        %v1578 = vor.u32 %v1574, %v1577
        %v1579 = vrot.slane %v1578, 4
        %v1581 = vshll.u32 %v1374, 16
        %v1583 = vrot.slane %v1581, 5
        %v1584 = vsel %vm1402, %v1579, %v1583
        %v1585 = vshrl.u32 %v1374, 16
        %v1587 = vrot.slane %v1585, 4
        %v1588 = vor.u32 %v1587, %v1583
        %v1589 = vrot.slane %v1588, 4
        %v1591 = vshll.u32 %v1375, 16
        %v1593 = vrot.slane %v1591, 5
        %v1594 = vsel %vm1402, %v1589, %v1593
        %v1596 = vshrl.u32 %v1376, 16
        %v1598 = vrot.slane %v1596, 4
        %v1599 = vshll.u32 %v1376, 16
        %v1601 = vrot.slane %v1599, 5
        %v1602 = vor.u32 %v1598, %v1601
        %v1603 = vrot.slane %v1602, 4
        %v1605 = vshll.u32 %v1377, 16
        %v1607 = vrot.slane %v1605, 5
        %v1608 = vsel %vm1402, %v1603, %v1607
        %v1609 = vshrl.u32 %v1377, 16
        %v1611 = vrot.slane %v1609, 4
        %v1612 = vor.u32 %v1611, %v1607
        %v1613 = vrot.slane %v1612, 4
        %v1615 = vshll.u32 %v1378, 16
        %v1617 = vrot.slane %v1615, 5
        %v1618 = vsel %vm1402, %v1613, %v1617
        %v1620 = vshrl.u32 %v1379, 16
        %v1622 = vrot.slane %v1620, 4
        %v1623 = vshll.u32 %v1379, 16
        %v1625 = vrot.slane %v1623, 5
        %v1626 = vor.u32 %v1622, %v1625
        %v1627 = vrot.slane %v1626, 4
        %v1629 = vshll.u32 %v1380, 16
        %v1631 = vrot.slane %v1629, 5
        %v1632 = vsel %vm1402, %v1627, %v1631
        %v1633 = vshrl.u32 %v1380, 16
        %v1635 = vrot.slane %v1633, 4
        %v1636 = vor.u32 %v1635, %v1631
        %v1637 = vrot.slane %v1636, 4
        %v1639 = vshll.u32 %v1381, 16
        %v1641 = vrot.slane %v1639, 5
        %v1642 = vsel %vm1402, %v1637, %v1641
        %v1644 = vshrl.u32 %v1382, 16
        %v1646 = vrot.slane %v1644, 4
        %v1647 = vshll.u32 %v1382, 16
        %v1649 = vrot.slane %v1647, 5
        %v1650 = vor.u32 %v1646, %v1649
        %v1651 = vrot.slane %v1650, 4
        %v1653 = vshll.u32 %v1383, 16
        %v1655 = vrot.slane %v1653, 5
        %v1656 = vsel %vm1402, %v1651, %v1655
        %v1657 = vshrl.u32 %v1383, 16
        %v1659 = vrot.slane %v1657, 4
        %v1660 = vor.u32 %v1659, %v1655
        %v1661 = vrot.slane %v1660, 4
        %v1663 = vshll.u32 %v1384, 16
        %v1665 = vrot.slane %v1663, 5
        %v1666 = vsel %vm1402, %v1661, %v1665
        %v1668 = vshrl.u32 %v1385, 16
        %v1670 = vrot.slane %v1668, 4
        %v1671 = vshll.u32 %v1385, 16
        %v1673 = vrot.slane %v1671, 5
        %v1674 = vor.u32 %v1670, %v1673
        %v1675 = vrot.slane %v1674, 4
        %v1677 = vshll.u32 %v1386, 16
        %v1679 = vrot.slane %v1677, 5
        %v1680 = vsel %vm1402, %v1675, %v1679
        %v1681 = vshrl.u32 %v1386, 16
        %v1683 = vrot.slane %v1681, 4
        %v1684 = vor.u32 %v1683, %v1679
        %v1685 = vrot.slane %v1684, 4
        %v1687 = vshll.u32 %v1387, 16
        %v1689 = vrot.slane %v1687, 5
        %v1690 = vsel %vm1402, %v1685, %v1689
        %v1692 = vshrl.u32 %v1388, 16
        %v1694 = vrot.slane %v1692, 4
        %v1695 = vshll.u32 %v1388, 16
        %v1697 = vrot.slane %v1695, 5
        %v1698 = vor.u32 %v1694, %v1697
        %v1699 = vrot.slane %v1698, 4
        %v1701 = vshll.u32 %v1389, 16
        %v1703 = vrot.slane %v1701, 5
        %v1704 = vsel %vm1402, %v1699, %v1703
        %v1705 = vshrl.u32 %v1389, 16
        %v1707 = vrot.slane %v1705, 4
        %v1708 = vor.u32 %v1707, %v1703
        %v1709 = vrot.slane %v1708, 4
        %v1711 = vshll.u32 %v1390, 16
        %v1713 = vrot.slane %v1711, 5
        %v1714 = vsel %vm1402, %v1709, %v1713
        %v1716 = vshrl.u32 %v1391, 16
        %v1718 = vrot.slane %v1716, 4
        %v1719 = vshll.u32 %v1391, 16
        %v1721 = vrot.slane %v1719, 5
        %v1722 = vor.u32 %v1718, %v1721
        %v1723 = vrot.slane %v1722, 4
        %v1725 = vshll.u32 %v1392, 16
        %v1727 = vrot.slane %v1725, 5
        %v1728 = vsel %vm1402, %v1723, %v1727
        %v1729 = vshrl.u32 %v1392, 16
        %v1731 = vrot.slane %v1729, 4
        %v1732 = vor.u32 %v1731, %v1727
        %v1733 = vrot.slane %v1732, 4
        %v1735 = vshll.u32 %v1393, 16
        %v1737 = vrot.slane %v1735, 5
        %v1738 = vsel %vm1402, %v1733, %v1737
        %v1740 = vshrl.u32 %v1394, 16
        %v1742 = vrot.slane %v1740, 4
        %v1743 = vshll.u32 %v1394, 16
        %v1745 = vrot.slane %v1743, 5
        %v1746 = vor.u32 %v1742, %v1745
        %v1747 = vrot.slane %v1746, 4
        %v1749 = vshll.u32 %v1395, 16
        %v1751 = vrot.slane %v1749, 5
        %v1752 = vsel %vm1402, %v1747, %v1751
        %v1753 = vshrl.u32 %v1395, 16
        %v1755 = vrot.slane %v1753, 4
        %v1756 = vor.u32 %v1755, %v1751
        %v1757 = vrot.slane %v1756, 4
        %v1759 = vshll.u32 %v1396, 16
        %v1761 = vrot.slane %v1759, 5
        %v1762 = vsel %vm1402, %v1757, %v1761
        %v1764 = vshrl.u32 %v1397, 16
        %v1766 = vrot.slane %v1764, 4
        %v1767 = vshll.u32 %v1397, 16
        %v1769 = vrot.slane %v1767, 5
        %v1770 = vor.u32 %v1766, %v1769
        %v1771 = vrot.slane %v1770, 4
        %v1773 = vshll.u32 %v1398, 16
        %v1775 = vrot.slane %v1773, 5
        %v1776 = vsel %vm1402, %v1771, %v1775
        %v1777 = vshrl.u32 %v1398, 16
        %v1779 = vrot.slane %v1777, 4
        %v1780 = vor.u32 %v1779, %v1775
        %v1781 = vrot.slane %v1780, 4
        %v1783 = vshll.u32 %v1399, 16
        %v1785 = vrot.slane %v1783, 5
        %v1786 = vsel %vm1402, %v1781, %v1785
        %1787 = vrot.lane.b32.xlu0 %v1416, 16
        %v1788 = vpop.permute.xlu0 %1787
        %1789 = vrot.lane.b32.xlu0 %v1426, 16
        %v1790 = vpop.permute.xlu0 %1789
        %1791 = vrot.lane.b32.xlu0 %v1440, 16
        %v1792 = vpop.permute.xlu0 %1791
        %1793 = vrot.lane.b32.xlu0 %v1450, 16
        %v1794 = vpop.permute.xlu0 %1793
        %1795 = vrot.lane.b32.xlu0 %v1464, 16
        %v1796 = vpop.permute.xlu0 %1795
        %1797 = vrot.lane.b32.xlu0 %v1474, 16
        %v1798 = vpop.permute.xlu0 %1797
        %1799 = vrot.lane.b32.xlu0 %v1488, 16
        %v1800 = vpop.permute.xlu0 %1799
        %1801 = vrot.lane.b32.xlu0 %v1498, 16
        %v1802 = vpop.permute.xlu0 %1801
        %1803 = vrot.lane.b32.xlu0 %v1512, 16
        %v1804 = vpop.permute.xlu0 %1803
        %1805 = vrot.lane.b32.xlu0 %v1522, 16
        %v1806 = vpop.permute.xlu0 %1805
        %1807 = vrot.lane.b32.xlu0 %v1536, 16
        %v1808 = vpop.permute.xlu0 %1807
        %1809 = vrot.lane.b32.xlu0 %v1546, 16
        %v1810 = vpop.permute.xlu0 %1809
        %1811 = vrot.lane.b32.xlu0 %v1560, 16
        %v1812 = vpop.permute.xlu0 %1811
        %1813 = vrot.lane.b32.xlu0 %v1570, 16
        %v1814 = vpop.permute.xlu0 %1813
        %1815 = vrot.lane.b32.xlu0 %v1584, 16
        %v1816 = vpop.permute.xlu0 %1815
        %1817 = vrot.lane.b32.xlu0 %v1594, 16
        %v1818 = vpop.permute.xlu0 %1817
        %1819 = vrot.lane.b32.xlu0 %v1608, 16
        %v1820 = vpop.permute.xlu0 %1819
        %1821 = vrot.lane.b32.xlu0 %v1618, 16
        %v1822 = vpop.permute.xlu0 %1821
        %1823 = vrot.lane.b32.xlu0 %v1632, 16
        %v1824 = vpop.permute.xlu0 %1823
        %1825 = vrot.lane.b32.xlu0 %v1642, 16
        %v1826 = vpop.permute.xlu0 %1825
        %1827 = vrot.lane.b32.xlu0 %v1656, 16
        %v1828 = vpop.permute.xlu0 %1827
        %1829 = vrot.lane.b32.xlu0 %v1666, 16
        %v1830 = vpop.permute.xlu0 %1829
        %1831 = vrot.lane.b32.xlu0 %v1680, 16
        %v1832 = vpop.permute.xlu0 %1831
        %1833 = vrot.lane.b32.xlu0 %v1690, 16
        %v1834 = vpop.permute.xlu0 %1833
        %1835 = vrot.lane.b32.xlu0 %v1704, 16
        %v1836 = vpop.permute.xlu0 %1835
        %1837 = vrot.lane.b32.xlu0 %v1714, 16
        %v1838 = vpop.permute.xlu0 %1837
        %1839 = vrot.lane.b32.xlu0 %v1728, 16
        %v1840 = vpop.permute.xlu0 %1839
        %1841 = vrot.lane.b32.xlu0 %v1738, 16
        %v1842 = vpop.permute.xlu0 %1841
        %1843 = vrot.lane.b32.xlu0 %v1752, 16
        %v1844 = vpop.permute.xlu0 %1843
        %1845 = vrot.lane.b32.xlu0 %v1762, 16
        %v1846 = vpop.permute.xlu0 %1845
        %1847 = vrot.lane.b32.xlu0 %v1776, 16
        %v1848 = vpop.permute.xlu0 %1847
        %1849 = vrot.lane.b32.xlu0 %v1786, 16
        %v1850 = vpop.permute.xlu0 %1849
        %vm1883 = vcmask 257152
        %1884 = vst.msk [vmem:[#allocation3] sm:$0xf] %vm1883, %v1788
        %1885 = vst.msk [vmem:[#allocation3 + $0x8] sm:$0xf] %vm1883, %v1790
        %1886 = vst.msk [vmem:[#allocation3 + $0x10] sm:$0xf] %vm1883, %v1792
        %1887 = vst.msk [vmem:[#allocation3 + $0x18] sm:$0xf] %vm1883, %v1794
        %1888 = vst.msk [vmem:[#allocation3 + $0x20] sm:$0xf] %vm1883, %v1796
        %1889 = vst.msk [vmem:[#allocation3 + $0x28] sm:$0xf] %vm1883, %v1798
        %1890 = vst.msk [vmem:[#allocation3 + $0x30] sm:$0xf] %vm1883, %v1800
        %1891 = vst.msk [vmem:[#allocation3 + $0x38] sm:$0xf] %vm1883, %v1802
        %1892 = vst.msk [vmem:[#allocation3 + $0x40] sm:$0xf] %vm1883, %v1804
        %1893 = vst.msk [vmem:[#allocation3 + $0x48] sm:$0xf] %vm1883, %v1806
        %1894 = vst.msk [vmem:[#allocation3 + $0x50] sm:$0xf] %vm1883, %v1808
        %1895 = vst.msk [vmem:[#allocation3 + $0x58] sm:$0xf] %vm1883, %v1810
        %1896 = vst.msk [vmem:[#allocation3 + $0x60] sm:$0xf] %vm1883, %v1812
        %1897 = vst.msk [vmem:[#allocation3 + $0x68] sm:$0xf] %vm1883, %v1814
        %1898 = vst.msk [vmem:[#allocation3 + $0x70] sm:$0xf] %vm1883, %v1816
        %1899 = vst.msk [vmem:[#allocation3 + $0x78] sm:$0xf] %vm1883, %v1818
        %1900 = vst.msk [vmem:[#allocation3 + $0x80] sm:$0xf] %vm1883, %v1820
        %1901 = vst.msk [vmem:[#allocation3 + $0x88] sm:$0xf] %vm1883, %v1822
        %1902 = vst.msk [vmem:[#allocation3 + $0x90] sm:$0xf] %vm1883, %v1824
        %1903 = vst.msk [vmem:[#allocation3 + $0x98] sm:$0xf] %vm1883, %v1826
        %1904 = vst.msk [vmem:[#allocation3 + $0xa0] sm:$0xf] %vm1883, %v1828
        %1905 = vst.msk [vmem:[#allocation3 + $0xa8] sm:$0xf] %vm1883, %v1830
        %1906 = vst.msk [vmem:[#allocation3 + $0xb0] sm:$0xf] %vm1883, %v1832
        %1907 = vst.msk [vmem:[#allocation3 + $0xb8] sm:$0xf] %vm1883, %v1834
        %1908 = vst.msk [vmem:[#allocation3 + $0xc0] sm:$0xf] %vm1883, %v1836
        %1909 = vst.msk [vmem:[#allocation3 + $0xc8] sm:$0xf] %vm1883, %v1838
        %1910 = vst.msk [vmem:[#allocation3 + $0xd0] sm:$0xf] %vm1883, %v1840
        %1911 = vst.msk [vmem:[#allocation3 + $0xd8] sm:$0xf] %vm1883, %v1842
        %1912 = vst.msk [vmem:[#allocation3 + $0xe0] sm:$0xf] %vm1883, %v1844
        %1913 = vst.msk [vmem:[#allocation3 + $0xe8] sm:$0xf] %vm1883, %v1846
        %1914 = vst.msk [vmem:[#allocation3 + $0xf0] sm:$0xf] %vm1883, %v1848
        %1915 = vst.msk [vmem:[#allocation3 + $0xf8] sm:$0xf] %vm1883, %v1850
        %v1916 = vld [vmem:[#allocation2] sm:$0xe]
        %v1917 = vld [vmem:[#allocation2 + $0x4] sm:$0xf]
        %v1918 = vld [vmem:[#allocation2 + $0x8] sm:$0x1]
        %v1919 = vld [vmem:[#allocation2 + $0xc] sm:$0xe]
        %v1920 = vld [vmem:[#allocation2 + $0x10] sm:$0xf]
        %v1921 = vld [vmem:[#allocation2 + $0x14] sm:$0x1]
        %v1922 = vld [vmem:[#allocation2 + $0x18] sm:$0xe]
        %v1923 = vld [vmem:[#allocation2 + $0x1c] sm:$0xf]
        %v1924 = vld [vmem:[#allocation2 + $0x20] sm:$0x1]
        %v1925 = vld [vmem:[#allocation2 + $0x24] sm:$0xe]
        %v1926 = vld [vmem:[#allocation2 + $0x28] sm:$0xf]
        %v1927 = vld [vmem:[#allocation2 + $0x2c] sm:$0x1]
        %v1928 = vld [vmem:[#allocation2 + $0x30] sm:$0xe]
        %v1929 = vld [vmem:[#allocation2 + $0x34] sm:$0xf]
        %v1930 = vld [vmem:[#allocation2 + $0x38] sm:$0x1]
        %v1931 = vld [vmem:[#allocation2 + $0x3c] sm:$0xe]
        %v1932 = vld [vmem:[#allocation2 + $0x40] sm:$0xf]
        %v1933 = vld [vmem:[#allocation2 + $0x44] sm:$0x1]
        %v1934 = vld [vmem:[#allocation2 + $0x48] sm:$0xe]
        %v1935 = vld [vmem:[#allocation2 + $0x4c] sm:$0xf]
        %v1936 = vld [vmem:[#allocation2 + $0x50] sm:$0x1]
        %v1937 = vld [vmem:[#allocation2 + $0x54] sm:$0xe]
        %v1938 = vld [vmem:[#allocation2 + $0x58] sm:$0xf]
        %v1939 = vld [vmem:[#allocation2 + $0x5c] sm:$0x1]
        %v1940 = vld [vmem:[#allocation2 + $0x60] sm:$0xe]
        %v1941 = vld [vmem:[#allocation2 + $0x64] sm:$0xf]
        %v1942 = vld [vmem:[#allocation2 + $0x68] sm:$0x1]
        %v1943 = vld [vmem:[#allocation2 + $0x6c] sm:$0xe]
        %v1944 = vld [vmem:[#allocation2 + $0x70] sm:$0xf]
        %v1945 = vld [vmem:[#allocation2 + $0x74] sm:$0x1]
        %v1946 = vld [vmem:[#allocation2 + $0x78] sm:$0xe]
        %v1947 = vld [vmem:[#allocation2 + $0x7c] sm:$0xf]
        %v1948 = vld [vmem:[#allocation2 + $0x80] sm:$0x1]
        %v1949 = vld [vmem:[#allocation2 + $0x84] sm:$0xe]
        %v1950 = vld [vmem:[#allocation2 + $0x88] sm:$0xf]
        %v1951 = vld [vmem:[#allocation2 + $0x8c] sm:$0x1]
        %v1952 = vld [vmem:[#allocation2 + $0x90] sm:$0xe]
        %v1953 = vld [vmem:[#allocation2 + $0x94] sm:$0xf]
        %v1954 = vld [vmem:[#allocation2 + $0x98] sm:$0x1]
        %v1955 = vld [vmem:[#allocation2 + $0x9c] sm:$0xe]
        %v1956 = vld [vmem:[#allocation2 + $0xa0] sm:$0xf]
        %v1957 = vld [vmem:[#allocation2 + $0xa4] sm:$0x1]
        %v1958 = vld [vmem:[#allocation2 + $0xa8] sm:$0xe]
        %v1959 = vld [vmem:[#allocation2 + $0xac] sm:$0xf]
        %v1960 = vld [vmem:[#allocation2 + $0xb0] sm:$0x1]
        %v1961 = vld [vmem:[#allocation2 + $0xb4] sm:$0xe]
        %v1962 = vld [vmem:[#allocation2 + $0xb8] sm:$0xf]
        %v1963 = vld [vmem:[#allocation2 + $0xbc] sm:$0x1]
        %vm2012 = vcmask 1042432
        %vm2013 = vcmask 1046532
        %vm2014 = vmor %vm2012, %vm2013
        %v2015 = vrot.slane %v1916, 5
        %v2016 = vrot.slane %v2015, 4
        %v2017 = vrot.slane %v1917, 5
        %v2018 = vsel %vm2014, %v2016, %v2017
        %v2019 = vrot.slane %v2017, 4
        %v2020 = vrot.slane %v1918, 5
        %v2021 = vsel %vm2014, %v2019, %v2020
        %v2022 = vrot.slane %v1919, 5
        %v2023 = vrot.slane %v2022, 4
        %v2024 = vrot.slane %v1920, 5
        %v2025 = vsel %vm2014, %v2023, %v2024
        %v2026 = vrot.slane %v2024, 4
        %v2027 = vrot.slane %v1921, 5
        %v2028 = vsel %vm2014, %v2026, %v2027
        %v2029 = vrot.slane %v1922, 5
        %v2030 = vrot.slane %v2029, 4
        %v2031 = vrot.slane %v1923, 5
        %v2032 = vsel %vm2014, %v2030, %v2031
        %v2033 = vrot.slane %v2031, 4
        %v2034 = vrot.slane %v1924, 5
        %v2035 = vsel %vm2014, %v2033, %v2034
        %v2036 = vrot.slane %v1925, 5
        %v2037 = vrot.slane %v2036, 4
        %v2038 = vrot.slane %v1926, 5
        %v2039 = vsel %vm2014, %v2037, %v2038
        %v2040 = vrot.slane %v2038, 4
        %v2041 = vrot.slane %v1927, 5
        %v2042 = vsel %vm2014, %v2040, %v2041
        %v2043 = vrot.slane %v1928, 5
        %v2044 = vrot.slane %v2043, 4
        %v2045 = vrot.slane %v1929, 5
        %v2046 = vsel %vm2014, %v2044, %v2045
        %v2047 = vrot.slane %v2045, 4
        %v2048 = vrot.slane %v1930, 5
        %v2049 = vsel %vm2014, %v2047, %v2048
        %v2050 = vrot.slane %v1931, 5
        %v2051 = vrot.slane %v2050, 4
        %v2052 = vrot.slane %v1932, 5
        %v2053 = vsel %vm2014, %v2051, %v2052
        %v2054 = vrot.slane %v2052, 4
        %v2055 = vrot.slane %v1933, 5
        %v2056 = vsel %vm2014, %v2054, %v2055
        %v2057 = vrot.slane %v1934, 5
        %v2058 = vrot.slane %v2057, 4
        %v2059 = vrot.slane %v1935, 5
        %v2060 = vsel %vm2014, %v2058, %v2059
        %v2061 = vrot.slane %v2059, 4
        %v2062 = vrot.slane %v1936, 5
        %v2063 = vsel %vm2014, %v2061, %v2062
        %v2064 = vrot.slane %v1937, 5
        %v2065 = vrot.slane %v2064, 4
        %v2066 = vrot.slane %v1938, 5
        %v2067 = vsel %vm2014, %v2065, %v2066
        %v2068 = vrot.slane %v2066, 4
        %v2069 = vrot.slane %v1939, 5
        %v2070 = vsel %vm2014, %v2068, %v2069
        %v2071 = vrot.slane %v1940, 5
        %v2072 = vrot.slane %v2071, 4
        %v2073 = vrot.slane %v1941, 5
        %v2074 = vsel %vm2014, %v2072, %v2073
        %v2075 = vrot.slane %v2073, 4
        %v2076 = vrot.slane %v1942, 5
        %v2077 = vsel %vm2014, %v2075, %v2076
        %v2078 = vrot.slane %v1943, 5
        %v2079 = vrot.slane %v2078, 4
        %v2080 = vrot.slane %v1944, 5
        %v2081 = vsel %vm2014, %v2079, %v2080
        %v2082 = vrot.slane %v2080, 4
        %v2083 = vrot.slane %v1945, 5
        %v2084 = vsel %vm2014, %v2082, %v2083
        %v2085 = vrot.slane %v1946, 5
        %v2086 = vrot.slane %v2085, 4
        %v2087 = vrot.slane %v1947, 5
        %v2088 = vsel %vm2014, %v2086, %v2087
        %v2089 = vrot.slane %v2087, 4
        %v2090 = vrot.slane %v1948, 5
        %v2091 = vsel %vm2014, %v2089, %v2090
        %v2092 = vrot.slane %v1949, 5
        %v2093 = vrot.slane %v2092, 4
        %v2094 = vrot.slane %v1950, 5
        %v2095 = vsel %vm2014, %v2093, %v2094
        %v2096 = vrot.slane %v2094, 4
        %v2097 = vrot.slane %v1951, 5
        %v2098 = vsel %vm2014, %v2096, %v2097
        %v2099 = vrot.slane %v1952, 5
        %v2100 = vrot.slane %v2099, 4
        %v2101 = vrot.slane %v1953, 5
        %v2102 = vsel %vm2014, %v2100, %v2101
        %v2103 = vrot.slane %v2101, 4
        %v2104 = vrot.slane %v1954, 5
        %v2105 = vsel %vm2014, %v2103, %v2104
        %v2106 = vrot.slane %v1955, 5
        %v2107 = vrot.slane %v2106, 4
        %v2108 = vrot.slane %v1956, 5
        %v2109 = vsel %vm2014, %v2107, %v2108
        %v2110 = vrot.slane %v2108, 4
        %v2111 = vrot.slane %v1957, 5
        %v2112 = vsel %vm2014, %v2110, %v2111
        %v2113 = vrot.slane %v1958, 5
        %v2114 = vrot.slane %v2113, 4
        %v2115 = vrot.slane %v1959, 5
        %v2116 = vsel %vm2014, %v2114, %v2115
        %v2117 = vrot.slane %v2115, 4
        %v2118 = vrot.slane %v1960, 5
        %v2119 = vsel %vm2014, %v2117, %v2118
        %v2120 = vrot.slane %v1961, 5
        %v2121 = vrot.slane %v2120, 4
        %v2122 = vrot.slane %v1962, 5
        %v2123 = vsel %vm2014, %v2121, %v2122
        %v2124 = vrot.slane %v2122, 4
        %v2125 = vrot.slane %v1963, 5
        %v2126 = vsel %vm2014, %v2124, %v2125
        %2127 = vrot.lane.b32.xlu0 %v2018, 32
        %v2128 = vpop.permute.xlu0 %2127
        %2129 = vrot.lane.b32.xlu0 %v2021, 32
        %v2130 = vpop.permute.xlu0 %2129
        %2131 = vrot.lane.b32.xlu0 %v2025, 32
        %v2132 = vpop.permute.xlu0 %2131
        %2133 = vrot.lane.b32.xlu0 %v2028, 32
        %v2134 = vpop.permute.xlu0 %2133
        %2135 = vrot.lane.b32.xlu0 %v2032, 32
        %v2136 = vpop.permute.xlu0 %2135
        %2137 = vrot.lane.b32.xlu0 %v2035, 32
        %v2138 = vpop.permute.xlu0 %2137
        %2139 = vrot.lane.b32.xlu0 %v2039, 32
        %v2140 = vpop.permute.xlu0 %2139
        %2141 = vrot.lane.b32.xlu0 %v2042, 32
        %v2142 = vpop.permute.xlu0 %2141
        %2143 = vrot.lane.b32.xlu0 %v2046, 32
        %v2144 = vpop.permute.xlu0 %2143
        %2145 = vrot.lane.b32.xlu0 %v2049, 32
        %v2146 = vpop.permute.xlu0 %2145
        %2147 = vrot.lane.b32.xlu0 %v2053, 32
        %v2148 = vpop.permute.xlu0 %2147
        %2149 = vrot.lane.b32.xlu0 %v2056, 32
        %v2150 = vpop.permute.xlu0 %2149
        %2151 = vrot.lane.b32.xlu0 %v2060, 32
        %v2152 = vpop.permute.xlu0 %2151
        %2153 = vrot.lane.b32.xlu0 %v2063, 32
        %v2154 = vpop.permute.xlu0 %2153
        %2155 = vrot.lane.b32.xlu0 %v2067, 32
        %v2156 = vpop.permute.xlu0 %2155
        %2157 = vrot.lane.b32.xlu0 %v2070, 32
        %v2158 = vpop.permute.xlu0 %2157
        %2159 = vrot.lane.b32.xlu0 %v2074, 32
        %v2160 = vpop.permute.xlu0 %2159
        %2161 = vrot.lane.b32.xlu0 %v2077, 32
        %v2162 = vpop.permute.xlu0 %2161
        %2163 = vrot.lane.b32.xlu0 %v2081, 32
        %v2164 = vpop.permute.xlu0 %2163
        %2165 = vrot.lane.b32.xlu0 %v2084, 32
        %v2166 = vpop.permute.xlu0 %2165
        %2167 = vrot.lane.b32.xlu0 %v2088, 32
        %v2168 = vpop.permute.xlu0 %2167
        %2169 = vrot.lane.b32.xlu0 %v2091, 32
        %v2170 = vpop.permute.xlu0 %2169
        %2171 = vrot.lane.b32.xlu0 %v2095, 32
        %v2172 = vpop.permute.xlu0 %2171
        %2173 = vrot.lane.b32.xlu0 %v2098, 32
        %v2174 = vpop.permute.xlu0 %2173
        %2175 = vrot.lane.b32.xlu0 %v2102, 32
        %v2176 = vpop.permute.xlu0 %2175
        %2177 = vrot.lane.b32.xlu0 %v2105, 32
        %v2178 = vpop.permute.xlu0 %2177
        %2179 = vrot.lane.b32.xlu0 %v2109, 32
        %v2180 = vpop.permute.xlu0 %2179
        %2181 = vrot.lane.b32.xlu0 %v2112, 32
        %v2182 = vpop.permute.xlu0 %2181
        %2183 = vrot.lane.b32.xlu0 %v2116, 32
        %v2184 = vpop.permute.xlu0 %2183
        %2185 = vrot.lane.b32.xlu0 %v2119, 32
        %v2186 = vpop.permute.xlu0 %2185
        %2187 = vrot.lane.b32.xlu0 %v2123, 32
        %v2188 = vpop.permute.xlu0 %2187
        %2189 = vrot.lane.b32.xlu0 %v2126, 32
        %v2190 = vpop.permute.xlu0 %2189
        %vm2223 = vcmask 388352
        %2224 = vst.msk [vmem:[#allocation3] sm:$0xf] %vm2223, %v2128
        %2225 = vst.msk [vmem:[#allocation3 + $0x8] sm:$0xf] %vm2223, %v2130
        %2226 = vst.msk [vmem:[#allocation3 + $0x10] sm:$0xf] %vm2223, %v2132
        %2227 = vst.msk [vmem:[#allocation3 + $0x18] sm:$0xf] %vm2223, %v2134
        %2228 = vst.msk [vmem:[#allocation3 + $0x20] sm:$0xf] %vm2223, %v2136
        %2229 = vst.msk [vmem:[#allocation3 + $0x28] sm:$0xf] %vm2223, %v2138
        %2230 = vst.msk [vmem:[#allocation3 + $0x30] sm:$0xf] %vm2223, %v2140
        %2231 = vst.msk [vmem:[#allocation3 + $0x38] sm:$0xf] %vm2223, %v2142
        %2232 = vst.msk [vmem:[#allocation3 + $0x40] sm:$0xf] %vm2223, %v2144
        %2233 = vst.msk [vmem:[#allocation3 + $0x48] sm:$0xf] %vm2223, %v2146
        %2234 = vst.msk [vmem:[#allocation3 + $0x50] sm:$0xf] %vm2223, %v2148
        %2235 = vst.msk [vmem:[#allocation3 + $0x58] sm:$0xf] %vm2223, %v2150
        %2236 = vst.msk [vmem:[#allocation3 + $0x60] sm:$0xf] %vm2223, %v2152
        %2237 = vst.msk [vmem:[#allocation3 + $0x68] sm:$0xf] %vm2223, %v2154
        %2238 = vst.msk [vmem:[#allocation3 + $0x70] sm:$0xf] %vm2223, %v2156
        %2239 = vst.msk [vmem:[#allocation3 + $0x78] sm:$0xf] %vm2223, %v2158
        %2240 = vst.msk [vmem:[#allocation3 + $0x80] sm:$0xf] %vm2223, %v2160
        %2241 = vst.msk [vmem:[#allocation3 + $0x88] sm:$0xf] %vm2223, %v2162
        %2242 = vst.msk [vmem:[#allocation3 + $0x90] sm:$0xf] %vm2223, %v2164
        %2243 = vst.msk [vmem:[#allocation3 + $0x98] sm:$0xf] %vm2223, %v2166
        %2244 = vst.msk [vmem:[#allocation3 + $0xa0] sm:$0xf] %vm2223, %v2168
        %2245 = vst.msk [vmem:[#allocation3 + $0xa8] sm:$0xf] %vm2223, %v2170
        %2246 = vst.msk [vmem:[#allocation3 + $0xb0] sm:$0xf] %vm2223, %v2172
        %2247 = vst.msk [vmem:[#allocation3 + $0xb8] sm:$0xf] %vm2223, %v2174
        %2248 = vst.msk [vmem:[#allocation3 + $0xc0] sm:$0xf] %vm2223, %v2176
        %2249 = vst.msk [vmem:[#allocation3 + $0xc8] sm:$0xf] %vm2223, %v2178
        %2250 = vst.msk [vmem:[#allocation3 + $0xd0] sm:$0xf] %vm2223, %v2180
        %2251 = vst.msk [vmem:[#allocation3 + $0xd8] sm:$0xf] %vm2223, %v2182
        %2252 = vst.msk [vmem:[#allocation3 + $0xe0] sm:$0xf] %vm2223, %v2184
        %2253 = vst.msk [vmem:[#allocation3 + $0xe8] sm:$0xf] %vm2223, %v2186
        %2254 = vst.msk [vmem:[#allocation3 + $0xf0] sm:$0xf] %vm2223, %v2188
        %2255 = vst.msk [vmem:[#allocation3 + $0xf8] sm:$0xf] %vm2223, %v2190
        %v2256 = vld [vmem:[%s1173] sm:$0xf]
        %v2257 = vld [vmem:[%s1173 + $0x4] sm:$0xf]
        %v2258 = vld [vmem:[%s1173 + $0xc] sm:$0xf]
        %v2259 = vld [vmem:[%s1173 + $0x10] sm:$0xf]
        %v2260 = vld [vmem:[%s1173 + $0x18] sm:$0xf]
        %v2261 = vld [vmem:[%s1173 + $0x1c] sm:$0xf]
        %v2262 = vld [vmem:[%s1173 + $0x24] sm:$0xf]
        %v2263 = vld [vmem:[%s1173 + $0x28] sm:$0xf]
        %v2264 = vld [vmem:[%s1173 + $0x30] sm:$0xf]
        %v2265 = vld [vmem:[%s1173 + $0x34] sm:$0xf]
        %v2266 = vld [vmem:[%s1173 + $0x3c] sm:$0xf]
        %v2267 = vld [vmem:[%s1173 + $0x40] sm:$0xf]
        %v2268 = vld [vmem:[%s1173 + $0x48] sm:$0xf]
        %v2269 = vld [vmem:[%s1173 + $0x4c] sm:$0xf]
        %v2270 = vld [vmem:[%s1173 + $0x54] sm:$0xf]
        %v2271 = vld [vmem:[%s1173 + $0x58] sm:$0xf]
        %v2272 = vld [vmem:[%s1173 + $0x60] sm:$0xf]
        %v2273 = vld [vmem:[%s1173 + $0x64] sm:$0xf]
        %v2274 = vld [vmem:[%s1173 + $0x6c] sm:$0xf]
        %v2275 = vld [vmem:[%s1173 + $0x70] sm:$0xf]
        %v2276 = vld [vmem:[%s1173 + $0x78] sm:$0xf]
        %v2277 = vld [vmem:[%s1173 + $0x7c] sm:$0xf]
        %v2278 = vld [vmem:[%s1173 + $0x84] sm:$0xf]
        %v2279 = vld [vmem:[%s1173 + $0x88] sm:$0xf]
        %v2280 = vld [vmem:[%s1173 + $0x90] sm:$0xf]
        %v2281 = vld [vmem:[%s1173 + $0x94] sm:$0xf]
        %v2282 = vld [vmem:[%s1173 + $0x9c] sm:$0xf]
        %v2283 = vld [vmem:[%s1173 + $0xa0] sm:$0xf]
        %v2284 = vld [vmem:[%s1173 + $0xa8] sm:$0xf]
        %v2285 = vld [vmem:[%s1173 + $0xac] sm:$0xf]
        %v2286 = vld [vmem:[%s1173 + $0xb4] sm:$0xf]
        %v2287 = vld [vmem:[%s1173 + $0xb8] sm:$0xf]
        %2320 = vrot.lane.b32.xlu0 %v2256, 48
        %v2321 = vpop.permute.xlu0 %2320
        %2322 = vrot.lane.b32.xlu0 %v2257, 48
        %v2323 = vpop.permute.xlu0 %2322
        %2324 = vrot.lane.b32.xlu0 %v2258, 48
        %v2325 = vpop.permute.xlu0 %2324
        %2326 = vrot.lane.b32.xlu0 %v2259, 48
        %v2327 = vpop.permute.xlu0 %2326
        %2328 = vrot.lane.b32.xlu0 %v2260, 48
        %v2329 = vpop.permute.xlu0 %2328
        %2330 = vrot.lane.b32.xlu0 %v2261, 48
        %v2331 = vpop.permute.xlu0 %2330
        %2332 = vrot.lane.b32.xlu0 %v2262, 48
        %v2333 = vpop.permute.xlu0 %2332
        %2334 = vrot.lane.b32.xlu0 %v2263, 48
        %v2335 = vpop.permute.xlu0 %2334
        %2336 = vrot.lane.b32.xlu0 %v2264, 48
        %v2337 = vpop.permute.xlu0 %2336
        %2338 = vrot.lane.b32.xlu0 %v2265, 48
        %v2339 = vpop.permute.xlu0 %2338
        %2340 = vrot.lane.b32.xlu0 %v2266, 48
        %v2341 = vpop.permute.xlu0 %2340
        %2342 = vrot.lane.b32.xlu0 %v2267, 48
        %v2343 = vpop.permute.xlu0 %2342
        %2344 = vrot.lane.b32.xlu0 %v2268, 48
        %v2345 = vpop.permute.xlu0 %2344
        %2346 = vrot.lane.b32.xlu0 %v2269, 48
        %v2347 = vpop.permute.xlu0 %2346
        %2348 = vrot.lane.b32.xlu0 %v2270, 48
        %v2349 = vpop.permute.xlu0 %2348
        %2350 = vrot.lane.b32.xlu0 %v2271, 48
        %v2351 = vpop.permute.xlu0 %2350
        %2352 = vrot.lane.b32.xlu0 %v2272, 48
        %v2353 = vpop.permute.xlu0 %2352
        %2354 = vrot.lane.b32.xlu0 %v2273, 48
        %v2355 = vpop.permute.xlu0 %2354
        %2356 = vrot.lane.b32.xlu0 %v2274, 48
        %v2357 = vpop.permute.xlu0 %2356
        %2358 = vrot.lane.b32.xlu0 %v2275, 48
        %v2359 = vpop.permute.xlu0 %2358
        %2360 = vrot.lane.b32.xlu0 %v2276, 48
        %v2361 = vpop.permute.xlu0 %2360
        %2362 = vrot.lane.b32.xlu0 %v2277, 48
        %v2363 = vpop.permute.xlu0 %2362
        %2364 = vrot.lane.b32.xlu0 %v2278, 48
        %v2365 = vpop.permute.xlu0 %2364
        %2366 = vrot.lane.b32.xlu0 %v2279, 48
        %v2367 = vpop.permute.xlu0 %2366
        %2368 = vrot.lane.b32.xlu0 %v2280, 48
        %v2369 = vpop.permute.xlu0 %2368
        %2370 = vrot.lane.b32.xlu0 %v2281, 48
        %v2371 = vpop.permute.xlu0 %2370
        %2372 = vrot.lane.b32.xlu0 %v2282, 48
        %v2373 = vpop.permute.xlu0 %2372
        %2374 = vrot.lane.b32.xlu0 %v2283, 48
        %v2375 = vpop.permute.xlu0 %2374
        %2376 = vrot.lane.b32.xlu0 %v2284, 48
        %v2377 = vpop.permute.xlu0 %2376
        %2378 = vrot.lane.b32.xlu0 %v2285, 48
        %v2379 = vpop.permute.xlu0 %2378
        %2380 = vrot.lane.b32.xlu0 %v2286, 48
        %v2381 = vpop.permute.xlu0 %2380
        %2382 = vrot.lane.b32.xlu0 %v2287, 48
        %v2383 = vpop.permute.xlu0 %2382
        %vm2416 = vcmask 519552
        %2417 = vst.msk [vmem:[#allocation3] sm:$0xf] %vm2416, %v2321
        %2418 = vst.msk [vmem:[#allocation3 + $0x8] sm:$0xf] %vm2416, %v2323
        %2419 = vst.msk [vmem:[#allocation3 + $0x10] sm:$0xf] %vm2416, %v2325
        %2420 = vst.msk [vmem:[#allocation3 + $0x18] sm:$0xf] %vm2416, %v2327
        %2421 = vst.msk [vmem:[#allocation3 + $0x20] sm:$0xf] %vm2416, %v2329
        %2422 = vst.msk [vmem:[#allocation3 + $0x28] sm:$0xf] %vm2416, %v2331
        %2423 = vst.msk [vmem:[#allocation3 + $0x30] sm:$0xf] %vm2416, %v2333
        %2424 = vst.msk [vmem:[#allocation3 + $0x38] sm:$0xf] %vm2416, %v2335
        %2425 = vst.msk [vmem:[#allocation3 + $0x40] sm:$0xf] %vm2416, %v2337
        %2426 = vst.msk [vmem:[#allocation3 + $0x48] sm:$0xf] %vm2416, %v2339
        %2427 = vst.msk [vmem:[#allocation3 + $0x50] sm:$0xf] %vm2416, %v2341
        %2428 = vst.msk [vmem:[#allocation3 + $0x58] sm:$0xf] %vm2416, %v2343
        %2429 = vst.msk [vmem:[#allocation3 + $0x60] sm:$0xf] %vm2416, %v2345
        %2430 = vst.msk [vmem:[#allocation3 + $0x68] sm:$0xf] %vm2416, %v2347
        %2431 = vst.msk [vmem:[#allocation3 + $0x70] sm:$0xf] %vm2416, %v2349
        %2432 = vst.msk [vmem:[#allocation3 + $0x78] sm:$0xf] %vm2416, %v2351
        %2433 = vst.msk [vmem:[#allocation3 + $0x80] sm:$0xf] %vm2416, %v2353
        %2434 = vst.msk [vmem:[#allocation3 + $0x88] sm:$0xf] %vm2416, %v2355
        %2435 = vst.msk [vmem:[#allocation3 + $0x90] sm:$0xf] %vm2416, %v2357
        %2436 = vst.msk [vmem:[#allocation3 + $0x98] sm:$0xf] %vm2416, %v2359
        %2437 = vst.msk [vmem:[#allocation3 + $0xa0] sm:$0xf] %vm2416, %v2361
        %2438 = vst.msk [vmem:[#allocation3 + $0xa8] sm:$0xf] %vm2416, %v2363
        %2439 = vst.msk [vmem:[#allocation3 + $0xb0] sm:$0xf] %vm2416, %v2365
        %2440 = vst.msk [vmem:[#allocation3 + $0xb8] sm:$0xf] %vm2416, %v2367
        %2441 = vst.msk [vmem:[#allocation3 + $0xc0] sm:$0xf] %vm2416, %v2369
        %2442 = vst.msk [vmem:[#allocation3 + $0xc8] sm:$0xf] %vm2416, %v2371
        %2443 = vst.msk [vmem:[#allocation3 + $0xd0] sm:$0xf] %vm2416, %v2373
        %2444 = vst.msk [vmem:[#allocation3 + $0xd8] sm:$0xf] %vm2416, %v2375
        %2445 = vst.msk [vmem:[#allocation3 + $0xe0] sm:$0xf] %vm2416, %v2377
        %2446 = vst.msk [vmem:[#allocation3 + $0xe8] sm:$0xf] %vm2416, %v2379
        %2447 = vst.msk [vmem:[#allocation3 + $0xf0] sm:$0xf] %vm2416, %v2381
        %2448 = vst.msk [vmem:[#allocation3 + $0xf8] sm:$0xf] %vm2416, %v2383
        %v2449 = vld [vmem:[%s1173] sm:$0xf]
        %v2450 = vld [vmem:[%s1173 + $0x4] sm:$0xf]
        %v2451 = vld [vmem:[%s1173 + $0x8] sm:$0x1]
        %v2452 = vld [vmem:[%s1173 + $0xc] sm:$0xf]
        %v2453 = vld [vmem:[%s1173 + $0x10] sm:$0xf]
        %v2454 = vld [vmem:[%s1173 + $0x14] sm:$0x1]
        %v2455 = vld [vmem:[%s1173 + $0x18] sm:$0xf]
        %v2456 = vld [vmem:[%s1173 + $0x1c] sm:$0xf]
        %v2457 = vld [vmem:[%s1173 + $0x20] sm:$0x1]
        %v2458 = vld [vmem:[%s1173 + $0x24] sm:$0xf]
        %v2459 = vld [vmem:[%s1173 + $0x28] sm:$0xf]
        %v2460 = vld [vmem:[%s1173 + $0x2c] sm:$0x1]
        %v2461 = vld [vmem:[%s1173 + $0x30] sm:$0xf]
        %v2462 = vld [vmem:[%s1173 + $0x34] sm:$0xf]
        %v2463 = vld [vmem:[%s1173 + $0x38] sm:$0x1]
        %v2464 = vld [vmem:[%s1173 + $0x3c] sm:$0xf]
        %v2465 = vld [vmem:[%s1173 + $0x40] sm:$0xf]
        %v2466 = vld [vmem:[%s1173 + $0x44] sm:$0x1]
        %v2467 = vld [vmem:[%s1173 + $0x48] sm:$0xf]
        %v2468 = vld [vmem:[%s1173 + $0x4c] sm:$0xf]
        %v2469 = vld [vmem:[%s1173 + $0x50] sm:$0x1]
        %v2470 = vld [vmem:[%s1173 + $0x54] sm:$0xf]
        %v2471 = vld [vmem:[%s1173 + $0x58] sm:$0xf]
        %v2472 = vld [vmem:[%s1173 + $0x5c] sm:$0x1]
        %v2473 = vld [vmem:[%s1173 + $0x60] sm:$0xf]
        %v2474 = vld [vmem:[%s1173 + $0x64] sm:$0xf]
        %v2475 = vld [vmem:[%s1173 + $0x68] sm:$0x1]
        %v2476 = vld [vmem:[%s1173 + $0x6c] sm:$0xf]
        %v2477 = vld [vmem:[%s1173 + $0x70] sm:$0xf]
        %v2478 = vld [vmem:[%s1173 + $0x74] sm:$0x1]
        %v2479 = vld [vmem:[%s1173 + $0x78] sm:$0xf]
        %v2480 = vld [vmem:[%s1173 + $0x7c] sm:$0xf]
        %v2481 = vld [vmem:[%s1173 + $0x80] sm:$0x1]
        %v2482 = vld [vmem:[%s1173 + $0x84] sm:$0xf]
        %v2483 = vld [vmem:[%s1173 + $0x88] sm:$0xf]
        %v2484 = vld [vmem:[%s1173 + $0x8c] sm:$0x1]
        %v2485 = vld [vmem:[%s1173 + $0x90] sm:$0xf]
        %v2486 = vld [vmem:[%s1173 + $0x94] sm:$0xf]
        %v2487 = vld [vmem:[%s1173 + $0x98] sm:$0x1]
        %v2488 = vld [vmem:[%s1173 + $0x9c] sm:$0xf]
        %v2489 = vld [vmem:[%s1173 + $0xa0] sm:$0xf]
        %v2490 = vld [vmem:[%s1173 + $0xa4] sm:$0x1]
        %v2491 = vld [vmem:[%s1173 + $0xa8] sm:$0xf]
        %v2492 = vld [vmem:[%s1173 + $0xac] sm:$0xf]
        %v2493 = vld [vmem:[%s1173 + $0xb0] sm:$0x1]
        %v2494 = vld [vmem:[%s1173 + $0xb4] sm:$0xf]
        %v2495 = vld [vmem:[%s1173 + $0xb8] sm:$0xf]
        %v2496 = vld [vmem:[%s1173 + $0xbc] sm:$0x1]
        %v2498 = vshrl.u32 %v2449, 16
        %v2500 = vrot.slane %v2498, 4
        %v2501 = vshll.u32 %v2449, 16
        %v2503 = vrot.slane %v2501, 5
        %v2504 = vor.u32 %v2500, %v2503
        %v2505 = vrot.slane %v2504, 4
        %v2507 = vshll.u32 %v2450, 16
        %v2509 = vrot.slane %v2507, 5
        %v2510 = vsel %vm1402, %v2505, %v2509
        %v2511 = vshrl.u32 %v2450, 16
        %v2513 = vrot.slane %v2511, 4
        %v2514 = vor.u32 %v2513, %v2509
        %v2515 = vrot.slane %v2514, 4
        %v2517 = vshll.u32 %v2451, 16
        %v2519 = vrot.slane %v2517, 5
        %v2520 = vsel %vm1402, %v2515, %v2519
        %v2522 = vshrl.u32 %v2452, 16
        %v2524 = vrot.slane %v2522, 4
        %v2525 = vshll.u32 %v2452, 16
        %v2527 = vrot.slane %v2525, 5
        %v2528 = vor.u32 %v2524, %v2527
        %v2529 = vrot.slane %v2528, 4
        %v2531 = vshll.u32 %v2453, 16
        %v2533 = vrot.slane %v2531, 5
        %v2534 = vsel %vm1402, %v2529, %v2533
        %v2535 = vshrl.u32 %v2453, 16
        %v2537 = vrot.slane %v2535, 4
        %v2538 = vor.u32 %v2537, %v2533
        %v2539 = vrot.slane %v2538, 4
        %v2541 = vshll.u32 %v2454, 16
        %v2543 = vrot.slane %v2541, 5
        %v2544 = vsel %vm1402, %v2539, %v2543
        %v2546 = vshrl.u32 %v2455, 16
        %v2548 = vrot.slane %v2546, 4
        %v2549 = vshll.u32 %v2455, 16
        %v2551 = vrot.slane %v2549, 5
        %v2552 = vor.u32 %v2548, %v2551
        %v2553 = vrot.slane %v2552, 4
        %v2555 = vshll.u32 %v2456, 16
        %v2557 = vrot.slane %v2555, 5
        %v2558 = vsel %vm1402, %v2553, %v2557
        %v2559 = vshrl.u32 %v2456, 16
        %v2561 = vrot.slane %v2559, 4
        %v2562 = vor.u32 %v2561, %v2557
        %v2563 = vrot.slane %v2562, 4
        %v2565 = vshll.u32 %v2457, 16
        %v2567 = vrot.slane %v2565, 5
        %v2568 = vsel %vm1402, %v2563, %v2567
        %v2570 = vshrl.u32 %v2458, 16
        %v2572 = vrot.slane %v2570, 4
        %v2573 = vshll.u32 %v2458, 16
        %v2575 = vrot.slane %v2573, 5
        %v2576 = vor.u32 %v2572, %v2575
        %v2577 = vrot.slane %v2576, 4
        %v2579 = vshll.u32 %v2459, 16
        %v2581 = vrot.slane %v2579, 5
        %v2582 = vsel %vm1402, %v2577, %v2581
        %v2583 = vshrl.u32 %v2459, 16
        %v2585 = vrot.slane %v2583, 4
        %v2586 = vor.u32 %v2585, %v2581
        %v2587 = vrot.slane %v2586, 4
        %v2589 = vshll.u32 %v2460, 16
        %v2591 = vrot.slane %v2589, 5
        %v2592 = vsel %vm1402, %v2587, %v2591
        %v2594 = vshrl.u32 %v2461, 16
        %v2596 = vrot.slane %v2594, 4
        %v2597 = vshll.u32 %v2461, 16
        %v2599 = vrot.slane %v2597, 5
        %v2600 = vor.u32 %v2596, %v2599
        %v2601 = vrot.slane %v2600, 4
        %v2603 = vshll.u32 %v2462, 16
        %v2605 = vrot.slane %v2603, 5
        %v2606 = vsel %vm1402, %v2601, %v2605
        %v2607 = vshrl.u32 %v2462, 16
        %v2609 = vrot.slane %v2607, 4
        %v2610 = vor.u32 %v2609, %v2605
        %v2611 = vrot.slane %v2610, 4
        %v2613 = vshll.u32 %v2463, 16
        %v2615 = vrot.slane %v2613, 5
        %v2616 = vsel %vm1402, %v2611, %v2615
        %v2618 = vshrl.u32 %v2464, 16
        %v2620 = vrot.slane %v2618, 4
        %v2621 = vshll.u32 %v2464, 16
        %v2623 = vrot.slane %v2621, 5
        %v2624 = vor.u32 %v2620, %v2623
        %v2625 = vrot.slane %v2624, 4
        %v2627 = vshll.u32 %v2465, 16
        %v2629 = vrot.slane %v2627, 5
        %v2630 = vsel %vm1402, %v2625, %v2629
        %v2631 = vshrl.u32 %v2465, 16
        %v2633 = vrot.slane %v2631, 4
        %v2634 = vor.u32 %v2633, %v2629
        %v2635 = vrot.slane %v2634, 4
        %v2637 = vshll.u32 %v2466, 16
        %v2639 = vrot.slane %v2637, 5
        %v2640 = vsel %vm1402, %v2635, %v2639
        %v2642 = vshrl.u32 %v2467, 16
        %v2644 = vrot.slane %v2642, 4
        %v2645 = vshll.u32 %v2467, 16
        %v2647 = vrot.slane %v2645, 5
        %v2648 = vor.u32 %v2644, %v2647
        %v2649 = vrot.slane %v2648, 4
        %v2651 = vshll.u32 %v2468, 16
        %v2653 = vrot.slane %v2651, 5
        %v2654 = vsel %vm1402, %v2649, %v2653
        %v2655 = vshrl.u32 %v2468, 16
        %v2657 = vrot.slane %v2655, 4
        %v2658 = vor.u32 %v2657, %v2653
        %v2659 = vrot.slane %v2658, 4
        %v2661 = vshll.u32 %v2469, 16
        %v2663 = vrot.slane %v2661, 5
        %v2664 = vsel %vm1402, %v2659, %v2663
        %v2666 = vshrl.u32 %v2470, 16
        %v2668 = vrot.slane %v2666, 4
        %v2669 = vshll.u32 %v2470, 16
        %v2671 = vrot.slane %v2669, 5
        %v2672 = vor.u32 %v2668, %v2671
        %v2673 = vrot.slane %v2672, 4
        %v2675 = vshll.u32 %v2471, 16
        %v2677 = vrot.slane %v2675, 5
        %v2678 = vsel %vm1402, %v2673, %v2677
        %v2679 = vshrl.u32 %v2471, 16
        %v2681 = vrot.slane %v2679, 4
        %v2682 = vor.u32 %v2681, %v2677
        %v2683 = vrot.slane %v2682, 4
        %v2685 = vshll.u32 %v2472, 16
        %v2687 = vrot.slane %v2685, 5
        %v2688 = vsel %vm1402, %v2683, %v2687
        %v2690 = vshrl.u32 %v2473, 16
        %v2692 = vrot.slane %v2690, 4
        %v2693 = vshll.u32 %v2473, 16
        %v2695 = vrot.slane %v2693, 5
        %v2696 = vor.u32 %v2692, %v2695
        %v2697 = vrot.slane %v2696, 4
        %v2699 = vshll.u32 %v2474, 16
        %v2701 = vrot.slane %v2699, 5
        %v2702 = vsel %vm1402, %v2697, %v2701
        %v2703 = vshrl.u32 %v2474, 16
        %v2705 = vrot.slane %v2703, 4
        %v2706 = vor.u32 %v2705, %v2701
        %v2707 = vrot.slane %v2706, 4
        %v2709 = vshll.u32 %v2475, 16
        %v2711 = vrot.slane %v2709, 5
        %v2712 = vsel %vm1402, %v2707, %v2711
        %v2714 = vshrl.u32 %v2476, 16
        %v2716 = vrot.slane %v2714, 4
        %v2717 = vshll.u32 %v2476, 16
        %v2719 = vrot.slane %v2717, 5
        %v2720 = vor.u32 %v2716, %v2719
        %v2721 = vrot.slane %v2720, 4
        %v2723 = vshll.u32 %v2477, 16
        %v2725 = vrot.slane %v2723, 5
        %v2726 = vsel %vm1402, %v2721, %v2725
        %v2727 = vshrl.u32 %v2477, 16
        %v2729 = vrot.slane %v2727, 4
        %v2730 = vor.u32 %v2729, %v2725
        %v2731 = vrot.slane %v2730, 4
        %v2733 = vshll.u32 %v2478, 16
        %v2735 = vrot.slane %v2733, 5
        %v2736 = vsel %vm1402, %v2731, %v2735
        %v2738 = vshrl.u32 %v2479, 16
        %v2740 = vrot.slane %v2738, 4
        %v2741 = vshll.u32 %v2479, 16
        %v2743 = vrot.slane %v2741, 5
        %v2744 = vor.u32 %v2740, %v2743
        %v2745 = vrot.slane %v2744, 4
        %v2747 = vshll.u32 %v2480, 16
        %v2749 = vrot.slane %v2747, 5
        %v2750 = vsel %vm1402, %v2745, %v2749
        %v2751 = vshrl.u32 %v2480, 16
        %v2753 = vrot.slane %v2751, 4
        %v2754 = vor.u32 %v2753, %v2749
        %v2755 = vrot.slane %v2754, 4
        %v2757 = vshll.u32 %v2481, 16
        %v2759 = vrot.slane %v2757, 5
        %v2760 = vsel %vm1402, %v2755, %v2759
        %v2762 = vshrl.u32 %v2482, 16
        %v2764 = vrot.slane %v2762, 4
        %v2765 = vshll.u32 %v2482, 16
        %v2767 = vrot.slane %v2765, 5
        %v2768 = vor.u32 %v2764, %v2767
        %v2769 = vrot.slane %v2768, 4
        %v2771 = vshll.u32 %v2483, 16
        %v2773 = vrot.slane %v2771, 5
        %v2774 = vsel %vm1402, %v2769, %v2773
        %v2775 = vshrl.u32 %v2483, 16
        %v2777 = vrot.slane %v2775, 4
        %v2778 = vor.u32 %v2777, %v2773
        %v2779 = vrot.slane %v2778, 4
        %v2781 = vshll.u32 %v2484, 16
        %v2783 = vrot.slane %v2781, 5
        %v2784 = vsel %vm1402, %v2779, %v2783
        %v2786 = vshrl.u32 %v2485, 16
        %v2788 = vrot.slane %v2786, 4
        %v2789 = vshll.u32 %v2485, 16
        %v2791 = vrot.slane %v2789, 5
        %v2792 = vor.u32 %v2788, %v2791
        %v2793 = vrot.slane %v2792, 4
        %v2795 = vshll.u32 %v2486, 16
        %v2797 = vrot.slane %v2795, 5
        %v2798 = vsel %vm1402, %v2793, %v2797
        %v2799 = vshrl.u32 %v2486, 16
        %v2801 = vrot.slane %v2799, 4
        %v2802 = vor.u32 %v2801, %v2797
        %v2803 = vrot.slane %v2802, 4
        %v2805 = vshll.u32 %v2487, 16
        %v2807 = vrot.slane %v2805, 5
        %v2808 = vsel %vm1402, %v2803, %v2807
        %v2810 = vshrl.u32 %v2488, 16
        %v2812 = vrot.slane %v2810, 4
        %v2813 = vshll.u32 %v2488, 16
        %v2815 = vrot.slane %v2813, 5
        %v2816 = vor.u32 %v2812, %v2815
        %v2817 = vrot.slane %v2816, 4
        %v2819 = vshll.u32 %v2489, 16
        %v2821 = vrot.slane %v2819, 5
        %v2822 = vsel %vm1402, %v2817, %v2821
        %v2823 = vshrl.u32 %v2489, 16
        %v2825 = vrot.slane %v2823, 4
        %v2826 = vor.u32 %v2825, %v2821
        %v2827 = vrot.slane %v2826, 4
        %v2829 = vshll.u32 %v2490, 16
        %v2831 = vrot.slane %v2829, 5
        %v2832 = vsel %vm1402, %v2827, %v2831
        %v2834 = vshrl.u32 %v2491, 16
        %v2836 = vrot.slane %v2834, 4
        %v2837 = vshll.u32 %v2491, 16
        %v2839 = vrot.slane %v2837, 5
        %v2840 = vor.u32 %v2836, %v2839
        %v2841 = vrot.slane %v2840, 4
        %v2843 = vshll.u32 %v2492, 16
        %v2845 = vrot.slane %v2843, 5
        %v2846 = vsel %vm1402, %v2841, %v2845
        %v2847 = vshrl.u32 %v2492, 16
        %v2849 = vrot.slane %v2847, 4
        %v2850 = vor.u32 %v2849, %v2845
        %v2851 = vrot.slane %v2850, 4
        %v2853 = vshll.u32 %v2493, 16
        %v2855 = vrot.slane %v2853, 5
        %v2856 = vsel %vm1402, %v2851, %v2855
        %v2858 = vshrl.u32 %v2494, 16
        %v2860 = vrot.slane %v2858, 4
        %v2861 = vshll.u32 %v2494, 16
        %v2863 = vrot.slane %v2861, 5
        %v2864 = vor.u32 %v2860, %v2863
        %v2865 = vrot.slane %v2864, 4
        %v2867 = vshll.u32 %v2495, 16
        %v2869 = vrot.slane %v2867, 5
        %v2870 = vsel %vm1402, %v2865, %v2869
        %v2871 = vshrl.u32 %v2495, 16
        %v2873 = vrot.slane %v2871, 4
        %v2874 = vor.u32 %v2873, %v2869
        %v2875 = vrot.slane %v2874, 4
        %v2877 = vshll.u32 %v2496, 16
        %v2879 = vrot.slane %v2877, 5
        %v2880 = vsel %vm1402, %v2875, %v2879
        %2881 = vrot.lane.b32.xlu0 %v2510, 64
        %v2882 = vpop.permute.xlu0 %2881
        %2883 = vrot.lane.b32.xlu0 %v2520, 64
        %v2884 = vpop.permute.xlu0 %2883
        %2885 = vrot.lane.b32.xlu0 %v2534, 64
        %v2886 = vpop.permute.xlu0 %2885
        %2887 = vrot.lane.b32.xlu0 %v2544, 64
        %v2888 = vpop.permute.xlu0 %2887
        %2889 = vrot.lane.b32.xlu0 %v2558, 64
        %v2890 = vpop.permute.xlu0 %2889
        %2891 = vrot.lane.b32.xlu0 %v2568, 64
        %v2892 = vpop.permute.xlu0 %2891
        %2893 = vrot.lane.b32.xlu0 %v2582, 64
        %v2894 = vpop.permute.xlu0 %2893
        %2895 = vrot.lane.b32.xlu0 %v2592, 64
        %v2896 = vpop.permute.xlu0 %2895
        %2897 = vrot.lane.b32.xlu0 %v2606, 64
        %v2898 = vpop.permute.xlu0 %2897
        %2899 = vrot.lane.b32.xlu0 %v2616, 64
        %v2900 = vpop.permute.xlu0 %2899
        %2901 = vrot.lane.b32.xlu0 %v2630, 64
        %v2902 = vpop.permute.xlu0 %2901
        %2903 = vrot.lane.b32.xlu0 %v2640, 64
        %v2904 = vpop.permute.xlu0 %2903
        %2905 = vrot.lane.b32.xlu0 %v2654, 64
        %v2906 = vpop.permute.xlu0 %2905
        %2907 = vrot.lane.b32.xlu0 %v2664, 64
        %v2908 = vpop.permute.xlu0 %2907
        %2909 = vrot.lane.b32.xlu0 %v2678, 64
        %v2910 = vpop.permute.xlu0 %2909
        %2911 = vrot.lane.b32.xlu0 %v2688, 64
        %v2912 = vpop.permute.xlu0 %2911
        %2913 = vrot.lane.b32.xlu0 %v2702, 64
        %v2914 = vpop.permute.xlu0 %2913
        %2915 = vrot.lane.b32.xlu0 %v2712, 64
        %v2916 = vpop.permute.xlu0 %2915
        %2917 = vrot.lane.b32.xlu0 %v2726, 64
        %v2918 = vpop.permute.xlu0 %2917
        %2919 = vrot.lane.b32.xlu0 %v2736, 64
        %v2920 = vpop.permute.xlu0 %2919
        %2921 = vrot.lane.b32.xlu0 %v2750, 64
        %v2922 = vpop.permute.xlu0 %2921
        %2923 = vrot.lane.b32.xlu0 %v2760, 64
        %v2924 = vpop.permute.xlu0 %2923
        %2925 = vrot.lane.b32.xlu0 %v2774, 64
        %v2926 = vpop.permute.xlu0 %2925
        %2927 = vrot.lane.b32.xlu0 %v2784, 64
        %v2928 = vpop.permute.xlu0 %2927
        %2929 = vrot.lane.b32.xlu0 %v2798, 64
        %v2930 = vpop.permute.xlu0 %2929
        %2931 = vrot.lane.b32.xlu0 %v2808, 64
        %v2932 = vpop.permute.xlu0 %2931
        %2933 = vrot.lane.b32.xlu0 %v2822, 64
        %v2934 = vpop.permute.xlu0 %2933
        %2935 = vrot.lane.b32.xlu0 %v2832, 64
        %v2936 = vpop.permute.xlu0 %2935
        %2937 = vrot.lane.b32.xlu0 %v2846, 64
        %v2938 = vpop.permute.xlu0 %2937
        %2939 = vrot.lane.b32.xlu0 %v2856, 64
        %v2940 = vpop.permute.xlu0 %2939
        %2941 = vrot.lane.b32.xlu0 %v2870, 64
        %v2942 = vpop.permute.xlu0 %2941
        %2943 = vrot.lane.b32.xlu0 %v2880, 64
        %v2944 = vpop.permute.xlu0 %2943
        %vm2977 = vcmask 650752
        %2978 = vst.msk [vmem:[#allocation3] sm:$0xf] %vm2977, %v2882
        %2979 = vst.msk [vmem:[#allocation3 + $0x8] sm:$0xf] %vm2977, %v2884
        %2980 = vst.msk [vmem:[#allocation3 + $0x10] sm:$0xf] %vm2977, %v2886
        %2981 = vst.msk [vmem:[#allocation3 + $0x18] sm:$0xf] %vm2977, %v2888
        %2982 = vst.msk [vmem:[#allocation3 + $0x20] sm:$0xf] %vm2977, %v2890
        %2983 = vst.msk [vmem:[#allocation3 + $0x28] sm:$0xf] %vm2977, %v2892
        %2984 = vst.msk [vmem:[#allocation3 + $0x30] sm:$0xf] %vm2977, %v2894
        %2985 = vst.msk [vmem:[#allocation3 + $0x38] sm:$0xf] %vm2977, %v2896
        %2986 = vst.msk [vmem:[#allocation3 + $0x40] sm:$0xf] %vm2977, %v2898
        %2987 = vst.msk [vmem:[#allocation3 + $0x48] sm:$0xf] %vm2977, %v2900
        %2988 = vst.msk [vmem:[#allocation3 + $0x50] sm:$0xf] %vm2977, %v2902
        %2989 = vst.msk [vmem:[#allocation3 + $0x58] sm:$0xf] %vm2977, %v2904
        %2990 = vst.msk [vmem:[#allocation3 + $0x60] sm:$0xf] %vm2977, %v2906
        %2991 = vst.msk [vmem:[#allocation3 + $0x68] sm:$0xf] %vm2977, %v2908
        %2992 = vst.msk [vmem:[#allocation3 + $0x70] sm:$0xf] %vm2977, %v2910
        %2993 = vst.msk [vmem:[#allocation3 + $0x78] sm:$0xf] %vm2977, %v2912
        %2994 = vst.msk [vmem:[#allocation3 + $0x80] sm:$0xf] %vm2977, %v2914
        %2995 = vst.msk [vmem:[#allocation3 + $0x88] sm:$0xf] %vm2977, %v2916
        %2996 = vst.msk [vmem:[#allocation3 + $0x90] sm:$0xf] %vm2977, %v2918
        %2997 = vst.msk [vmem:[#allocation3 + $0x98] sm:$0xf] %vm2977, %v2920
        %2998 = vst.msk [vmem:[#allocation3 + $0xa0] sm:$0xf] %vm2977, %v2922
        %2999 = vst.msk [vmem:[#allocation3 + $0xa8] sm:$0xf] %vm2977, %v2924
        %3000 = vst.msk [vmem:[#allocation3 + $0xb0] sm:$0xf] %vm2977, %v2926
        %3001 = vst.msk [vmem:[#allocation3 + $0xb8] sm:$0xf] %vm2977, %v2928
        %3002 = vst.msk [vmem:[#allocation3 + $0xc0] sm:$0xf] %vm2977, %v2930
        %3003 = vst.msk [vmem:[#allocation3 + $0xc8] sm:$0xf] %vm2977, %v2932
        %3004 = vst.msk [vmem:[#allocation3 + $0xd0] sm:$0xf] %vm2977, %v2934
        %3005 = vst.msk [vmem:[#allocation3 + $0xd8] sm:$0xf] %vm2977, %v2936
        %3006 = vst.msk [vmem:[#allocation3 + $0xe0] sm:$0xf] %vm2977, %v2938
        %3007 = vst.msk [vmem:[#allocation3 + $0xe8] sm:$0xf] %vm2977, %v2940
        %3008 = vst.msk [vmem:[#allocation3 + $0xf0] sm:$0xf] %vm2977, %v2942
        %3009 = vst.msk [vmem:[#allocation3 + $0xf8] sm:$0xf] %vm2977, %v2944
        %v3010 = vld [vmem:[%s1173] sm:$0xe]
        %v3011 = vld [vmem:[%s1173 + $0x4] sm:$0xf]
        %v3012 = vld [vmem:[%s1173 + $0x8] sm:$0x1]
        %v3013 = vld [vmem:[%s1173 + $0xc] sm:$0xe]
        %v3014 = vld [vmem:[%s1173 + $0x10] sm:$0xf]
        %v3015 = vld [vmem:[%s1173 + $0x14] sm:$0x1]
        %v3016 = vld [vmem:[%s1173 + $0x18] sm:$0xe]
        %v3017 = vld [vmem:[%s1173 + $0x1c] sm:$0xf]
        %v3018 = vld [vmem:[%s1173 + $0x20] sm:$0x1]
        %v3019 = vld [vmem:[%s1173 + $0x24] sm:$0xe]
        %v3020 = vld [vmem:[%s1173 + $0x28] sm:$0xf]
        %v3021 = vld [vmem:[%s1173 + $0x2c] sm:$0x1]
        %v3022 = vld [vmem:[%s1173 + $0x30] sm:$0xe]
        %v3023 = vld [vmem:[%s1173 + $0x34] sm:$0xf]
        %v3024 = vld [vmem:[%s1173 + $0x38] sm:$0x1]
        %v3025 = vld [vmem:[%s1173 + $0x3c] sm:$0xe]
        %v3026 = vld [vmem:[%s1173 + $0x40] sm:$0xf]
        %v3027 = vld [vmem:[%s1173 + $0x44] sm:$0x1]
        %v3028 = vld [vmem:[%s1173 + $0x48] sm:$0xe]
        %v3029 = vld [vmem:[%s1173 + $0x4c] sm:$0xf]
        %v3030 = vld [vmem:[%s1173 + $0x50] sm:$0x1]
        %v3031 = vld [vmem:[%s1173 + $0x54] sm:$0xe]
        %v3032 = vld [vmem:[%s1173 + $0x58] sm:$0xf]
        %v3033 = vld [vmem:[%s1173 + $0x5c] sm:$0x1]
        %v3034 = vld [vmem:[%s1173 + $0x60] sm:$0xe]
        %v3035 = vld [vmem:[%s1173 + $0x64] sm:$0xf]
        %v3036 = vld [vmem:[%s1173 + $0x68] sm:$0x1]
        %v3037 = vld [vmem:[%s1173 + $0x6c] sm:$0xe]
        %v3038 = vld [vmem:[%s1173 + $0x70] sm:$0xf]
        %v3039 = vld [vmem:[%s1173 + $0x74] sm:$0x1]
        %v3040 = vld [vmem:[%s1173 + $0x78] sm:$0xe]
        %v3041 = vld [vmem:[%s1173 + $0x7c] sm:$0xf]
        %v3042 = vld [vmem:[%s1173 + $0x80] sm:$0x1]
        %v3043 = vld [vmem:[%s1173 + $0x84] sm:$0xe]
        %v3044 = vld [vmem:[%s1173 + $0x88] sm:$0xf]
        %v3045 = vld [vmem:[%s1173 + $0x8c] sm:$0x1]
        %v3046 = vld [vmem:[%s1173 + $0x90] sm:$0xe]
        %v3047 = vld [vmem:[%s1173 + $0x94] sm:$0xf]
        %v3048 = vld [vmem:[%s1173 + $0x98] sm:$0x1]
        %v3049 = vld [vmem:[%s1173 + $0x9c] sm:$0xe]
        %v3050 = vld [vmem:[%s1173 + $0xa0] sm:$0xf]
        %v3051 = vld [vmem:[%s1173 + $0xa4] sm:$0x1]
        %v3052 = vld [vmem:[%s1173 + $0xa8] sm:$0xe]
        %v3053 = vld [vmem:[%s1173 + $0xac] sm:$0xf]
        %v3054 = vld [vmem:[%s1173 + $0xb0] sm:$0x1]
        %v3055 = vld [vmem:[%s1173 + $0xb4] sm:$0xe]
        %v3056 = vld [vmem:[%s1173 + $0xb8] sm:$0xf]
        %v3057 = vld [vmem:[%s1173 + $0xbc] sm:$0x1]
        %v3106 = vrot.slane %v3010, 5
        %v3107 = vrot.slane %v3106, 4
        %v3108 = vrot.slane %v3011, 5
        %v3109 = vsel %vm2014, %v3107, %v3108
        %v3110 = vrot.slane %v3108, 4
        %v3111 = vrot.slane %v3012, 5
        %v3112 = vsel %vm2014, %v3110, %v3111
        %v3113 = vrot.slane %v3013, 5
        %v3114 = vrot.slane %v3113, 4
        %v3115 = vrot.slane %v3014, 5
        %v3116 = vsel %vm2014, %v3114, %v3115
        %v3117 = vrot.slane %v3115, 4
        %v3118 = vrot.slane %v3015, 5
        %v3119 = vsel %vm2014, %v3117, %v3118
        %v3120 = vrot.slane %v3016, 5
        %v3121 = vrot.slane %v3120, 4
        %v3122 = vrot.slane %v3017, 5
        %v3123 = vsel %vm2014, %v3121, %v3122
        %v3124 = vrot.slane %v3122, 4
        %v3125 = vrot.slane %v3018, 5
        %v3126 = vsel %vm2014, %v3124, %v3125
        %v3127 = vrot.slane %v3019, 5
        %v3128 = vrot.slane %v3127, 4
        %v3129 = vrot.slane %v3020, 5
        %v3130 = vsel %vm2014, %v3128, %v3129
        %v3131 = vrot.slane %v3129, 4
        %v3132 = vrot.slane %v3021, 5
        %v3133 = vsel %vm2014, %v3131, %v3132
        %v3134 = vrot.slane %v3022, 5
        %v3135 = vrot.slane %v3134, 4
        %v3136 = vrot.slane %v3023, 5
        %v3137 = vsel %vm2014, %v3135, %v3136
        %v3138 = vrot.slane %v3136, 4
        %v3139 = vrot.slane %v3024, 5
        %v3140 = vsel %vm2014, %v3138, %v3139
        %v3141 = vrot.slane %v3025, 5
        %v3142 = vrot.slane %v3141, 4
        %v3143 = vrot.slane %v3026, 5
        %v3144 = vsel %vm2014, %v3142, %v3143
        %v3145 = vrot.slane %v3143, 4
        %v3146 = vrot.slane %v3027, 5
        %v3147 = vsel %vm2014, %v3145, %v3146
        %v3148 = vrot.slane %v3028, 5
        %v3149 = vrot.slane %v3148, 4
        %v3150 = vrot.slane %v3029, 5
        %v3151 = vsel %vm2014, %v3149, %v3150
        %v3152 = vrot.slane %v3150, 4
        %v3153 = vrot.slane %v3030, 5
        %v3154 = vsel %vm2014, %v3152, %v3153
        %v3155 = vrot.slane %v3031, 5
        %v3156 = vrot.slane %v3155, 4
        %v3157 = vrot.slane %v3032, 5
        %v3158 = vsel %vm2014, %v3156, %v3157
        %v3159 = vrot.slane %v3157, 4
        %v3160 = vrot.slane %v3033, 5
        %v3161 = vsel %vm2014, %v3159, %v3160
        %v3162 = vrot.slane %v3034, 5
        %v3163 = vrot.slane %v3162, 4
        %v3164 = vrot.slane %v3035, 5
        %v3165 = vsel %vm2014, %v3163, %v3164
        %v3166 = vrot.slane %v3164, 4
        %v3167 = vrot.slane %v3036, 5
        %v3168 = vsel %vm2014, %v3166, %v3167
        %v3169 = vrot.slane %v3037, 5
        %v3170 = vrot.slane %v3169, 4
        %v3171 = vrot.slane %v3038, 5
        %v3172 = vsel %vm2014, %v3170, %v3171
        %v3173 = vrot.slane %v3171, 4
        %v3174 = vrot.slane %v3039, 5
        %v3175 = vsel %vm2014, %v3173, %v3174
        %v3176 = vrot.slane %v3040, 5
        %v3177 = vrot.slane %v3176, 4
        %v3178 = vrot.slane %v3041, 5
        %v3179 = vsel %vm2014, %v3177, %v3178
        %v3180 = vrot.slane %v3178, 4
        %v3181 = vrot.slane %v3042, 5
        %v3182 = vsel %vm2014, %v3180, %v3181
        %v3183 = vrot.slane %v3043, 5
        %v3184 = vrot.slane %v3183, 4
        %v3185 = vrot.slane %v3044, 5
        %v3186 = vsel %vm2014, %v3184, %v3185
        %v3187 = vrot.slane %v3185, 4
        %v3188 = vrot.slane %v3045, 5
        %v3189 = vsel %vm2014, %v3187, %v3188
        %v3190 = vrot.slane %v3046, 5
        %v3191 = vrot.slane %v3190, 4
        %v3192 = vrot.slane %v3047, 5
        %v3193 = vsel %vm2014, %v3191, %v3192
        %v3194 = vrot.slane %v3192, 4
        %v3195 = vrot.slane %v3048, 5
        %v3196 = vsel %vm2014, %v3194, %v3195
        %v3197 = vrot.slane %v3049, 5
        %v3198 = vrot.slane %v3197, 4
        %v3199 = vrot.slane %v3050, 5
        %v3200 = vsel %vm2014, %v3198, %v3199
        %v3201 = vrot.slane %v3199, 4
        %v3202 = vrot.slane %v3051, 5
        %v3203 = vsel %vm2014, %v3201, %v3202
        %v3204 = vrot.slane %v3052, 5
        %v3205 = vrot.slane %v3204, 4
        %v3206 = vrot.slane %v3053, 5
        %v3207 = vsel %vm2014, %v3205, %v3206
        %v3208 = vrot.slane %v3206, 4
        %v3209 = vrot.slane %v3054, 5
        %v3210 = vsel %vm2014, %v3208, %v3209
        %v3211 = vrot.slane %v3055, 5
        %v3212 = vrot.slane %v3211, 4
        %v3213 = vrot.slane %v3056, 5
        %v3214 = vsel %vm2014, %v3212, %v3213
        %v3215 = vrot.slane %v3213, 4
        %v3216 = vrot.slane %v3057, 5
        %v3217 = vsel %vm2014, %v3215, %v3216
        %3218 = vrot.lane.b32.xlu0 %v3109, 80
        %v3219 = vpop.permute.xlu0 %3218
        %3220 = vrot.lane.b32.xlu0 %v3112, 80
        %v3221 = vpop.permute.xlu0 %3220
        %3222 = vrot.lane.b32.xlu0 %v3116, 80
        %v3223 = vpop.permute.xlu0 %3222
        %3224 = vrot.lane.b32.xlu0 %v3119, 80
        %v3225 = vpop.permute.xlu0 %3224
        %3226 = vrot.lane.b32.xlu0 %v3123, 80
        %v3227 = vpop.permute.xlu0 %3226
        %3228 = vrot.lane.b32.xlu0 %v3126, 80
        %v3229 = vpop.permute.xlu0 %3228
        %3230 = vrot.lane.b32.xlu0 %v3130, 80
        %v3231 = vpop.permute.xlu0 %3230
        %3232 = vrot.lane.b32.xlu0 %v3133, 80
        %v3233 = vpop.permute.xlu0 %3232
        %3234 = vrot.lane.b32.xlu0 %v3137, 80
        %v3235 = vpop.permute.xlu0 %3234
        %3236 = vrot.lane.b32.xlu0 %v3140, 80
        %v3237 = vpop.permute.xlu0 %3236
        %3238 = vrot.lane.b32.xlu0 %v3144, 80
        %v3239 = vpop.permute.xlu0 %3238
        %3240 = vrot.lane.b32.xlu0 %v3147, 80
        %v3241 = vpop.permute.xlu0 %3240
        %3242 = vrot.lane.b32.xlu0 %v3151, 80
        %v3243 = vpop.permute.xlu0 %3242
        %3244 = vrot.lane.b32.xlu0 %v3154, 80
        %v3245 = vpop.permute.xlu0 %3244
        %3246 = vrot.lane.b32.xlu0 %v3158, 80
        %v3247 = vpop.permute.xlu0 %3246
        %3248 = vrot.lane.b32.xlu0 %v3161, 80
        %v3249 = vpop.permute.xlu0 %3248
        %3250 = vrot.lane.b32.xlu0 %v3165, 80
        %v3251 = vpop.permute.xlu0 %3250
        %3252 = vrot.lane.b32.xlu0 %v3168, 80
        %v3253 = vpop.permute.xlu0 %3252
        %3254 = vrot.lane.b32.xlu0 %v3172, 80
        %v3255 = vpop.permute.xlu0 %3254
        %3256 = vrot.lane.b32.xlu0 %v3175, 80
        %v3257 = vpop.permute.xlu0 %3256
        %3258 = vrot.lane.b32.xlu0 %v3179, 80
        %v3259 = vpop.permute.xlu0 %3258
        %3260 = vrot.lane.b32.xlu0 %v3182, 80
        %v3261 = vpop.permute.xlu0 %3260
        %3262 = vrot.lane.b32.xlu0 %v3186, 80
        %v3263 = vpop.permute.xlu0 %3262
        %3264 = vrot.lane.b32.xlu0 %v3189, 80
        %v3265 = vpop.permute.xlu0 %3264
        %3266 = vrot.lane.b32.xlu0 %v3193, 80
        %v3267 = vpop.permute.xlu0 %3266
        %3268 = vrot.lane.b32.xlu0 %v3196, 80
        %v3269 = vpop.permute.xlu0 %3268
        %3270 = vrot.lane.b32.xlu0 %v3200, 80
        %v3271 = vpop.permute.xlu0 %3270
        %3272 = vrot.lane.b32.xlu0 %v3203, 80
        %v3273 = vpop.permute.xlu0 %3272
        %3274 = vrot.lane.b32.xlu0 %v3207, 80
        %v3275 = vpop.permute.xlu0 %3274
        %3276 = vrot.lane.b32.xlu0 %v3210, 80
        %v3277 = vpop.permute.xlu0 %3276
        %3278 = vrot.lane.b32.xlu0 %v3214, 80
        %v3279 = vpop.permute.xlu0 %3278
        %3280 = vrot.lane.b32.xlu0 %v3217, 80
        %v3281 = vpop.permute.xlu0 %3280
        %vm3314 = vcmask 781952
        %3315 = vst.msk [vmem:[#allocation3] sm:$0xf] %vm3314, %v3219
        %3316 = vst.msk [vmem:[#allocation3 + $0x8] sm:$0xf] %vm3314, %v3221
        %3317 = vst.msk [vmem:[#allocation3 + $0x10] sm:$0xf] %vm3314, %v3223
        %3318 = vst.msk [vmem:[#allocation3 + $0x18] sm:$0xf] %vm3314, %v3225
        %3319 = vst.msk [vmem:[#allocation3 + $0x20] sm:$0xf] %vm3314, %v3227
        %3320 = vst.msk [vmem:[#allocation3 + $0x28] sm:$0xf] %vm3314, %v3229
        %3321 = vst.msk [vmem:[#allocation3 + $0x30] sm:$0xf] %vm3314, %v3231
        %3322 = vst.msk [vmem:[#allocation3 + $0x38] sm:$0xf] %vm3314, %v3233
        %3323 = vst.msk [vmem:[#allocation3 + $0x40] sm:$0xf] %vm3314, %v3235
        %3324 = vst.msk [vmem:[#allocation3 + $0x48] sm:$0xf] %vm3314, %v3237
        %3325 = vst.msk [vmem:[#allocation3 + $0x50] sm:$0xf] %vm3314, %v3239
        %3326 = vst.msk [vmem:[#allocation3 + $0x58] sm:$0xf] %vm3314, %v3241
        %3327 = vst.msk [vmem:[#allocation3 + $0x60] sm:$0xf] %vm3314, %v3243
        %3328 = vst.msk [vmem:[#allocation3 + $0x68] sm:$0xf] %vm3314, %v3245
        %3329 = vst.msk [vmem:[#allocation3 + $0x70] sm:$0xf] %vm3314, %v3247
        %3330 = vst.msk [vmem:[#allocation3 + $0x78] sm:$0xf] %vm3314, %v3249
        %3331 = vst.msk [vmem:[#allocation3 + $0x80] sm:$0xf] %vm3314, %v3251
        %3332 = vst.msk [vmem:[#allocation3 + $0x88] sm:$0xf] %vm3314, %v3253
        %3333 = vst.msk [vmem:[#allocation3 + $0x90] sm:$0xf] %vm3314, %v3255
        %3334 = vst.msk [vmem:[#allocation3 + $0x98] sm:$0xf] %vm3314, %v3257
        %3335 = vst.msk [vmem:[#allocation3 + $0xa0] sm:$0xf] %vm3314, %v3259
        %3336 = vst.msk [vmem:[#allocation3 + $0xa8] sm:$0xf] %vm3314, %v3261
        %3337 = vst.msk [vmem:[#allocation3 + $0xb0] sm:$0xf] %vm3314, %v3263
        %3338 = vst.msk [vmem:[#allocation3 + $0xb8] sm:$0xf] %vm3314, %v3265
        %3339 = vst.msk [vmem:[#allocation3 + $0xc0] sm:$0xf] %vm3314, %v3267
        %3340 = vst.msk [vmem:[#allocation3 + $0xc8] sm:$0xf] %vm3314, %v3269
        %3341 = vst.msk [vmem:[#allocation3 + $0xd0] sm:$0xf] %vm3314, %v3271
        %3342 = vst.msk [vmem:[#allocation3 + $0xd8] sm:$0xf] %vm3314, %v3273
        %3343 = vst.msk [vmem:[#allocation3 + $0xe0] sm:$0xf] %vm3314, %v3275
        %3344 = vst.msk [vmem:[#allocation3 + $0xe8] sm:$0xf] %vm3314, %v3277
        %3345 = vst.msk [vmem:[#allocation3 + $0xf0] sm:$0xf] %vm3314, %v3279
        %3346 = vst.msk [vmem:[#allocation3 + $0xf8] sm:$0xf] %vm3314, %v3281
        %s3347 = scalar_lea.vmem [#allocation2], 24
        %v3348 = vld [vmem:[%s3347] sm:$0xf]
        %v3349 = vld [vmem:[%s3347 + $0x4] sm:$0xf]
        %v3350 = vld [vmem:[%s3347 + $0xc] sm:$0xf]
        %v3351 = vld [vmem:[%s3347 + $0x10] sm:$0xf]
        %v3352 = vld [vmem:[%s3347 + $0x18] sm:$0xf]
        %v3353 = vld [vmem:[%s3347 + $0x1c] sm:$0xf]
        %v3354 = vld [vmem:[%s3347 + $0x24] sm:$0xf]
        %v3355 = vld [vmem:[%s3347 + $0x28] sm:$0xf]
        %v3356 = vld [vmem:[%s3347 + $0x30] sm:$0xf]
        %v3357 = vld [vmem:[%s3347 + $0x34] sm:$0xf]
        %v3358 = vld [vmem:[%s3347 + $0x3c] sm:$0xf]
        %v3359 = vld [vmem:[%s3347 + $0x40] sm:$0xf]
        %v3360 = vld [vmem:[%s3347 + $0x48] sm:$0xf]
        %v3361 = vld [vmem:[%s3347 + $0x4c] sm:$0xf]
        %v3362 = vld [vmem:[%s3347 + $0x54] sm:$0xf]
        %v3363 = vld [vmem:[%s3347 + $0x58] sm:$0xf]
        %v3364 = vld [vmem:[%s3347 + $0x60] sm:$0xf]
        %v3365 = vld [vmem:[%s3347 + $0x64] sm:$0xf]
        %v3366 = vld [vmem:[%s3347 + $0x6c] sm:$0xf]
        %v3367 = vld [vmem:[%s3347 + $0x70] sm:$0xf]
        %v3368 = vld [vmem:[%s3347 + $0x78] sm:$0xf]
        %v3369 = vld [vmem:[%s3347 + $0x7c] sm:$0xf]
        %v3370 = vld [vmem:[%s3347 + $0x84] sm:$0xf]
        %v3371 = vld [vmem:[%s3347 + $0x88] sm:$0xf]
        %v3372 = vld [vmem:[%s3347 + $0x90] sm:$0xf]
        %v3373 = vld [vmem:[%s3347 + $0x94] sm:$0xf]
        %v3374 = vld [vmem:[%s3347 + $0x9c] sm:$0xf]
        %v3375 = vld [vmem:[%s3347 + $0xa0] sm:$0xf]
        %v3376 = vld [vmem:[%s3347 + $0xa8] sm:$0xf]
        %v3377 = vld [vmem:[%s3347 + $0xac] sm:$0xf]
        %v3378 = vld [vmem:[%s3347 + $0xb4] sm:$0xf]
        %v3379 = vld [vmem:[%s3347 + $0xb8] sm:$0xf]
        %3412 = vrot.lane.b32.xlu0 %v3348, 96
        %v3413 = vpop.permute.xlu0 %3412
        %3414 = vrot.lane.b32.xlu0 %v3349, 96
        %v3415 = vpop.permute.xlu0 %3414
        %3416 = vrot.lane.b32.xlu0 %v3350, 96
        %v3417 = vpop.permute.xlu0 %3416
        %3418 = vrot.lane.b32.xlu0 %v3351, 96
        %v3419 = vpop.permute.xlu0 %3418
        %3420 = vrot.lane.b32.xlu0 %v3352, 96
        %v3421 = vpop.permute.xlu0 %3420
        %3422 = vrot.lane.b32.xlu0 %v3353, 96
        %v3423 = vpop.permute.xlu0 %3422
        %3424 = vrot.lane.b32.xlu0 %v3354, 96
        %v3425 = vpop.permute.xlu0 %3424
        %3426 = vrot.lane.b32.xlu0 %v3355, 96
        %v3427 = vpop.permute.xlu0 %3426
        %3428 = vrot.lane.b32.xlu0 %v3356, 96
        %v3429 = vpop.permute.xlu0 %3428
        %3430 = vrot.lane.b32.xlu0 %v3357, 96
        %v3431 = vpop.permute.xlu0 %3430
        %3432 = vrot.lane.b32.xlu0 %v3358, 96
        %v3433 = vpop.permute.xlu0 %3432
        %3434 = vrot.lane.b32.xlu0 %v3359, 96
        %v3435 = vpop.permute.xlu0 %3434
        %3436 = vrot.lane.b32.xlu0 %v3360, 96
        %v3437 = vpop.permute.xlu0 %3436
        %3438 = vrot.lane.b32.xlu0 %v3361, 96
        %v3439 = vpop.permute.xlu0 %3438
        %3440 = vrot.lane.b32.xlu0 %v3362, 96
        %v3441 = vpop.permute.xlu0 %3440
        %3442 = vrot.lane.b32.xlu0 %v3363, 96
        %v3443 = vpop.permute.xlu0 %3442
        %3444 = vrot.lane.b32.xlu0 %v3364, 96
        %v3445 = vpop.permute.xlu0 %3444
        %3446 = vrot.lane.b32.xlu0 %v3365, 96
        %v3447 = vpop.permute.xlu0 %3446
        %3448 = vrot.lane.b32.xlu0 %v3366, 96
        %v3449 = vpop.permute.xlu0 %3448
        %3450 = vrot.lane.b32.xlu0 %v3367, 96
        %v3451 = vpop.permute.xlu0 %3450
        %3452 = vrot.lane.b32.xlu0 %v3368, 96
        %v3453 = vpop.permute.xlu0 %3452
        %3454 = vrot.lane.b32.xlu0 %v3369, 96
        %v3455 = vpop.permute.xlu0 %3454
        %3456 = vrot.lane.b32.xlu0 %v3370, 96
        %v3457 = vpop.permute.xlu0 %3456
        %3458 = vrot.lane.b32.xlu0 %v3371, 96
        %v3459 = vpop.permute.xlu0 %3458
        %3460 = vrot.lane.b32.xlu0 %v3372, 96
        %v3461 = vpop.permute.xlu0 %3460
        %3462 = vrot.lane.b32.xlu0 %v3373, 96
        %v3463 = vpop.permute.xlu0 %3462
        %3464 = vrot.lane.b32.xlu0 %v3374, 96
        %v3465 = vpop.permute.xlu0 %3464
        %3466 = vrot.lane.b32.xlu0 %v3375, 96
        %v3467 = vpop.permute.xlu0 %3466
        %3468 = vrot.lane.b32.xlu0 %v3376, 96
        %v3469 = vpop.permute.xlu0 %3468
        %3470 = vrot.lane.b32.xlu0 %v3377, 96
        %v3471 = vpop.permute.xlu0 %3470
        %3472 = vrot.lane.b32.xlu0 %v3378, 96
        %v3473 = vpop.permute.xlu0 %3472
        %3474 = vrot.lane.b32.xlu0 %v3379, 96
        %v3475 = vpop.permute.xlu0 %3474
        %vm3508 = vcmask 913152
        %3509 = vst.msk [vmem:[#allocation3] sm:$0xf] %vm3508, %v3413
        %3510 = vst.msk [vmem:[#allocation3 + $0x8] sm:$0xf] %vm3508, %v3415
        %3511 = vst.msk [vmem:[#allocation3 + $0x10] sm:$0xf] %vm3508, %v3417
        %3512 = vst.msk [vmem:[#allocation3 + $0x18] sm:$0xf] %vm3508, %v3419
        %3513 = vst.msk [vmem:[#allocation3 + $0x20] sm:$0xf] %vm3508, %v3421
        %3514 = vst.msk [vmem:[#allocation3 + $0x28] sm:$0xf] %vm3508, %v3423
        %3515 = vst.msk [vmem:[#allocation3 + $0x30] sm:$0xf] %vm3508, %v3425
        %3516 = vst.msk [vmem:[#allocation3 + $0x38] sm:$0xf] %vm3508, %v3427
        %3517 = vst.msk [vmem:[#allocation3 + $0x40] sm:$0xf] %vm3508, %v3429
        %3518 = vst.msk [vmem:[#allocation3 + $0x48] sm:$0xf] %vm3508, %v3431
        %3519 = vst.msk [vmem:[#allocation3 + $0x50] sm:$0xf] %vm3508, %v3433
        %3520 = vst.msk [vmem:[#allocation3 + $0x58] sm:$0xf] %vm3508, %v3435
        %3521 = vst.msk [vmem:[#allocation3 + $0x60] sm:$0xf] %vm3508, %v3437
        %3522 = vst.msk [vmem:[#allocation3 + $0x68] sm:$0xf] %vm3508, %v3439
        %3523 = vst.msk [vmem:[#allocation3 + $0x70] sm:$0xf] %vm3508, %v3441
        %3524 = vst.msk [vmem:[#allocation3 + $0x78] sm:$0xf] %vm3508, %v3443
        %3525 = vst.msk [vmem:[#allocation3 + $0x80] sm:$0xf] %vm3508, %v3445
        %3526 = vst.msk [vmem:[#allocation3 + $0x88] sm:$0xf] %vm3508, %v3447
        %3527 = vst.msk [vmem:[#allocation3 + $0x90] sm:$0xf] %vm3508, %v3449
        %3528 = vst.msk [vmem:[#allocation3 + $0x98] sm:$0xf] %vm3508, %v3451
        %3529 = vst.msk [vmem:[#allocation3 + $0xa0] sm:$0xf] %vm3508, %v3453
        %3530 = vst.msk [vmem:[#allocation3 + $0xa8] sm:$0xf] %vm3508, %v3455
        %3531 = vst.msk [vmem:[#allocation3 + $0xb0] sm:$0xf] %vm3508, %v3457
        %3532 = vst.msk [vmem:[#allocation3 + $0xb8] sm:$0xf] %vm3508, %v3459
        %3533 = vst.msk [vmem:[#allocation3 + $0xc0] sm:$0xf] %vm3508, %v3461
        %3534 = vst.msk [vmem:[#allocation3 + $0xc8] sm:$0xf] %vm3508, %v3463
        %3535 = vst.msk [vmem:[#allocation3 + $0xd0] sm:$0xf] %vm3508, %v3465
        %3536 = vst.msk [vmem:[#allocation3 + $0xd8] sm:$0xf] %vm3508, %v3467
        %3537 = vst.msk [vmem:[#allocation3 + $0xe0] sm:$0xf] %vm3508, %v3469
        %3538 = vst.msk [vmem:[#allocation3 + $0xe8] sm:$0xf] %vm3508, %v3471
        %3539 = vst.msk [vmem:[#allocation3 + $0xf0] sm:$0xf] %vm3508, %v3473
        %3540 = vst.msk [vmem:[#allocation3 + $0xf8] sm:$0xf] %vm3508, %v3475
        %v3541 = vld [vmem:[%s3347] sm:$0xf]
        %v3542 = vld [vmem:[%s3347 + $0x4] sm:$0xf]
        %v3543 = vld [vmem:[%s3347 + $0x8] sm:$0x1]
        %v3544 = vld [vmem:[%s3347 + $0xc] sm:$0xf]
        %v3545 = vld [vmem:[%s3347 + $0x10] sm:$0xf]
        %v3546 = vld [vmem:[%s3347 + $0x14] sm:$0x1]
        %v3547 = vld [vmem:[%s3347 + $0x18] sm:$0xf]
        %v3548 = vld [vmem:[%s3347 + $0x1c] sm:$0xf]
        %v3549 = vld [vmem:[%s3347 + $0x20] sm:$0x1]
        %v3550 = vld [vmem:[%s3347 + $0x24] sm:$0xf]
        %v3551 = vld [vmem:[%s3347 + $0x28] sm:$0xf]
        %v3552 = vld [vmem:[%s3347 + $0x2c] sm:$0x1]
        %v3553 = vld [vmem:[%s3347 + $0x30] sm:$0xf]
        %v3554 = vld [vmem:[%s3347 + $0x34] sm:$0xf]
        %v3555 = vld [vmem:[%s3347 + $0x38] sm:$0x1]
        %v3556 = vld [vmem:[%s3347 + $0x3c] sm:$0xf]
        %v3557 = vld [vmem:[%s3347 + $0x40] sm:$0xf]
        %v3558 = vld [vmem:[%s3347 + $0x44] sm:$0x1]
        %v3559 = vld [vmem:[%s3347 + $0x48] sm:$0xf]
        %v3560 = vld [vmem:[%s3347 + $0x4c] sm:$0xf]
        %v3561 = vld [vmem:[%s3347 + $0x50] sm:$0x1]
        %v3562 = vld [vmem:[%s3347 + $0x54] sm:$0xf]
        %v3563 = vld [vmem:[%s3347 + $0x58] sm:$0xf]
        %v3564 = vld [vmem:[%s3347 + $0x5c] sm:$0x1]
        %v3565 = vld [vmem:[%s3347 + $0x60] sm:$0xf]
        %v3566 = vld [vmem:[%s3347 + $0x64] sm:$0xf]
        %v3567 = vld [vmem:[%s3347 + $0x68] sm:$0x1]
        %v3568 = vld [vmem:[%s3347 + $0x6c] sm:$0xf]
        %v3569 = vld [vmem:[%s3347 + $0x70] sm:$0xf]
        %v3570 = vld [vmem:[%s3347 + $0x74] sm:$0x1]
        %v3571 = vld [vmem:[%s3347 + $0x78] sm:$0xf]
        %v3572 = vld [vmem:[%s3347 + $0x7c] sm:$0xf]
        %v3573 = vld [vmem:[%s3347 + $0x80] sm:$0x1]
        %v3574 = vld [vmem:[%s3347 + $0x84] sm:$0xf]
        %v3575 = vld [vmem:[%s3347 + $0x88] sm:$0xf]
        %v3576 = vld [vmem:[%s3347 + $0x8c] sm:$0x1]
        %v3577 = vld [vmem:[%s3347 + $0x90] sm:$0xf]
        %v3578 = vld [vmem:[%s3347 + $0x94] sm:$0xf]
        %v3579 = vld [vmem:[%s3347 + $0x98] sm:$0x1]
        %v3580 = vld [vmem:[%s3347 + $0x9c] sm:$0xf]
        %v3581 = vld [vmem:[%s3347 + $0xa0] sm:$0xf]
        %v3582 = vld [vmem:[%s3347 + $0xa4] sm:$0x1]
        %v3583 = vld [vmem:[%s3347 + $0xa8] sm:$0xf]
        %v3584 = vld [vmem:[%s3347 + $0xac] sm:$0xf]
        %v3585 = vld [vmem:[%s3347 + $0xb0] sm:$0x1]
        %v3586 = vld [vmem:[%s3347 + $0xb4] sm:$0xf]
        %v3587 = vld [vmem:[%s3347 + $0xb8] sm:$0xf]
        %v3588 = vld [vmem:[%s3347 + $0xbc] sm:$0x1]
        %v3590 = vshrl.u32 %v3541, 16
        %v3592 = vrot.slane %v3590, 4
        %v3593 = vshll.u32 %v3541, 16
        %v3595 = vrot.slane %v3593, 5
        %v3596 = vor.u32 %v3592, %v3595
        %v3597 = vrot.slane %v3596, 4
        %v3599 = vshll.u32 %v3542, 16
        %v3601 = vrot.slane %v3599, 5
        %v3602 = vsel %vm1402, %v3597, %v3601
        %v3603 = vshrl.u32 %v3542, 16
        %v3605 = vrot.slane %v3603, 4
        %v3606 = vor.u32 %v3605, %v3601
        %v3607 = vrot.slane %v3606, 4
        %v3609 = vshll.u32 %v3543, 16
        %v3611 = vrot.slane %v3609, 5
        %v3612 = vsel %vm1402, %v3607, %v3611
        %v3614 = vshrl.u32 %v3544, 16
        %v3616 = vrot.slane %v3614, 4
        %v3617 = vshll.u32 %v3544, 16
        %v3619 = vrot.slane %v3617, 5
        %v3620 = vor.u32 %v3616, %v3619
        %v3621 = vrot.slane %v3620, 4
        %v3623 = vshll.u32 %v3545, 16
        %v3625 = vrot.slane %v3623, 5
        %v3626 = vsel %vm1402, %v3621, %v3625
        %v3627 = vshrl.u32 %v3545, 16
        %v3629 = vrot.slane %v3627, 4
        %v3630 = vor.u32 %v3629, %v3625
        %v3631 = vrot.slane %v3630, 4
        %v3633 = vshll.u32 %v3546, 16
        %v3635 = vrot.slane %v3633, 5
        %v3636 = vsel %vm1402, %v3631, %v3635
        %v3638 = vshrl.u32 %v3547, 16
        %v3640 = vrot.slane %v3638, 4
        %v3641 = vshll.u32 %v3547, 16
        %v3643 = vrot.slane %v3641, 5
        %v3644 = vor.u32 %v3640, %v3643
        %v3645 = vrot.slane %v3644, 4
        %v3647 = vshll.u32 %v3548, 16
        %v3649 = vrot.slane %v3647, 5
        %v3650 = vsel %vm1402, %v3645, %v3649
        %v3651 = vshrl.u32 %v3548, 16
        %v3653 = vrot.slane %v3651, 4
        %v3654 = vor.u32 %v3653, %v3649
        %v3655 = vrot.slane %v3654, 4
        %v3657 = vshll.u32 %v3549, 16
        %v3659 = vrot.slane %v3657, 5
        %v3660 = vsel %vm1402, %v3655, %v3659
        %v3662 = vshrl.u32 %v3550, 16
        %v3664 = vrot.slane %v3662, 4
        %v3665 = vshll.u32 %v3550, 16
        %v3667 = vrot.slane %v3665, 5
        %v3668 = vor.u32 %v3664, %v3667
        %v3669 = vrot.slane %v3668, 4
        %v3671 = vshll.u32 %v3551, 16
        %v3673 = vrot.slane %v3671, 5
        %v3674 = vsel %vm1402, %v3669, %v3673
        %v3675 = vshrl.u32 %v3551, 16
        %v3677 = vrot.slane %v3675, 4
        %v3678 = vor.u32 %v3677, %v3673
        %v3679 = vrot.slane %v3678, 4
        %v3681 = vshll.u32 %v3552, 16
        %v3683 = vrot.slane %v3681, 5
        %v3684 = vsel %vm1402, %v3679, %v3683
        %v3686 = vshrl.u32 %v3553, 16
        %v3688 = vrot.slane %v3686, 4
        %v3689 = vshll.u32 %v3553, 16
        %v3691 = vrot.slane %v3689, 5
        %v3692 = vor.u32 %v3688, %v3691
        %v3693 = vrot.slane %v3692, 4
        %v3695 = vshll.u32 %v3554, 16
        %v3697 = vrot.slane %v3695, 5
        %v3698 = vsel %vm1402, %v3693, %v3697
        %v3699 = vshrl.u32 %v3554, 16
        %v3701 = vrot.slane %v3699, 4
        %v3702 = vor.u32 %v3701, %v3697
        %v3703 = vrot.slane %v3702, 4
        %v3705 = vshll.u32 %v3555, 16
        %v3707 = vrot.slane %v3705, 5
        %v3708 = vsel %vm1402, %v3703, %v3707
        %v3710 = vshrl.u32 %v3556, 16
        %v3712 = vrot.slane %v3710, 4
        %v3713 = vshll.u32 %v3556, 16
        %v3715 = vrot.slane %v3713, 5
        %v3716 = vor.u32 %v3712, %v3715
        %v3717 = vrot.slane %v3716, 4
        %v3719 = vshll.u32 %v3557, 16
        %v3721 = vrot.slane %v3719, 5
        %v3722 = vsel %vm1402, %v3717, %v3721
        %v3723 = vshrl.u32 %v3557, 16
        %v3725 = vrot.slane %v3723, 4
        %v3726 = vor.u32 %v3725, %v3721
        %v3727 = vrot.slane %v3726, 4
        %v3729 = vshll.u32 %v3558, 16
        %v3731 = vrot.slane %v3729, 5
        %v3732 = vsel %vm1402, %v3727, %v3731
        %v3734 = vshrl.u32 %v3559, 16
        %v3736 = vrot.slane %v3734, 4
        %v3737 = vshll.u32 %v3559, 16
        %v3739 = vrot.slane %v3737, 5
        %v3740 = vor.u32 %v3736, %v3739
        %v3741 = vrot.slane %v3740, 4
        %v3743 = vshll.u32 %v3560, 16
        %v3745 = vrot.slane %v3743, 5
        %v3746 = vsel %vm1402, %v3741, %v3745
        %v3747 = vshrl.u32 %v3560, 16
        %v3749 = vrot.slane %v3747, 4
        %v3750 = vor.u32 %v3749, %v3745
        %v3751 = vrot.slane %v3750, 4
        %v3753 = vshll.u32 %v3561, 16
        %v3755 = vrot.slane %v3753, 5
        %v3756 = vsel %vm1402, %v3751, %v3755
        %v3758 = vshrl.u32 %v3562, 16
        %v3760 = vrot.slane %v3758, 4
        %v3761 = vshll.u32 %v3562, 16
        %v3763 = vrot.slane %v3761, 5
        %v3764 = vor.u32 %v3760, %v3763
        %v3765 = vrot.slane %v3764, 4
        %v3767 = vshll.u32 %v3563, 16
        %v3769 = vrot.slane %v3767, 5
        %v3770 = vsel %vm1402, %v3765, %v3769
        %v3771 = vshrl.u32 %v3563, 16
        %v3773 = vrot.slane %v3771, 4
        %v3774 = vor.u32 %v3773, %v3769
        %v3775 = vrot.slane %v3774, 4
        %v3777 = vshll.u32 %v3564, 16
        %v3779 = vrot.slane %v3777, 5
        %v3780 = vsel %vm1402, %v3775, %v3779
        %v3782 = vshrl.u32 %v3565, 16
        %v3784 = vrot.slane %v3782, 4
        %v3785 = vshll.u32 %v3565, 16
        %v3787 = vrot.slane %v3785, 5
        %v3788 = vor.u32 %v3784, %v3787
        %v3789 = vrot.slane %v3788, 4
        %v3791 = vshll.u32 %v3566, 16
        %v3793 = vrot.slane %v3791, 5
        %v3794 = vsel %vm1402, %v3789, %v3793
        %v3795 = vshrl.u32 %v3566, 16
        %v3797 = vrot.slane %v3795, 4
        %v3798 = vor.u32 %v3797, %v3793
        %v3799 = vrot.slane %v3798, 4
        %v3801 = vshll.u32 %v3567, 16
        %v3803 = vrot.slane %v3801, 5
        %v3804 = vsel %vm1402, %v3799, %v3803
        %v3806 = vshrl.u32 %v3568, 16
        %v3808 = vrot.slane %v3806, 4
        %v3809 = vshll.u32 %v3568, 16
        %v3811 = vrot.slane %v3809, 5
        %v3812 = vor.u32 %v3808, %v3811
        %v3813 = vrot.slane %v3812, 4
        %v3815 = vshll.u32 %v3569, 16
        %v3817 = vrot.slane %v3815, 5
        %v3818 = vsel %vm1402, %v3813, %v3817
        %v3819 = vshrl.u32 %v3569, 16
        %v3821 = vrot.slane %v3819, 4
        %v3822 = vor.u32 %v3821, %v3817
        %v3823 = vrot.slane %v3822, 4
        %v3825 = vshll.u32 %v3570, 16
        %v3827 = vrot.slane %v3825, 5
        %v3828 = vsel %vm1402, %v3823, %v3827
        %v3830 = vshrl.u32 %v3571, 16
        %v3832 = vrot.slane %v3830, 4
        %v3833 = vshll.u32 %v3571, 16
        %v3835 = vrot.slane %v3833, 5
        %v3836 = vor.u32 %v3832, %v3835
        %v3837 = vrot.slane %v3836, 4
        %v3839 = vshll.u32 %v3572, 16
        %v3841 = vrot.slane %v3839, 5
        %v3842 = vsel %vm1402, %v3837, %v3841
        %v3843 = vshrl.u32 %v3572, 16
        %v3845 = vrot.slane %v3843, 4
        %v3846 = vor.u32 %v3845, %v3841
        %v3847 = vrot.slane %v3846, 4
        %v3849 = vshll.u32 %v3573, 16
        %v3851 = vrot.slane %v3849, 5
        %v3852 = vsel %vm1402, %v3847, %v3851
        %v3854 = vshrl.u32 %v3574, 16
        %v3856 = vrot.slane %v3854, 4
        %v3857 = vshll.u32 %v3574, 16
        %v3859 = vrot.slane %v3857, 5
        %v3860 = vor.u32 %v3856, %v3859
        %v3861 = vrot.slane %v3860, 4
        %v3863 = vshll.u32 %v3575, 16
        %v3865 = vrot.slane %v3863, 5
        %v3866 = vsel %vm1402, %v3861, %v3865
        %v3867 = vshrl.u32 %v3575, 16
        %v3869 = vrot.slane %v3867, 4
        %v3870 = vor.u32 %v3869, %v3865
        %v3871 = vrot.slane %v3870, 4
        %v3873 = vshll.u32 %v3576, 16
        %v3875 = vrot.slane %v3873, 5
        %v3876 = vsel %vm1402, %v3871, %v3875
        %v3878 = vshrl.u32 %v3577, 16
        %v3880 = vrot.slane %v3878, 4
        %v3881 = vshll.u32 %v3577, 16
        %v3883 = vrot.slane %v3881, 5
        %v3884 = vor.u32 %v3880, %v3883
        %v3885 = vrot.slane %v3884, 4
        %v3887 = vshll.u32 %v3578, 16
        %v3889 = vrot.slane %v3887, 5
        %v3890 = vsel %vm1402, %v3885, %v3889
        %v3891 = vshrl.u32 %v3578, 16
        %v3893 = vrot.slane %v3891, 4
        %v3894 = vor.u32 %v3893, %v3889
        %v3895 = vrot.slane %v3894, 4
        %v3897 = vshll.u32 %v3579, 16
        %v3899 = vrot.slane %v3897, 5
        %v3900 = vsel %vm1402, %v3895, %v3899
        %v3902 = vshrl.u32 %v3580, 16
        %v3904 = vrot.slane %v3902, 4
        %v3905 = vshll.u32 %v3580, 16
        %v3907 = vrot.slane %v3905, 5
        %v3908 = vor.u32 %v3904, %v3907
        %v3909 = vrot.slane %v3908, 4
        %v3911 = vshll.u32 %v3581, 16
        %v3913 = vrot.slane %v3911, 5
        %v3914 = vsel %vm1402, %v3909, %v3913
        %v3915 = vshrl.u32 %v3581, 16
        %v3917 = vrot.slane %v3915, 4
        %v3918 = vor.u32 %v3917, %v3913
        %v3919 = vrot.slane %v3918, 4
        %v3921 = vshll.u32 %v3582, 16
        %v3923 = vrot.slane %v3921, 5
        %v3924 = vsel %vm1402, %v3919, %v3923
        %v3926 = vshrl.u32 %v3583, 16
        %v3928 = vrot.slane %v3926, 4
        %v3929 = vshll.u32 %v3583, 16
        %v3931 = vrot.slane %v3929, 5
        %v3932 = vor.u32 %v3928, %v3931
        %v3933 = vrot.slane %v3932, 4
        %v3935 = vshll.u32 %v3584, 16
        %v3937 = vrot.slane %v3935, 5
        %v3938 = vsel %vm1402, %v3933, %v3937
        %v3939 = vshrl.u32 %v3584, 16
        %v3941 = vrot.slane %v3939, 4
        %v3942 = vor.u32 %v3941, %v3937
        %v3943 = vrot.slane %v3942, 4
        %v3945 = vshll.u32 %v3585, 16
        %v3947 = vrot.slane %v3945, 5
        %v3948 = vsel %vm1402, %v3943, %v3947
        %v3950 = vshrl.u32 %v3586, 16
        %v3952 = vrot.slane %v3950, 4
        %v3953 = vshll.u32 %v3586, 16
        %v3955 = vrot.slane %v3953, 5
        %v3956 = vor.u32 %v3952, %v3955
        %v3957 = vrot.slane %v3956, 4
        %v3959 = vshll.u32 %v3587, 16
        %v3961 = vrot.slane %v3959, 5
        %v3962 = vsel %vm1402, %v3957, %v3961
        %v3963 = vshrl.u32 %v3587, 16
        %v3965 = vrot.slane %v3963, 4
        %v3966 = vor.u32 %v3965, %v3961
        %v3967 = vrot.slane %v3966, 4
        %v3969 = vshll.u32 %v3588, 16
        %v3971 = vrot.slane %v3969, 5
        %v3972 = vsel %vm1402, %v3967, %v3971
        %3973 = vrot.lane.b32.xlu0 %v3602, 112
        %v3974 = vpop.permute.xlu0 %3973
        %3975 = vrot.lane.b32.xlu0 %v3612, 112
        %v3976 = vpop.permute.xlu0 %3975
        %3977 = vrot.lane.b32.xlu0 %v3626, 112
        %v3978 = vpop.permute.xlu0 %3977
        %3979 = vrot.lane.b32.xlu0 %v3636, 112
        %v3980 = vpop.permute.xlu0 %3979
        %3981 = vrot.lane.b32.xlu0 %v3650, 112
        %v3982 = vpop.permute.xlu0 %3981
        %3983 = vrot.lane.b32.xlu0 %v3660, 112
        %v3984 = vpop.permute.xlu0 %3983
        %3985 = vrot.lane.b32.xlu0 %v3674, 112
        %v3986 = vpop.permute.xlu0 %3985
        %3987 = vrot.lane.b32.xlu0 %v3684, 112
        %v3988 = vpop.permute.xlu0 %3987
        %3989 = vrot.lane.b32.xlu0 %v3698, 112
        %v3990 = vpop.permute.xlu0 %3989
        %3991 = vrot.lane.b32.xlu0 %v3708, 112
        %v3992 = vpop.permute.xlu0 %3991
        %3993 = vrot.lane.b32.xlu0 %v3722, 112
        %v3994 = vpop.permute.xlu0 %3993
        %3995 = vrot.lane.b32.xlu0 %v3732, 112
        %v3996 = vpop.permute.xlu0 %3995
        %3997 = vrot.lane.b32.xlu0 %v3746, 112
        %v3998 = vpop.permute.xlu0 %3997
        %3999 = vrot.lane.b32.xlu0 %v3756, 112
        %v4000 = vpop.permute.xlu0 %3999
        %4001 = vrot.lane.b32.xlu0 %v3770, 112
        %v4002 = vpop.permute.xlu0 %4001
        %4003 = vrot.lane.b32.xlu0 %v3780, 112
        %v4004 = vpop.permute.xlu0 %4003
        %4005 = vrot.lane.b32.xlu0 %v3794, 112
        %v4006 = vpop.permute.xlu0 %4005
        %4007 = vrot.lane.b32.xlu0 %v3804, 112
        %v4008 = vpop.permute.xlu0 %4007
        %4009 = vrot.lane.b32.xlu0 %v3818, 112
        %v4010 = vpop.permute.xlu0 %4009
        %4011 = vrot.lane.b32.xlu0 %v3828, 112
        %v4012 = vpop.permute.xlu0 %4011
        %4013 = vrot.lane.b32.xlu0 %v3842, 112
        %v4014 = vpop.permute.xlu0 %4013
        %4015 = vrot.lane.b32.xlu0 %v3852, 112
        %v4016 = vpop.permute.xlu0 %4015
        %4017 = vrot.lane.b32.xlu0 %v3866, 112
        %v4018 = vpop.permute.xlu0 %4017
        %4019 = vrot.lane.b32.xlu0 %v3876, 112
        %v4020 = vpop.permute.xlu0 %4019
        %4021 = vrot.lane.b32.xlu0 %v3890, 112
        %v4022 = vpop.permute.xlu0 %4021
        %4023 = vrot.lane.b32.xlu0 %v3900, 112
        %v4024 = vpop.permute.xlu0 %4023
        %4025 = vrot.lane.b32.xlu0 %v3914, 112
        %v4026 = vpop.permute.xlu0 %4025
        %4027 = vrot.lane.b32.xlu0 %v3924, 112
        %v4028 = vpop.permute.xlu0 %4027
        %4029 = vrot.lane.b32.xlu0 %v3938, 112
        %v4030 = vpop.permute.xlu0 %4029
        %4031 = vrot.lane.b32.xlu0 %v3948, 112
        %v4032 = vpop.permute.xlu0 %4031
        %4033 = vrot.lane.b32.xlu0 %v3962, 112
        %v4034 = vpop.permute.xlu0 %4033
        %4035 = vrot.lane.b32.xlu0 %v3972, 112
        %v4036 = vpop.permute.xlu0 %4035
        %vm4069 = vcmask 1044352
        %4070 = vst.msk [vmem:[#allocation3] sm:$0xf] %vm4069, %v3974
        %4071 = vst.msk [vmem:[#allocation3 + $0x8] sm:$0xf] %vm4069, %v3976
        %4072 = vst.msk [vmem:[#allocation3 + $0x10] sm:$0xf] %vm4069, %v3978
        %4073 = vst.msk [vmem:[#allocation3 + $0x18] sm:$0xf] %vm4069, %v3980
        %4074 = vst.msk [vmem:[#allocation3 + $0x20] sm:$0xf] %vm4069, %v3982
        %4075 = vst.msk [vmem:[#allocation3 + $0x28] sm:$0xf] %vm4069, %v3984
        %4076 = vst.msk [vmem:[#allocation3 + $0x30] sm:$0xf] %vm4069, %v3986
        %4077 = vst.msk [vmem:[#allocation3 + $0x38] sm:$0xf] %vm4069, %v3988
        %4078 = vst.msk [vmem:[#allocation3 + $0x40] sm:$0xf] %vm4069, %v3990
        %4079 = vst.msk [vmem:[#allocation3 + $0x48] sm:$0xf] %vm4069, %v3992
        %4080 = vst.msk [vmem:[#allocation3 + $0x50] sm:$0xf] %vm4069, %v3994
        %4081 = vst.msk [vmem:[#allocation3 + $0x58] sm:$0xf] %vm4069, %v3996
        %4082 = vst.msk [vmem:[#allocation3 + $0x60] sm:$0xf] %vm4069, %v3998
        %4083 = vst.msk [vmem:[#allocation3 + $0x68] sm:$0xf] %vm4069, %v4000
        %4084 = vst.msk [vmem:[#allocation3 + $0x70] sm:$0xf] %vm4069, %v4002
        %4085 = vst.msk [vmem:[#allocation3 + $0x78] sm:$0xf] %vm4069, %v4004
        %4086 = vst.msk [vmem:[#allocation3 + $0x80] sm:$0xf] %vm4069, %v4006
        %4087 = vst.msk [vmem:[#allocation3 + $0x88] sm:$0xf] %vm4069, %v4008
        %4088 = vst.msk [vmem:[#allocation3 + $0x90] sm:$0xf] %vm4069, %v4010
        %4089 = vst.msk [vmem:[#allocation3 + $0x98] sm:$0xf] %vm4069, %v4012
        %4090 = vst.msk [vmem:[#allocation3 + $0xa0] sm:$0xf] %vm4069, %v4014
        %4091 = vst.msk [vmem:[#allocation3 + $0xa8] sm:$0xf] %vm4069, %v4016
        %4092 = vst.msk [vmem:[#allocation3 + $0xb0] sm:$0xf] %vm4069, %v4018
        %4093 = vst.msk [vmem:[#allocation3 + $0xb8] sm:$0xf] %vm4069, %v4020
        %4094 = vst.msk [vmem:[#allocation3 + $0xc0] sm:$0xf] %vm4069, %v4022
        %4095 = vst.msk [vmem:[#allocation3 + $0xc8] sm:$0xf] %vm4069, %v4024
        %4096 = vst.msk [vmem:[#allocation3 + $0xd0] sm:$0xf] %vm4069, %v4026
        %4097 = vst.msk [vmem:[#allocation3 + $0xd8] sm:$0xf] %vm4069, %v4028
        %4098 = vst.msk [vmem:[#allocation3 + $0xe0] sm:$0xf] %vm4069, %v4030
        %4099 = vst.msk [vmem:[#allocation3 + $0xe8] sm:$0xf] %vm4069, %v4032
        %4100 = vst.msk [vmem:[#allocation3 + $0xf0] sm:$0xf] %vm4069, %v4034
        %4101 = vst.msk [vmem:[#allocation3 + $0xf8] sm:$0xf] %vm4069, %v4036
        %v4102 = vld [vmem:[%s3347] sm:$0xe]
        %v4103 = vld [vmem:[%s3347 + $0x4] sm:$0xf]
        %v4104 = vld [vmem:[%s3347 + $0x8] sm:$0x1]
        %v4105 = vld [vmem:[%s3347 + $0xc] sm:$0xe]
        %v4106 = vld [vmem:[%s3347 + $0x10] sm:$0xf]
        %v4107 = vld [vmem:[%s3347 + $0x14] sm:$0x1]
        %v4108 = vld [vmem:[%s3347 + $0x18] sm:$0xe]
        %v4109 = vld [vmem:[%s3347 + $0x1c] sm:$0xf]
        %v4110 = vld [vmem:[%s3347 + $0x20] sm:$0x1]
        %v4111 = vld [vmem:[%s3347 + $0x24] sm:$0xe]
        %v4112 = vld [vmem:[%s3347 + $0x28] sm:$0xf]
        %v4113 = vld [vmem:[%s3347 + $0x2c] sm:$0x1]
        %v4114 = vld [vmem:[%s3347 + $0x30] sm:$0xe]
        %v4115 = vld [vmem:[%s3347 + $0x34] sm:$0xf]
        %v4116 = vld [vmem:[%s3347 + $0x38] sm:$0x1]
        %v4117 = vld [vmem:[%s3347 + $0x3c] sm:$0xe]
        %v4118 = vld [vmem:[%s3347 + $0x40] sm:$0xf]
        %v4119 = vld [vmem:[%s3347 + $0x44] sm:$0x1]
        %v4120 = vld [vmem:[%s3347 + $0x48] sm:$0xe]
        %v4121 = vld [vmem:[%s3347 + $0x4c] sm:$0xf]
        %v4122 = vld [vmem:[%s3347 + $0x50] sm:$0x1]
        %v4123 = vld [vmem:[%s3347 + $0x54] sm:$0xe]
        %v4124 = vld [vmem:[%s3347 + $0x58] sm:$0xf]
        %v4125 = vld [vmem:[%s3347 + $0x5c] sm:$0x1]
        %v4126 = vld [vmem:[%s3347 + $0x60] sm:$0xe]
        %v4127 = vld [vmem:[%s3347 + $0x64] sm:$0xf]
        %v4128 = vld [vmem:[%s3347 + $0x68] sm:$0x1]
        %v4129 = vld [vmem:[%s3347 + $0x6c] sm:$0xe]
        %v4130 = vld [vmem:[%s3347 + $0x70] sm:$0xf]
        %v4131 = vld [vmem:[%s3347 + $0x74] sm:$0x1]
        %v4132 = vld [vmem:[%s3347 + $0x78] sm:$0xe]
        %v4133 = vld [vmem:[%s3347 + $0x7c] sm:$0xf]
        %v4134 = vld [vmem:[%s3347 + $0x80] sm:$0x1]
        %v4135 = vld [vmem:[%s3347 + $0x84] sm:$0xe]
        %v4136 = vld [vmem:[%s3347 + $0x88] sm:$0xf]
        %v4137 = vld [vmem:[%s3347 + $0x8c] sm:$0x1]
        %v4138 = vld [vmem:[%s3347 + $0x90] sm:$0xe]
        %v4139 = vld [vmem:[%s3347 + $0x94] sm:$0xf]
        %v4140 = vld [vmem:[%s3347 + $0x98] sm:$0x1]
        %v4141 = vld [vmem:[%s3347 + $0x9c] sm:$0xe]
        %v4142 = vld [vmem:[%s3347 + $0xa0] sm:$0xf]
        %v4143 = vld [vmem:[%s3347 + $0xa4] sm:$0x1]
        %v4144 = vld [vmem:[%s3347 + $0xa8] sm:$0xe]
        %v4145 = vld [vmem:[%s3347 + $0xac] sm:$0xf]
        %v4146 = vld [vmem:[%s3347 + $0xb0] sm:$0x1]
        %v4147 = vld [vmem:[%s3347 + $0xb4] sm:$0xe]
        %v4148 = vld [vmem:[%s3347 + $0xb8] sm:$0xf]
        %v4149 = vld [vmem:[%s3347 + $0xbc] sm:$0x1]
        %v4198 = vrot.slane %v4102, 5
        %v4199 = vrot.slane %v4198, 4
        %v4200 = vrot.slane %v4103, 5
        %v4201 = vsel %vm2014, %v4199, %v4200
        %v4202 = vrot.slane %v4200, 4
        %v4203 = vrot.slane %v4104, 5
        %v4204 = vsel %vm2014, %v4202, %v4203
        %v4205 = vrot.slane %v4105, 5
        %v4206 = vrot.slane %v4205, 4
        %v4207 = vrot.slane %v4106, 5
        %v4208 = vsel %vm2014, %v4206, %v4207
        %v4209 = vrot.slane %v4207, 4
        %v4210 = vrot.slane %v4107, 5
        %v4211 = vsel %vm2014, %v4209, %v4210
        %v4212 = vrot.slane %v4108, 5
        %v4213 = vrot.slane %v4212, 4
        %v4214 = vrot.slane %v4109, 5
        %v4215 = vsel %vm2014, %v4213, %v4214
        %v4216 = vrot.slane %v4214, 4
        %v4217 = vrot.slane %v4110, 5
        %v4218 = vsel %vm2014, %v4216, %v4217
        %v4219 = vrot.slane %v4111, 5
        %v4220 = vrot.slane %v4219, 4
        %v4221 = vrot.slane %v4112, 5
        %v4222 = vsel %vm2014, %v4220, %v4221
        %v4223 = vrot.slane %v4221, 4
        %v4224 = vrot.slane %v4113, 5
        %v4225 = vsel %vm2014, %v4223, %v4224
        %v4226 = vrot.slane %v4114, 5
        %v4227 = vrot.slane %v4226, 4
        %v4228 = vrot.slane %v4115, 5
        %v4229 = vsel %vm2014, %v4227, %v4228
        %v4230 = vrot.slane %v4228, 4
        %v4231 = vrot.slane %v4116, 5
        %v4232 = vsel %vm2014, %v4230, %v4231
        %v4233 = vrot.slane %v4117, 5
        %v4234 = vrot.slane %v4233, 4
        %v4235 = vrot.slane %v4118, 5
        %v4236 = vsel %vm2014, %v4234, %v4235
        %v4237 = vrot.slane %v4235, 4
        %v4238 = vrot.slane %v4119, 5
        %v4239 = vsel %vm2014, %v4237, %v4238
        %v4240 = vrot.slane %v4120, 5
        %v4241 = vrot.slane %v4240, 4
        %v4242 = vrot.slane %v4121, 5
        %v4243 = vsel %vm2014, %v4241, %v4242
        %v4244 = vrot.slane %v4242, 4
        %v4245 = vrot.slane %v4122, 5
        %v4246 = vsel %vm2014, %v4244, %v4245
        %v4247 = vrot.slane %v4123, 5
        %v4248 = vrot.slane %v4247, 4
        %v4249 = vrot.slane %v4124, 5
        %v4250 = vsel %vm2014, %v4248, %v4249
        %v4251 = vrot.slane %v4249, 4
        %v4252 = vrot.slane %v4125, 5
        %v4253 = vsel %vm2014, %v4251, %v4252
        %v4254 = vrot.slane %v4126, 5
        %v4255 = vrot.slane %v4254, 4
        %v4256 = vrot.slane %v4127, 5
        %v4257 = vsel %vm2014, %v4255, %v4256
        %v4258 = vrot.slane %v4256, 4
        %v4259 = vrot.slane %v4128, 5
        %v4260 = vsel %vm2014, %v4258, %v4259
        %v4261 = vrot.slane %v4129, 5
        %v4262 = vrot.slane %v4261, 4
        %v4263 = vrot.slane %v4130, 5
        %v4264 = vsel %vm2014, %v4262, %v4263
        %v4265 = vrot.slane %v4263, 4
        %v4266 = vrot.slane %v4131, 5
        %v4267 = vsel %vm2014, %v4265, %v4266
        %v4268 = vrot.slane %v4132, 5
        %v4269 = vrot.slane %v4268, 4
        %v4270 = vrot.slane %v4133, 5
        %v4271 = vsel %vm2014, %v4269, %v4270
        %v4272 = vrot.slane %v4270, 4
        %v4273 = vrot.slane %v4134, 5
        %v4274 = vsel %vm2014, %v4272, %v4273
        %v4275 = vrot.slane %v4135, 5
        %v4276 = vrot.slane %v4275, 4
        %v4277 = vrot.slane %v4136, 5
        %v4278 = vsel %vm2014, %v4276, %v4277
        %v4279 = vrot.slane %v4277, 4
        %v4280 = vrot.slane %v4137, 5
        %v4281 = vsel %vm2014, %v4279, %v4280
        %v4282 = vrot.slane %v4138, 5
        %v4283 = vrot.slane %v4282, 4
        %v4284 = vrot.slane %v4139, 5
        %v4285 = vsel %vm2014, %v4283, %v4284
        %v4286 = vrot.slane %v4284, 4
        %v4287 = vrot.slane %v4140, 5
        %v4288 = vsel %vm2014, %v4286, %v4287
        %v4289 = vrot.slane %v4141, 5
        %v4290 = vrot.slane %v4289, 4
        %v4291 = vrot.slane %v4142, 5
        %v4292 = vsel %vm2014, %v4290, %v4291
        %v4293 = vrot.slane %v4291, 4
        %v4294 = vrot.slane %v4143, 5
        %v4295 = vsel %vm2014, %v4293, %v4294
        %v4296 = vrot.slane %v4144, 5
        %v4297 = vrot.slane %v4296, 4
        %v4298 = vrot.slane %v4145, 5
        %v4299 = vsel %vm2014, %v4297, %v4298
        %v4300 = vrot.slane %v4298, 4
        %v4301 = vrot.slane %v4146, 5
        %v4302 = vsel %vm2014, %v4300, %v4301
        %v4303 = vrot.slane %v4147, 5
        %v4304 = vrot.slane %v4303, 4
        %v4305 = vrot.slane %v4148, 5
        %v4306 = vsel %vm2014, %v4304, %v4305
        %v4307 = vrot.slane %v4305, 4
        %v4308 = vrot.slane %v4149, 5
        %v4309 = vsel %vm2014, %v4307, %v4308
        %4342 = vst.msk [vmem:[#allocation3 + $0x4] sm:$0xf] %vm649, %v4201
        %4343 = vst.msk [vmem:[#allocation3 + $0xc] sm:$0xf] %vm649, %v4204
        %4344 = vst.msk [vmem:[#allocation3 + $0x14] sm:$0xf] %vm649, %v4208
        %4345 = vst.msk [vmem:[#allocation3 + $0x1c] sm:$0xf] %vm649, %v4211
        %4346 = vst.msk [vmem:[#allocation3 + $0x24] sm:$0xf] %vm649, %v4215
        %4347 = vst.msk [vmem:[#allocation3 + $0x2c] sm:$0xf] %vm649, %v4218
        %4348 = vst.msk [vmem:[#allocation3 + $0x34] sm:$0xf] %vm649, %v4222
        %4349 = vst.msk [vmem:[#allocation3 + $0x3c] sm:$0xf] %vm649, %v4225
        %4350 = vst.msk [vmem:[#allocation3 + $0x44] sm:$0xf] %vm649, %v4229
        %4351 = vst.msk [vmem:[#allocation3 + $0x4c] sm:$0xf] %vm649, %v4232
        %4352 = vst.msk [vmem:[#allocation3 + $0x54] sm:$0xf] %vm649, %v4236
        %4353 = vst.msk [vmem:[#allocation3 + $0x5c] sm:$0xf] %vm649, %v4239
        %4354 = vst.msk [vmem:[#allocation3 + $0x64] sm:$0xf] %vm649, %v4243
        %4355 = vst.msk [vmem:[#allocation3 + $0x6c] sm:$0xf] %vm649, %v4246
        %4356 = vst.msk [vmem:[#allocation3 + $0x74] sm:$0xf] %vm649, %v4250
        %4357 = vst.msk [vmem:[#allocation3 + $0x7c] sm:$0xf] %vm649, %v4253
        %4358 = vst.msk [vmem:[#allocation3 + $0x84] sm:$0xf] %vm649, %v4257
        %4359 = vst.msk [vmem:[#allocation3 + $0x8c] sm:$0xf] %vm649, %v4260
        %4360 = vst.msk [vmem:[#allocation3 + $0x94] sm:$0xf] %vm649, %v4264
        %4361 = vst.msk [vmem:[#allocation3 + $0x9c] sm:$0xf] %vm649, %v4267
        %4362 = vst.msk [vmem:[#allocation3 + $0xa4] sm:$0xf] %vm649, %v4271
        %4363 = vst.msk [vmem:[#allocation3 + $0xac] sm:$0xf] %vm649, %v4274
        %4364 = vst.msk [vmem:[#allocation3 + $0xb4] sm:$0xf] %vm649, %v4278
        %4365 = vst.msk [vmem:[#allocation3 + $0xbc] sm:$0xf] %vm649, %v4281
        %4366 = vst.msk [vmem:[#allocation3 + $0xc4] sm:$0xf] %vm649, %v4285
        %4367 = vst.msk [vmem:[#allocation3 + $0xcc] sm:$0xf] %vm649, %v4288
        %4368 = vst.msk [vmem:[#allocation3 + $0xd4] sm:$0xf] %vm649, %v4292
        %4369 = vst.msk [vmem:[#allocation3 + $0xdc] sm:$0xf] %vm649, %v4295
        %4370 = vst.msk [vmem:[#allocation3 + $0xe4] sm:$0xf] %vm649, %v4299
        %4371 = vst.msk [vmem:[#allocation3 + $0xec] sm:$0xf] %vm649, %v4302
        %4372 = vst.msk [vmem:[#allocation3 + $0xf4] sm:$0xf] %vm649, %v4306
        %4373 = vst.msk [vmem:[#allocation3 + $0xfc] sm:$0xf] %vm649, %v4309
        %v4374 = vld [vmem:[#allocation3] sm:$0xff]
        %v4375 = vld [vmem:[#allocation3 + $0x8] sm:$0xff]
        %v4376 = vld [vmem:[#allocation3 + $0x10] sm:$0xff]
        %v4377 = vld [vmem:[#allocation3 + $0x18] sm:$0xff]
        %v4378 = vld [vmem:[#allocation3 + $0x20] sm:$0xff]
        %v4379 = vld [vmem:[#allocation3 + $0x28] sm:$0xff]
        %v4380 = vld [vmem:[#allocation3 + $0x30] sm:$0xff]
        %v4381 = vld [vmem:[#allocation3 + $0x38] sm:$0xff]
        %v4382 = vld [vmem:[#allocation3 + $0x40] sm:$0xff]
        %v4383 = vld [vmem:[#allocation3 + $0x48] sm:$0xff]
        %v4384 = vld [vmem:[#allocation3 + $0x50] sm:$0xff]
        %v4385 = vld [vmem:[#allocation3 + $0x58] sm:$0xff]
        %v4386 = vld [vmem:[#allocation3 + $0x60] sm:$0xff]
        %v4387 = vld [vmem:[#allocation3 + $0x68] sm:$0xff]
        %v4388 = vld [vmem:[#allocation3 + $0x70] sm:$0xff]
        %v4389 = vld [vmem:[#allocation3 + $0x78] sm:$0xff]
        %v4390 = vld [vmem:[#allocation3 + $0x80] sm:$0xff]
        %v4391 = vld [vmem:[#allocation3 + $0x88] sm:$0xff]
        %v4392 = vld [vmem:[#allocation3 + $0x90] sm:$0xff]
        %v4393 = vld [vmem:[#allocation3 + $0x98] sm:$0xff]
        %v4394 = vld [vmem:[#allocation3 + $0xa0] sm:$0xff]
        %v4395 = vld [vmem:[#allocation3 + $0xa8] sm:$0xff]
        %v4396 = vld [vmem:[#allocation3 + $0xb0] sm:$0xff]
        %v4397 = vld [vmem:[#allocation3 + $0xb8] sm:$0xff]
        %v4398 = vld [vmem:[#allocation3 + $0xc0] sm:$0xff]
        %v4399 = vld [vmem:[#allocation3 + $0xc8] sm:$0xff]
        %v4400 = vld [vmem:[#allocation3 + $0xd0] sm:$0xff]
        %v4401 = vld [vmem:[#allocation3 + $0xd8] sm:$0xff]
        %v4402 = vld [vmem:[#allocation3 + $0xe0] sm:$0xff]
        %v4403 = vld [vmem:[#allocation3 + $0xe8] sm:$0xff]
        %v4404 = vld [vmem:[#allocation3 + $0xf0] sm:$0xff]
        %v4405 = vld [vmem:[#allocation3 + $0xf8] sm:$0xff]
        %v4406 = vld [vmem:[%s3] sm:$0xf]
        %v4407 = vld [vmem:[%s3 + $0x4] sm:$0xf]
        %v4408 = vld [vmem:[%s3 + $0x8] sm:$0xf]
        %v4409 = vld [vmem:[%s3 + $0xc] sm:$0xf]
        %v4410 = vld [vmem:[%s3 + $0x10] sm:$0xf]
        %v4411 = vld [vmem:[%s3 + $0x14] sm:$0xf]
        %v4412 = vld [vmem:[%s3 + $0x18] sm:$0xf]
        %v4413 = vld [vmem:[%s3 + $0x1c] sm:$0xf]
        %v4414 = vld [vmem:[%s3 + $0x20] sm:$0xf]
        %v4415 = vld [vmem:[%s3 + $0x24] sm:$0xf]
        %v4416 = vld [vmem:[%s3 + $0x28] sm:$0xf]
        %v4417 = vld [vmem:[%s3 + $0x2c] sm:$0xf]
        %v4418 = vld [vmem:[%s3 + $0x30] sm:$0xf]
        %v4419 = vld [vmem:[%s3 + $0x34] sm:$0xf]
        %v4420 = vld [vmem:[%s3 + $0x38] sm:$0xf]
        %v4421 = vld [vmem:[%s3 + $0x3c] sm:$0xf]
        %v4422 = vld [vmem:[%s3 + $0x40] sm:$0xf]
        %v4423 = vld [vmem:[%s3 + $0x44] sm:$0xf]
        %v4424 = vld [vmem:[%s4] sm:$0x1]
        %v4426 = vlaneseq
        %v4427 = vshrl.u32 %v4426, 7
        %v4428 = vsub.s32 0, %v4427
        %v4429 = vrot.slane %v4424, %v4428
        %v4463 = vunpack.c.l.b16 %v4374
        %v4464 = vunpack.c.h.b16 %v4374
        %v4465 = vunpack.c.l.b16 %v4375
        %v4466 = vunpack.c.h.b16 %v4375
        %v4467 = vunpack.c.l.b16 %v4376
        %v4468 = vunpack.c.h.b16 %v4376
        %v4469 = vunpack.c.l.b16 %v4377
        %v4470 = vunpack.c.h.b16 %v4377
        %v4471 = vunpack.c.l.b16 %v4378
        %v4472 = vunpack.c.h.b16 %v4378
        %v4473 = vunpack.c.l.b16 %v4379
        %v4474 = vunpack.c.h.b16 %v4379
        %v4475 = vunpack.c.l.b16 %v4380
        %v4476 = vunpack.c.h.b16 %v4380
        %v4477 = vunpack.c.l.b16 %v4381
        %v4478 = vunpack.c.h.b16 %v4381
        %v4479 = vunpack.c.l.b16 %v4382
        %v4480 = vunpack.c.h.b16 %v4382
        %v4481 = vunpack.c.l.b16 %v4383
        %v4482 = vunpack.c.h.b16 %v4383
        %v4483 = vunpack.c.l.b16 %v4384
        %v4484 = vunpack.c.h.b16 %v4384
        %v4485 = vunpack.c.l.b16 %v4385
        %v4486 = vunpack.c.h.b16 %v4385
        %v4487 = vunpack.c.l.b16 %v4386
        %v4488 = vunpack.c.h.b16 %v4386
        %v4489 = vunpack.c.l.b16 %v4387
        %v4490 = vunpack.c.h.b16 %v4387
        %v4491 = vunpack.c.l.b16 %v4388
        %v4492 = vunpack.c.h.b16 %v4388
        %v4493 = vunpack.c.l.b16 %v4389
        %v4494 = vunpack.c.h.b16 %v4389
        %v4495 = vunpack.c.l.b16 %v4390
        %v4496 = vunpack.c.h.b16 %v4390
        %v4497 = vunpack.c.l.b16 %v4391
        %v4498 = vunpack.c.h.b16 %v4391
        %v4499 = vunpack.c.l.b16 %v4392
        %v4500 = vunpack.c.h.b16 %v4392
        %v4501 = vunpack.c.l.b16 %v4393
        %v4502 = vunpack.c.h.b16 %v4393
        %v4503 = vunpack.c.l.b16 %v4394
        %v4504 = vunpack.c.h.b16 %v4394
        %v4505 = vunpack.c.l.b16 %v4395
        %v4506 = vunpack.c.h.b16 %v4395
        %v4507 = vunpack.c.l.b16 %v4396
        %v4508 = vunpack.c.h.b16 %v4396
        %v4509 = vunpack.c.l.b16 %v4397
        %v4510 = vunpack.c.h.b16 %v4397
        %v4511 = vunpack.c.l.b16 %v4398
        %v4512 = vunpack.c.h.b16 %v4398
        %v4513 = vunpack.c.l.b16 %v4399
        %v4514 = vunpack.c.h.b16 %v4399
        %v4515 = vunpack.c.l.b16 %v4400
        %v4516 = vunpack.c.h.b16 %v4400
        %v4517 = vunpack.c.l.b16 %v4401
        %v4518 = vunpack.c.h.b16 %v4401
        %v4519 = vunpack.c.l.b16 %v4402
        %v4520 = vunpack.c.h.b16 %v4402
        %v4521 = vunpack.c.l.b16 %v4403
        %v4522 = vunpack.c.h.b16 %v4403
        %v4523 = vunpack.c.l.b16 %v4404
        %v4524 = vunpack.c.h.b16 %v4404
        %v4525 = vunpack.c.l.b16 %v4405
        %v4526 = vunpack.c.h.b16 %v4405
        %v4527 = vpack.c.b16 %v4465, %v4463
        %v4528 = vpack.c.b16 %v4466, %v4464
        %v4529 = vpack.c.b16 %v4469, %v4467
        %v4530 = vpack.c.b16 %v4470, %v4468
        %v4531 = vpack.c.b16 %v4473, %v4471
        %v4532 = vpack.c.b16 %v4474, %v4472
        %v4533 = vpack.c.b16 %v4477, %v4475
        %v4534 = vpack.c.b16 %v4478, %v4476
        %v4535 = vpack.c.b16 %v4481, %v4479
        %v4536 = vpack.c.b16 %v4482, %v4480
        %v4537 = vpack.c.b16 %v4485, %v4483
        %v4538 = vpack.c.b16 %v4486, %v4484
        %v4539 = vpack.c.b16 %v4489, %v4487
        %v4540 = vpack.c.b16 %v4490, %v4488
        %v4541 = vpack.c.b16 %v4493, %v4491
        %v4542 = vpack.c.b16 %v4494, %v4492
        %v4543 = vpack.c.b16 %v4497, %v4495
        %v4544 = vpack.c.b16 %v4498, %v4496
        %v4545 = vpack.c.b16 %v4501, %v4499
        %v4546 = vpack.c.b16 %v4502, %v4500
        %v4547 = vpack.c.b16 %v4505, %v4503
        %v4548 = vpack.c.b16 %v4506, %v4504
        %v4549 = vpack.c.b16 %v4509, %v4507
        %v4550 = vpack.c.b16 %v4510, %v4508
        %v4551 = vpack.c.b16 %v4513, %v4511
        %v4552 = vpack.c.b16 %v4514, %v4512
        %v4553 = vpack.c.b16 %v4517, %v4515
        %v4554 = vpack.c.b16 %v4518, %v4516
        %v4555 = vpack.c.b16 %v4521, %v4519
        %v4556 = vpack.c.b16 %v4522, %v4520
        %v4557 = vpack.c.b16 %v4525, %v4523
        %v4558 = vpack.c.b16 %v4526, %v4524
        %v4593 = vunpack.c.l.b16 %v4406
        %v4594 = vunpack.c.l.b16 %v4407
        %v4595 = vunpack.c.l.b16 %v4408
        %v4596 = vunpack.c.l.b16 %v4409
        %v4597 = vunpack.c.l.b16 %v4410
        %v4598 = vunpack.c.l.b16 %v4411
        %v4599 = vunpack.c.l.b16 %v4412
        %v4600 = vunpack.c.l.b16 %v4413
        %v4601 = vunpack.c.l.b16 %v4414
        %v4602 = vunpack.c.l.b16 %v4415
        %v4603 = vunpack.c.l.b16 %v4416
        %v4604 = vunpack.c.l.b16 %v4417
        %v4605 = vunpack.c.l.b16 %v4418
        %v4606 = vunpack.c.l.b16 %v4419
        %v4607 = vunpack.c.l.b16 %v4420
        %v4608 = vunpack.c.l.b16 %v4421
        %v4609 = vunpack.c.l.b16 %v4422
        %v4610 = vunpack.c.l.b16 %v4423
        %v4611 = vpack.c.b16 %v4594, %v4593
        %v4612 = vpack.c.b16 %v4596, %v4595
        %v4613 = vpack.c.b16 %v4598, %v4597
        %v4614 = vpack.c.b16 %v4600, %v4599
        %v4615 = vpack.c.b16 %v4602, %v4601
        %v4616 = vpack.c.b16 %v4604, %v4603
        %v4617 = vpack.c.b16 %v4606, %v4605
        %v4618 = vpack.c.b16 %v4608, %v4607
        %v4619 = vpack.c.b16 %v4610, %v4609
        %vm4629 = vcmask 130048
        %v4631 = vsel %vm4629, %v4528, 0
        %v4634 = vsel %vm4629, %v4530, 0
        %v4637 = vsel %vm4629, %v4532, 0
        %v4640 = vsel %vm4629, %v4534, 0
        %v4643 = vsel %vm4629, %v4536, 0
        %v4646 = vsel %vm4629, %v4538, 0
        %v4649 = vsel %vm4629, %v4540, 0
        %v4652 = vsel %vm4629, %v4542, 0
        %v4655 = vsel %vm4629, %v4544, 0
        %v4658 = vsel %vm4629, %v4546, 0
        %v4661 = vsel %vm4629, %v4548, 0
        %v4664 = vsel %vm4629, %v4550, 0
        %v4667 = vsel %vm4629, %v4552, 0
        %v4670 = vsel %vm4629, %v4554, 0
        %v4673 = vsel %vm4629, %v4556, 0
        %v4676 = vsel %vm4629, %v4558, 0
        %4678 = vmatprep.subr.bf16.mxu0 0
        %4679 = vmatpush1.bf16.msra.mxu0 %v4618
        %4680 = vmatprep.subr.bf16.mxu0 0
        %4681 = vmatpush1.bf16.msra.mxu0 %v4617
        %4682 = vmatprep.subr.bf16.mxu0 0
        %4683 = vmatpush1.bf16.msra.mxu0 %v4616
        %4684 = vmatprep.subr.bf16.mxu0 0
        %4685 = vmatpush1.bf16.msra.mxu0 %v4615
        %4686 = vmatprep.subr.bf16.mxu0 0
        %4687 = vmatpush1.bf16.msra.mxu0 %v4614
        %4688 = vmatprep.subr.bf16.mxu0 0
        %4689 = vmatpush1.bf16.msra.mxu0 %v4613
        %4690 = vmatprep.subr.bf16.mxu0 0
        %4691 = vmatpush1.bf16.msra.mxu0 %v4612
        %4692 = vmatprep.subr.bf16.mxu0 0
        %4693 = vmatpush1.bf16.msra.mxu0 %v4611
        %4694 = vmatprep.subr.bf16.mxu0 0
        %4695 = vmatpush2.bf16.msra.mxu0 0
        %4696 = vmatprep.subr.bf16.mxu0 0
        %4697 = vmatpush2.bf16.msra.mxu0 0
        %4698 = vmatprep.subr.bf16.mxu0 0
        %4699 = vmatpush2.bf16.msra.mxu0 0
        %4700 = vmatprep.subr.bf16.mxu0 0
        %4701 = vmatpush2.bf16.msra.mxu0 0
        %4702 = vmatprep.subr.bf16.mxu0 0
        %4703 = vmatpush2.bf16.msra.mxu0 0
        %4704 = vmatprep.subr.bf16.mxu0 0
        %4705 = vmatpush2.bf16.msra.mxu0 0
        %4706 = vmatprep.subr.bf16.mxu0 0
        %4707 = vmatpush2.bf16.msra.mxu0 0
        %4708 = vmatprep.subr.bf16.mxu0 0
        %4709 = vmatpush2.bf16.msra.mxu0 %v4619
        %4710 = vmatprep.mubr.bf16.mxu0 %v4631
        %4711 = vmatmul.mubr.bf16.gmra.mxu0 %v4527
        %v4712 = vpop.f32.mrf.mxu0
        %v4713 = vadd.f32 %v4429, %v4712
        %v4714 = vpop.f32.mrf.mxu0
        %v4715 = vpop.f32.mrf.mxu0
        %v4716 = vadd.f32 %v4429, %v4715
        %v4717 = vpop.f32.mrf.mxu0
        %4718 = vmatprep.mubr.bf16.mxu0 %v4634
        %4719 = vmatmul.mubr.bf16.gmra.mxu0 %v4529
        %v4720 = vpop.f32.mrf.mxu0
        %v4721 = vadd.f32 %v4429, %v4720
        %v4722 = vpop.f32.mrf.mxu0
        %v4723 = vpop.f32.mrf.mxu0
        %v4724 = vadd.f32 %v4429, %v4723
        %v4725 = vpop.f32.mrf.mxu0
        %4726 = vmatprep.mubr.bf16.mxu0 %v4637
        %4727 = vmatmul.mubr.bf16.gmra.mxu0 %v4531
        %v4728 = vpop.f32.mrf.mxu0
        %v4729 = vadd.f32 %v4429, %v4728
        %v4730 = vpop.f32.mrf.mxu0
        %v4731 = vpop.f32.mrf.mxu0
        %v4732 = vadd.f32 %v4429, %v4731
        %v4733 = vpop.f32.mrf.mxu0
        %4734 = vmatprep.mubr.bf16.mxu0 %v4640
        %4735 = vmatmul.mubr.bf16.gmra.mxu0 %v4533
        %v4736 = vpop.f32.mrf.mxu0
        %v4737 = vadd.f32 %v4429, %v4736
        %v4738 = vpop.f32.mrf.mxu0
        %v4739 = vpop.f32.mrf.mxu0
        %v4740 = vadd.f32 %v4429, %v4739
        %v4741 = vpop.f32.mrf.mxu0
        %4742 = vmatprep.mubr.bf16.mxu0 %v4643
        %4743 = vmatmul.mubr.bf16.gmra.mxu0 %v4535
        %v4744 = vpop.f32.mrf.mxu0
        %v4745 = vadd.f32 %v4429, %v4744
        %v4746 = vpop.f32.mrf.mxu0
        %v4747 = vpop.f32.mrf.mxu0
        %v4748 = vadd.f32 %v4429, %v4747
        %v4749 = vpop.f32.mrf.mxu0
        %4750 = vmatprep.mubr.bf16.mxu0 %v4646
        %4751 = vmatmul.mubr.bf16.gmra.mxu0 %v4537
        %v4752 = vpop.f32.mrf.mxu0
        %v4753 = vadd.f32 %v4429, %v4752
        %v4754 = vpop.f32.mrf.mxu0
        %v4755 = vpop.f32.mrf.mxu0
        %v4756 = vadd.f32 %v4429, %v4755
        %v4757 = vpop.f32.mrf.mxu0
        %4758 = vmatprep.mubr.bf16.mxu0 %v4649
        %4759 = vmatmul.mubr.bf16.gmra.mxu0 %v4539
        %v4760 = vpop.f32.mrf.mxu0
        %v4761 = vadd.f32 %v4429, %v4760
        %v4762 = vpop.f32.mrf.mxu0
        %v4763 = vpop.f32.mrf.mxu0
        %v4764 = vadd.f32 %v4429, %v4763
        %v4765 = vpop.f32.mrf.mxu0
        %4766 = vmatprep.mubr.bf16.mxu0 %v4652
        %4767 = vmatmul.mubr.bf16.gmra.mxu0 %v4541
        %v4768 = vpop.f32.mrf.mxu0
        %v4769 = vadd.f32 %v4429, %v4768
        %v4770 = vpop.f32.mrf.mxu0
        %v4771 = vpop.f32.mrf.mxu0
        %v4772 = vadd.f32 %v4429, %v4771
        %v4773 = vpop.f32.mrf.mxu0
        %4774 = vmatprep.mubr.bf16.mxu0 %v4655
        %4775 = vmatmul.mubr.bf16.gmra.mxu0 %v4543
        %v4776 = vpop.f32.mrf.mxu0
        %v4777 = vadd.f32 %v4429, %v4776
        %v4778 = vpop.f32.mrf.mxu0
        %v4779 = vpop.f32.mrf.mxu0
        %v4780 = vadd.f32 %v4429, %v4779
        %v4781 = vpop.f32.mrf.mxu0
        %4782 = vmatprep.mubr.bf16.mxu0 %v4658
        %4783 = vmatmul.mubr.bf16.gmra.mxu0 %v4545
        %v4784 = vpop.f32.mrf.mxu0
        %v4785 = vadd.f32 %v4429, %v4784
        %v4786 = vpop.f32.mrf.mxu0
        %v4787 = vpop.f32.mrf.mxu0
        %v4788 = vadd.f32 %v4429, %v4787
        %v4789 = vpop.f32.mrf.mxu0
        %4790 = vmatprep.mubr.bf16.mxu0 %v4661
        %4791 = vmatmul.mubr.bf16.gmra.mxu0 %v4547
        %v4792 = vpop.f32.mrf.mxu0
        %v4793 = vadd.f32 %v4429, %v4792
        %v4794 = vpop.f32.mrf.mxu0
        %v4795 = vpop.f32.mrf.mxu0
        %v4796 = vadd.f32 %v4429, %v4795
        %v4797 = vpop.f32.mrf.mxu0
        %4798 = vmatprep.mubr.bf16.mxu0 %v4664
        %4799 = vmatmul.mubr.bf16.gmra.mxu0 %v4549
        %v4800 = vpop.f32.mrf.mxu0
        %v4801 = vadd.f32 %v4429, %v4800
        %v4802 = vpop.f32.mrf.mxu0
        %v4803 = vpop.f32.mrf.mxu0
        %v4804 = vadd.f32 %v4429, %v4803
        %v4805 = vpop.f32.mrf.mxu0
        %4806 = vmatprep.mubr.bf16.mxu0 %v4667
        %4807 = vmatmul.mubr.bf16.gmra.mxu0 %v4551
        %v4808 = vpop.f32.mrf.mxu0
        %v4809 = vadd.f32 %v4429, %v4808
        %v4810 = vpop.f32.mrf.mxu0
        %v4811 = vpop.f32.mrf.mxu0
        %v4812 = vadd.f32 %v4429, %v4811
        %v4813 = vpop.f32.mrf.mxu0
        %4814 = vmatprep.mubr.bf16.mxu0 %v4670
        %4815 = vmatmul.mubr.bf16.gmra.mxu0 %v4553
        %v4816 = vpop.f32.mrf.mxu0
        %v4817 = vadd.f32 %v4429, %v4816
        %v4818 = vpop.f32.mrf.mxu0
        %v4819 = vpop.f32.mrf.mxu0
        %v4820 = vadd.f32 %v4429, %v4819
        %v4821 = vpop.f32.mrf.mxu0
        %4822 = vmatprep.mubr.bf16.mxu0 %v4673
        %4823 = vmatmul.mubr.bf16.gmra.mxu0 %v4555
        %v4824 = vpop.f32.mrf.mxu0
        %v4825 = vadd.f32 %v4429, %v4824
        %v4826 = vpop.f32.mrf.mxu0
        %v4827 = vpop.f32.mrf.mxu0
        %v4828 = vadd.f32 %v4429, %v4827
        %v4829 = vpop.f32.mrf.mxu0
        %4830 = vmatprep.mubr.bf16.mxu0 %v4676
        %4831 = vmatmul.mubr.bf16.gmra.mxu0 %v4557
        %v4832 = vpop.f32.mrf.mxu0
        %v4833 = vadd.f32 %v4429, %v4832
        %v4834 = vpop.f32.mrf.mxu0
        %v4835 = vpop.f32.mrf.mxu0
        %v4836 = vadd.f32 %v4429, %v4835
        %v4837 = vpop.f32.mrf.mxu0
        %4838 = vdwg.mxu0
        %v4839 = vmax.f32 %v4713, 0.0
        %v4840 = vmax.f32 %v4716, 0.0
        %v4841 = vmax.f32 %v4721, 0.0
        %v4842 = vmax.f32 %v4724, 0.0
        %v4843 = vmax.f32 %v4729, 0.0
        %v4844 = vmax.f32 %v4732, 0.0
        %v4845 = vmax.f32 %v4737, 0.0
        %v4846 = vmax.f32 %v4740, 0.0
        %v4847 = vmax.f32 %v4745, 0.0
        %v4848 = vmax.f32 %v4748, 0.0
        %v4849 = vmax.f32 %v4753, 0.0
        %v4850 = vmax.f32 %v4756, 0.0
        %v4851 = vmax.f32 %v4761, 0.0
        %v4852 = vmax.f32 %v4764, 0.0
        %v4853 = vmax.f32 %v4769, 0.0
        %v4854 = vmax.f32 %v4772, 0.0
        %v4855 = vmax.f32 %v4777, 0.0
        %v4856 = vmax.f32 %v4780, 0.0
        %v4857 = vmax.f32 %v4785, 0.0
        %v4858 = vmax.f32 %v4788, 0.0
        %v4859 = vmax.f32 %v4793, 0.0
        %v4860 = vmax.f32 %v4796, 0.0
        %v4861 = vmax.f32 %v4801, 0.0
        %v4862 = vmax.f32 %v4804, 0.0
        %v4863 = vmax.f32 %v4809, 0.0
        %v4864 = vmax.f32 %v4812, 0.0
        %v4865 = vmax.f32 %v4817, 0.0
        %v4866 = vmax.f32 %v4820, 0.0
        %v4867 = vmax.f32 %v4825, 0.0
        %v4868 = vmax.f32 %v4828, 0.0
        %v4869 = vmax.f32 %v4833, 0.0
        %v4870 = vmax.f32 %v4836, 0.0
        %4871 = vst [vmem:[%s217] sm:$0xff] %v4839
        %4872 = vst [vmem:[%s217 + $0x8] sm:$0xff] %v4840
        %4873 = vst [vmem:[%s217 + $0x10] sm:$0xff] %v4841
        %4874 = vst [vmem:[%s217 + $0x18] sm:$0xff] %v4842
        %4875 = vst [vmem:[%s217 + $0x20] sm:$0xff] %v4843
        %4876 = vst [vmem:[%s217 + $0x28] sm:$0xff] %v4844
        %4877 = vst [vmem:[%s217 + $0x30] sm:$0xff] %v4845
        %4878 = vst [vmem:[%s217 + $0x38] sm:$0xff] %v4846
        %4879 = vst [vmem:[%s217 + $0x40] sm:$0xff] %v4847
        %4880 = vst [vmem:[%s217 + $0x48] sm:$0xff] %v4848
        %4881 = vst [vmem:[%s217 + $0x50] sm:$0xff] %v4849
        %4882 = vst [vmem:[%s217 + $0x58] sm:$0xff] %v4850
        %4883 = vst [vmem:[%s217 + $0x60] sm:$0xff] %v4851
        %4884 = vst [vmem:[%s217 + $0x68] sm:$0xff] %v4852
        %4885 = vst [vmem:[%s217 + $0x70] sm:$0xff] %v4853
        %4886 = vst [vmem:[%s217 + $0x78] sm:$0xff] %v4854
        %4887 = vst [vmem:[%s217 + $0x80] sm:$0xff] %v4855
        %4888 = vst [vmem:[%s217 + $0x88] sm:$0xff] %v4856
        %4889 = vst [vmem:[%s217 + $0x90] sm:$0xff] %v4857
        %4890 = vst [vmem:[%s217 + $0x98] sm:$0xff] %v4858
        %4891 = vst [vmem:[%s217 + $0xa0] sm:$0xff] %v4859
        %4892 = vst [vmem:[%s217 + $0xa8] sm:$0xff] %v4860
        %4893 = vst [vmem:[%s217 + $0xb0] sm:$0xff] %v4861
        %4894 = vst [vmem:[%s217 + $0xb8] sm:$0xff] %v4862
        %4895 = vst [vmem:[%s217 + $0xc0] sm:$0xff] %v4863
        %4896 = vst [vmem:[%s217 + $0xc8] sm:$0xff] %v4864
        %4897 = vst [vmem:[%s217 + $0xd0] sm:$0xff] %v4865
        %4898 = vst [vmem:[%s217 + $0xd8] sm:$0xff] %v4866
        %4899 = vst [vmem:[%s217 + $0xe0] sm:$0xff] %v4867
        %4900 = vst [vmem:[%s217 + $0xe8] sm:$0xff] %v4868
        %4901 = vst [vmem:[%s217 + $0xf0] sm:$0xff] %v4869
        %4902 = vst [vmem:[%s217 + $0xf8] sm:$0xff] %v4870
        %s4903 = sand.u32 %s137, 1
        %s4904 = scalar_lea.sflag [#allocation5], %s4903
        %s4905 = sand.u32 %s137, 1
        %s4906 = smul.addr %s4905, 256
        %s4907 = scalar_lea.vmem [#allocation4], %s4906
        // Predicated region
        $region41: #{fire_forward.1} parent=39 // pred_check
          %p4908 = pneg %p147
        $region42: #{fire_forward.1} parent=39 // pred_check_branch
          %4910 = sbr.rel (%p4908) target = $region44
        $region43: #{fire_forward.1} parent=39 // pred_region
          %s4912 = ssub.s32 4096, 4096
          %4913 = vsyncadd %s4904, %s4912
          %s4914 = smul.addr %s19, 32
          %s4915 = smul.addr %s4914, 128
          %s4916 = scalar_lea.hbm %s5, %s4915
          %s4917 = sshll.u32 %s4907, 4
          %s4918 = int_to_ptr.vmem [resolvable:$true] %s4917
          %4923 = dma.vmem_to_hbm [thread:$0]  %s4918, 4096, %s4916, %s4904, 128, 128, 8
        $region44: #{fire_forward.1} parent=39 // pred_fallthru
          _
      $region40: #{fire_forward.1} parent=5 // pred_fallthru
        _
      %p4924 = scmp.le.s32.totalorder 2, %s14
      // Predicated region
      $region45: #{fire_forward.1} parent=5 // pred_check
        %p4925 = pneg %p4924
      $region46: #{fire_forward.1} parent=5 // pred_check_branch
        %4927 = sbr.rel (%p4925) target = $region48
      $region47: #{fire_forward.1} parent=5 // pred_region
        %s4928 = ssub.s32 %s14, 2
        // Predicated region
        $region49: #{fire_forward.1} parent=47 // pred_check
          %p4929 = pneg %p153
        $region50: #{fire_forward.1} parent=47 // pred_check_branch
          %4931 = sbr.rel (%p4929) target = $region52
        $region51: #{fire_forward.1} parent=47 // pred_region
          %s4932 = sand.u32 %s138, 1
          %s4933 = scalar_lea.sflag [#allocation5], %s4932
          %s4934 = sand.u32 %s138, 1
          %s4935 = smul.addr %s4934, 256
          %s4936 = scalar_lea.vmem [#allocation4], %s4935
          %4937 = dma.done %s4933, 4096
        $region52: #{fire_forward.1} parent=47 // pred_fallthru
          _
      $region48: #{fire_forward.1} parent=5 // pred_fallthru
        _
    $region6: #{fire_forward.1} parent=1 // loop_footer
      %s18 = sadd.s32 1, %s14
    $region7: #{fire_forward.1} parent=1 // loop_footer_branch
      %13 = sbr.rel target = $region3
    $region8: #{fire_forward.1} parent=1 // loop_exit
      _
    %4938 = vsyncpa [#allocation5], 1
    %s4939 = scalar_lea.sflag [#allocation5], 1
    %4940 = vsyncpa %s4939, 1

</llo_original>
